<compile_context>
chip_gen: v6e
topology: v6e:2x2x1
jax: 0.10.0
libtpu: 0.0.40
codegen_flags: <defaults>
</compile_context>

<pallas_src>
import math
import functools

import jax
import jax.numpy as jnp
from jax import lax
from jax.experimental import pallas as pl
from jax.experimental.pallas import tpu as pltpu


# ---------------------------------------------------------------------------
# in-kernel helpers (traced inside the Pallas body)
# ---------------------------------------------------------------------------
def _layernorm(x, w, b, eps=1e-5):
    mu = jnp.mean(x, axis=-1, keepdims=True)
    var = jnp.mean(jnp.square(x - mu), axis=-1, keepdims=True)
    return (x - mu) * lax.rsqrt(var + eps) * w + b


def _gelu_tanh(x):
    # tanh-approximate GELU (EUP-friendly); very close to nn.GELU's erf form.
    c = math.sqrt(2.0 / math.pi)
    return 0.5 * x * (1.0 + jnp.tanh(c * (x + 0.044715 * x * x * x)))


# ---------------------------------------------------------------------------
# fused ViT kernel: grid = (batch_tiles, layers); activations carried in VMEM
# ---------------------------------------------------------------------------
def vit_kernel(
    patch_ref, pw_ref, addc_ref,
    ln1w_ref, ln1b_ref, wqkv_ref, wo_ref,
    ln2w_ref, ln2b_ref, fc1w_ref, fc1b_ref, fc2w_ref, fc2b_ref,
    nw_ref, nb_ref, hw_ref, hb_ref,
    o_ref, x_ref,
    *, n_head, seq_len, s_pad, b_tile,
):
    f32 = jnp.float32
    bf16 = jnp.bfloat16
    l = pl.program_id(1)
    D = pw_ref.shape[1]
    dk = D // n_head

    # ---- layer 0: patch embedding fused with cls / positional / bias add ----
    # addc rows per image: 0 -> cls + pos[0]; 1..N -> pos + conv_bias; pad -> 0.
    # patch rows 0 and > N are zero, so the single matmul covers all tokens.
    @pl.when(l == 0)
    def _init():
        pe = jnp.dot(patch_ref[...], pw_ref[...], preferred_element_type=f32)
        x_ref[...] = pe + addc_ref[...]

    x = x_ref[...]                                             # (R, D) f32 carry

    # additive key-padding bias: 0 for valid keys, -1e30 for padded keys.
    key_bias = jnp.where(
        lax.broadcasted_iota(jnp.int32, (1, s_pad), 1) < seq_len, 0.0, -1e30)

    # ---------------- pre-norm multi-head self-attention ----------------
    y = _layernorm(x, ln1w_ref[...], ln1b_ref[...]).astype(bf16)
    # one lane-dense MXU pass for Q, K, V of all heads (scale folded into Wq)
    qkv = jnp.dot(y, wqkv_ref[...], preferred_element_type=f32)   # (R, 3D) f32

    ctx_rows = []
    for b in range(b_tile):                     # per-image attention (no mixing)
        r0 = b * s_pad
        head_cols = []
        for h in range(n_head):                 # tiny S x S cores; static unroll
            c0 = h * dk
            qh = qkv[r0:r0 + s_pad, c0:c0 + dk]                       # f32
            khT = qkv[r0:r0 + s_pad, D + c0:D + c0 + dk].T            # f32 (dk,S)
            vh = qkv[r0:r0 + s_pad, 2 * D + c0:2 * D + c0 + dk]       # f32
            s = jnp.dot(qh.astype(bf16), khT.astype(bf16),
                        preferred_element_type=f32)                   # (S, S) f32
            s = s + key_bias                     # mask in f32, before any downcast
            m = jnp.max(s, axis=-1, keepdims=True)
            e = jnp.exp(s - m)
            p = (e * pl.reciprocal(jnp.sum(e, axis=-1, keepdims=True),
                                   approx=True)).astype(bf16)
            head_cols.append(jnp.dot(p, vh.astype(bf16),
                                     preferred_element_type=f32))     # (S, dk)
        ctx_rows.append(jnp.concatenate(head_cols, axis=-1))          # (S, D)
    ctx = jnp.concatenate(ctx_rows, axis=0).astype(bf16)              # (R, D)
    # concat(heads) @ Wo as ONE lane-dense matmul (Wo rows ordered h*dk + c)
    x = x + jnp.dot(ctx, wo_ref[...], preferred_element_type=f32)

    # ---------------- pre-norm MLP ----------------
    z = _layernorm(x, ln2w_ref[...], ln2b_ref[...]).astype(bf16)
    h1 = jnp.dot(z, fc1w_ref[...], preferred_element_type=f32) + fc1b_ref[...]
    h1 = _gelu_tanh(h1).astype(bf16)
    x = x + jnp.dot(h1, fc2w_ref[...], preferred_element_type=f32) + fc2b_ref[...]

    x_ref[...] = x                                             # carry to next layer

    # ---- final LayerNorm (cls token only) + classifier + exact softmax ----
    @pl.when(l == pl.num_programs(1) - 1)
    def _final():
        cls = jnp.concatenate(
            [x[b * s_pad:b * s_pad + 1, :] for b in range(b_tile)], axis=0)
        yc = _layernorm(cls, nw_ref[...], nb_ref[...])
        logits = (jnp.dot(yc, hw_ref[...], preferred_element_type=f32)
                  + hb_ref[...])
        mx = jnp.max(logits, axis=-1, keepdims=True)
        ex = jnp.exp(logits - mx)
        o_ref[...] = ex / jnp.sum(ex, axis=-1, keepdims=True)   # exact softmax


# ---------------------------------------------------------------------------
# wrapper: weight repacking (bf16, fused QKV, baked add table) + pallas_call
# ---------------------------------------------------------------------------
def vit_forward(x_img, params, *, patch_size, n_head, b_tile=2):
    f32, bf16 = jnp.float32, jnp.bfloat16
    B, C_in, H, W = x_img.shape
    p = patch_size
    gh, gw = H // p, W // p
    N = gh * gw
    K = C_in * p * p
    D = params["patch_w"].shape[1]
    S = N + 1
    S_pad = ((S + 7) // 8) * 8                  # sublane (8) alignment for tokens
    L = len(params["layers"])
    dk = D // n_head
    M = params["layers"][0]["fc1_w"].shape[1]
    C_out = params["head_w"].shape[1]

    b_tile = min(b_tile, B)
    assert B % b_tile == 0, "batch must be divisible by the batch tile"
    b_grid = B // b_tile
    R = b_tile * S_pad                          # matmul rows per grid step

    # Conv2d(k=stride=p) == matmul over (C, p, p)-flattened patches; patch order
    # row-major over (gh, gw) == conv output .flatten(2).transpose(1, 2).
    patches = (x_img.reshape(B, C_in, gh, p, gw, p)
               .transpose(0, 2, 4, 1, 3, 5)
               .reshape(B, N, K)).astype(f32)
    # token row 0 reserved for cls (content supplied by addc); rows > N padded.
    tok = jnp.pad(patches, ((0, 0), (1, S_pad - 1 - N), (0, 0)))
    tok = tok.reshape(b_grid, R, K).astype(bf16)

    # additive table baked once: cls token + positional embedding + conv bias.
    addc = jnp.zeros((S_pad, D), f32)
    addc = addc.at[1:S].set(params["pos"][0, 1:] + params["patch_b"][None, :])
    addc = addc.at[0].set(params["pos"][0, 0] + params["class_token"][0, 0])
    addc = jnp.tile(addc, (b_tile, 1))                                # (R, D)

    # fused QKV (L, D, 3D), bf16; 1/sqrt(d_k) folded into the Wq columns.
    scale = 1.0 / math.sqrt(dk)
    wqkv = jnp.stack(
        [jnp.concatenate([lp["wq"] * scale, lp["wk"], lp["wv"]], axis=1)
         for lp in params["layers"]]).astype(bf16)                    # (L, D, 3D)
    wo = jnp.stack([lp["wo"] for lp in params["layers"]]).astype(bf16)    # (L, D, D)
    fc1w = jnp.stack([lp["fc1_w"] for lp in params["layers"]]).astype(bf16)
    fc2w = jnp.stack([lp["fc2_w"] for lp in params["layers"]]).astype(bf16)

    def stack_vec(name, n):
        return jnp.stack([lp[name].reshape(1, n) for lp in params["layers"]])

    ln1w, ln1b = stack_vec("ln1_w", D), stack_vec("ln1_b", D)
    ln2w, ln2b = stack_vec("ln2_w", D), stack_vec("ln2_b", D)
    fc1b = stack_vec("fc1_b", M)
    fc2b = stack_vec("fc2_b", D)

    kernel = functools.partial(vit_kernel, n_head=n_head, seq_len=S,
                               s_pad=S_pad, b_tile=b_tile)

    def const_spec(shape):                       # resident across the whole grid
        nd = len(shape)
        return pl.BlockSpec(shape, lambda *_: (0,) * nd)

    def layer_spec(*tail):                       # streamed per layer (l axis)
        nd = 1 + len(tail)
        return pl.BlockSpec((None,) + tail, lambda bi, l: (l,) + (0,) * (nd - 1))

    out = pl.pallas_call(
        kernel,
        out_shape=jax.ShapeDtypeStruct((b_grid, b_tile, C_out), f32),
        grid=(b_grid, L),
        in_specs=[
            pl.BlockSpec((None, R, K), lambda bi, l: (bi, 0, 0)),    # patches (bf16)
            const_spec((K, D)),                                      # patch_w (bf16)
            const_spec((R, D)),                                      # cls+pos+bias
            layer_spec(1, D), layer_spec(1, D),                      # ln1 w, b
            layer_spec(D, 3 * D),                                    # fused QKV
            layer_spec(D, D),                                        # Wo
            layer_spec(1, D), layer_spec(1, D),                      # ln2 w, b
            layer_spec(D, M), layer_spec(1, M),                      # fc1 w, b
            layer_spec(M, D), layer_spec(1, D),                      # fc2 w, b
            const_spec((1, D)), const_spec((1, D)),                  # final norm w, b
            const_spec((D, C_out)), const_spec((1, C_out)),          # head w, b
        ],
        out_specs=pl.BlockSpec((None, b_tile, C_out), lambda bi, l: (bi, 0, 0)),
        scratch_shapes=[pltpu.VMEM((R, D), f32)],      # activation carry across L
        compiler_params=pltpu.CompilerParams(
            # batch tiles -> both TCs on v7x; layer axis is the streamed carry.
            dimension_semantics=("parallel", "arbitrary"),
            # generation note: raise toward ~100 MB on v5e/v6e if pinning more;
            # never plan above ~56 MB on v7x (64 MiB physical) - stream instead.
            vmem_limit_bytes=32 * 1024 * 1024,
        ),
    )(tok, params["patch_w"].astype(bf16), addc,
      ln1w, ln1b, wqkv, wo, ln2w, ln2b, fc1w, fc1b, fc2w, fc2b,
      params["norm_w"].reshape(1, D), params["norm_b"].reshape(1, D),
      params["head_w"], params["head_b"].reshape(1, C_out))
    return out.reshape(B, C_out)


# ---------------------------------------------------------------------------
# deterministic parameter init (shapes match the PyTorch module)
# ---------------------------------------------------------------------------
def init_params(key, *, patch_size, in_c, hidden, mlp_dim, num_layers, seq_len,
                num_classes):
    keys = jax.random.split(key, 3 + num_layers)
    kpp = in_c * patch_size * patch_size
    f32 = jnp.float32
    p = {
        "patch_w": 0.02 * jax.random.normal(keys[0], (kpp, hidden), f32),
        "patch_b": jnp.zeros((hidden,), f32),
        "class_token": jnp.zeros((1, 1, hidden), f32),
        "pos": 0.02 * jax.random.normal(keys[1], (1, seq_len, hidden), f32),
        "norm_w": jnp.ones((hidden,), f32),
        "norm_b": jnp.zeros((hidden,), f32),
        "head_w": 0.01 * jax.random.normal(keys[2], (hidden, num_classes), f32),
        "head_b": jnp.zeros((num_classes,), f32),
        "layers": [],
    }
    for i in range(num_layers):
        lk = jax.random.split(keys[3 + i], 6)
        p["layers"].append(dict(
            ln1_w=jnp.ones((hidden,), f32), ln1_b=jnp.zeros((hidden,), f32),
            wq=0.01 * jax.random.normal(lk[0], (hidden, hidden), f32),
            wk=0.01 * jax.random.normal(lk[1], (hidden, hidden), f32),
            wv=0.01 * jax.random.normal(lk[2], (hidden, hidden), f32),
            wo=0.01 * jax.random.normal(lk[3], (hidden, hidden), f32),
            ln2_w=jnp.ones((hidden,), f32), ln2_b=jnp.zeros((hidden,), f32),
            fc1_w=0.01 * jax.random.normal(lk[4], (hidden, mlp_dim), f32),
            fc1_b=jnp.zeros((mlp_dim,), f32),
            fc2_w=0.01 * jax.random.normal(lk[5], (mlp_dim, hidden), f32),
            fc2_b=jnp.zeros((hidden,), f32),
        ))
    return p


# ---------------------------------------------------------------------------
if __name__ == "__main__":
    # small ViT: image 16x16, patch 4 -> 16 patches (+1 cls -> seq 17, pad 24)
    B, C, H, W = 4, 4, 16, 16
    patch_size, hidden, mlp_dim = 4, 32, 64
    num_heads, num_layers, num_classes = 4, 2, 10
    seq_len = (H // patch_size) * (W // patch_size) + 1

    key = jax.random.PRNGKey(0)
    kx, kp = jax.random.split(key)
    x_img = jax.random.normal(kx, (B, C, H, W), jnp.float32)
    params = init_params(
        kp, patch_size=patch_size, in_c=C, hidden=hidden, mlp_dim=mlp_dim,
        num_layers=num_layers, seq_len=seq_len, num_classes=num_classes)

    fwd = jax.jit(functools.partial(vit_forward, patch_size=patch_size,
                                    n_head=num_heads, b_tile=2))
    out = jax.block_until_ready(fwd(x_img, params))

    assert out.shape == (B, num_classes)
    assert bool(jnp.all(jnp.isfinite(out)))
    # classifier softmax rows must sum to ~1 (kept exact)
    assert bool(jnp.allclose(jnp.sum(out, axis=-1), 1.0, atol=1e-5))
    print("KERNEL_OK")
</pallas_src>

<mosaic_0001>
module attributes {stable_mosaic.version = 11 : i64} {
  func.func @vit_kernel(%arg0: i32, %arg1: i32, %arg2: memref<1x48x64xbf16, #tpu.memory_space<vmem>>, %arg3: memref<64x32xbf16, #tpu.memory_space<vmem>>, %arg4: memref<48x32xf32, #tpu.memory_space<vmem>>, %arg5: memref<1x1x32xf32, #tpu.memory_space<vmem>>, %arg6: memref<1x1x32xf32, #tpu.memory_space<vmem>>, %arg7: memref<1x32x96xbf16, #tpu.memory_space<vmem>>, %arg8: memref<1x32x32xbf16, #tpu.memory_space<vmem>>, %arg9: memref<1x1x32xf32, #tpu.memory_space<vmem>>, %arg10: memref<1x1x32xf32, #tpu.memory_space<vmem>>, %arg11: memref<1x32x64xbf16, #tpu.memory_space<vmem>>, %arg12: memref<1x1x64xf32, #tpu.memory_space<vmem>>, %arg13: memref<1x64x32xbf16, #tpu.memory_space<vmem>>, %arg14: memref<1x1x32xf32, #tpu.memory_space<vmem>>, %arg15: memref<1x32xf32, #tpu.memory_space<vmem>>, %arg16: memref<1x32xf32, #tpu.memory_space<vmem>>, %arg17: memref<32x10xf32, #tpu.memory_space<vmem>>, %arg18: memref<1x10xf32, #tpu.memory_space<vmem>>, %arg19: memref<1x2x10xf32, #tpu.memory_space<vmem>>, %arg20: memref<48x32xf32, #tpu.memory_space<vmem>>) attributes {dimension_semantics = [#tpu.dimension_semantics<parallel>, #tpu.dimension_semantics<arbitrary>], iteration_bounds = array<i64: 2, 2>, scalar_prefetch = 0 : i64, scratch_operands = 1 : i64, tpu.core_type = #tpu.core_type<tc>, window_params = [{transform_indices = @transform_0, window_bounds = array<i64: 1, 48, 64>}, {pipeline_mode = #tpu.pipeline_mode<synchronous>, transform_indices = @transform_1, window_bounds = array<i64: 64, 32>}, {pipeline_mode = #tpu.pipeline_mode<synchronous>, transform_indices = @transform_2, window_bounds = array<i64: 48, 32>}, {transform_indices = @transform_3, window_bounds = array<i64: 1, 1, 32>}, {transform_indices = @transform_4, window_bounds = array<i64: 1, 1, 32>}, {transform_indices = @transform_5, window_bounds = array<i64: 1, 32, 96>}, {transform_indices = @transform_6, window_bounds = array<i64: 1, 32, 32>}, {transform_indices = @transform_7, window_bounds = array<i64: 1, 1, 32>}, {transform_indices = @transform_8, window_bounds = array<i64: 1, 1, 32>}, {transform_indices = @transform_9, window_bounds = array<i64: 1, 32, 64>}, {transform_indices = @transform_10, window_bounds = array<i64: 1, 1, 64>}, {transform_indices = @transform_11, window_bounds = array<i64: 1, 64, 32>}, {transform_indices = @transform_12, window_bounds = array<i64: 1, 1, 32>}, {pipeline_mode = #tpu.pipeline_mode<synchronous>, transform_indices = @transform_13, window_bounds = array<i64: 1, 32>}, {pipeline_mode = #tpu.pipeline_mode<synchronous>, transform_indices = @transform_14, window_bounds = array<i64: 1, 32>}, {pipeline_mode = #tpu.pipeline_mode<synchronous>, transform_indices = @transform_15, window_bounds = array<i64: 32, 10>}, {pipeline_mode = #tpu.pipeline_mode<synchronous>, transform_indices = @transform_16, window_bounds = array<i64: 1, 10>}, {transform_indices = @transform_17, window_bounds = array<i64: 1, 2, 10>}]} {
    %c0_i32 = arith.constant 0 : i32
    %0 = arith.cmpi eq, %arg1, %c0_i32 : i32
    %1 = arith.extui %0 : i1 to i32
    %c0_i32_0 = arith.constant 0 : i32
    %2 = arith.cmpi ne, %1, %c0_i32_0 : i32
    scf.if %2 {
      %c0_86 = arith.constant 0 : index
      %c0_87 = arith.constant 0 : index
      %c0_88 = arith.constant 0 : index
      %284 = vector.load %arg2[%c0_86, %c0_87, %c0_88] : memref<1x48x64xbf16, #tpu.memory_space<vmem>>, vector<1x48x64xbf16>
      %285 = vector.shape_cast %284 : vector<1x48x64xbf16> to vector<48x64xbf16>
      %c0_89 = arith.constant 0 : index
      %c0_90 = arith.constant 0 : index
      %286 = vector.load %arg3[%c0_89, %c0_90] : memref<64x32xbf16, #tpu.memory_space<vmem>>, vector<64x32xbf16>
      %cst_91 = arith.constant dense<0.000000e+00> : vector<48x32xf32>
      %287 = tpu.matmul %285, %286, %cst_91 {dimension_numbers = #tpu.dot_dimension_numbers<[1], [0], [0], [1], [0, 0, 1, 1], [], []>} : vector<48x64xbf16>, vector<64x32xbf16>, vector<48x32xf32> -> vector<48x32xf32>
      %c0_92 = arith.constant 0 : index
      %c0_93 = arith.constant 0 : index
      %288 = vector.load %arg4[%c0_92, %c0_93] : memref<48x32xf32, #tpu.memory_space<vmem>>, vector<48x32xf32>
      %289 = arith.addf %287, %288 : vector<48x32xf32>
      %c0_94 = arith.constant 0 : index
      %c0_95 = arith.constant 0 : index
      %290 = vector.load %arg20[%c0_94, %c0_95] : memref<48x32xf32, #tpu.memory_space<vmem>>, vector<48x32xf32>
      tpu.vector_store %arg20[%c0_94, %c0_95], %289 {strides = array<i32>} : memref<48x32xf32, #tpu.memory_space<vmem>>, vector<48x32xf32>,
    } else {
    }
    %c0 = arith.constant 0 : index
    %c0_1 = arith.constant 0 : index
    %3 = vector.load %arg20[%c0, %c0_1] : memref<48x32xf32, #tpu.memory_space<vmem>>, vector<48x32xf32>
    %4 = tpu.iota {dimensions = array<i32: 1>} : vector<1x24xi32>
    %c17_i32 = arith.constant 17 : i32
    %5 = vector.broadcast %c17_i32 : i32 to vector<1x24xi32>
    %6 = arith.cmpi slt, %4, %5 : vector<1x24xi32>
    %cst = arith.constant 0.000000e+00 : f32
    %cst_2 = arith.constant -1.000000e+30 : f32
    %7 = vector.broadcast %cst : f32 to vector<1x24xf32>
    %8 = vector.broadcast %cst_2 : f32 to vector<1x24xf32>
    %9 = arith.select %6, %7, %8 : vector<1x24xi1>, vector<1x24xf32>
    %c0_3 = arith.constant 0 : index
    %c0_4 = arith.constant 0 : index
    %c0_5 = arith.constant 0 : index
    %10 = vector.load %arg5[%c0_3, %c0_4, %c0_5] : memref<1x1x32xf32, #tpu.memory_space<vmem>>, vector<1x1x32xf32>
    %11 = vector.shape_cast %10 : vector<1x1x32xf32> to vector<1x32xf32>
    %c0_6 = arith.constant 0 : index
    %c0_7 = arith.constant 0 : index
    %c0_8 = arith.constant 0 : index
    %12 = vector.load %arg6[%c0_6, %c0_7, %c0_8] : memref<1x1x32xf32, #tpu.memory_space<vmem>>, vector<1x1x32xf32>
    %13 = vector.shape_cast %12 : vector<1x1x32xf32> to vector<1x32xf32>
    %cst_9 = arith.constant dense<0.000000e+00> : vector<48xf32>
    %14 = vector.multi_reduction <add>, %3, %cst_9 [1] : vector<48x32xf32> to vector<48xf32>
    %15 = vector.shape_cast %14 : vector<48xf32> to vector<48x1xf32>
    %cst_10 = arith.constant 3.200000e+01 : f32
    %16 = vector.broadcast %cst_10 : f32 to vector<48x1xf32>
    %17 = arith.divf %15, %16 : vector<48x1xf32>
    %18 = vector.broadcast %17 : vector<48x1xf32> to vector<48x32xf32>
    %19 = arith.subf %3, %18 : vector<48x32xf32>
    %20 = arith.mulf %19, %19 : vector<48x32xf32>
    %cst_11 = arith.constant dense<0.000000e+00> : vector<48xf32>
    %21 = vector.multi_reduction <add>, %20, %cst_11 [1] : vector<48x32xf32> to vector<48xf32>
    %22 = vector.shape_cast %21 : vector<48xf32> to vector<48x1xf32>
    %cst_12 = arith.constant 3.200000e+01 : f32
    %23 = vector.broadcast %cst_12 : f32 to vector<48x1xf32>
    %24 = arith.divf %22, %23 : vector<48x1xf32>
    %25 = vector.broadcast %17 : vector<48x1xf32> to vector<48x32xf32>
    %26 = arith.subf %3, %25 : vector<48x32xf32>
    %cst_13 = arith.constant 9.99999974E-6 : f32
    %27 = vector.broadcast %cst_13 : f32 to vector<48x1xf32>
    %28 = arith.addf %24, %27 : vector<48x1xf32>
    %29 = math.rsqrt %28 : vector<48x1xf32>
    %30 = vector.broadcast %29 : vector<48x1xf32> to vector<48x32xf32>
    %31 = arith.mulf %26, %30 : vector<48x32xf32>
    %32 = vector.broadcast %11 : vector<1x32xf32> to vector<48x32xf32>
    %33 = arith.mulf %31, %32 : vector<48x32xf32>
    %34 = vector.broadcast %13 : vector<1x32xf32> to vector<48x32xf32>
    %35 = arith.addf %33, %34 : vector<48x32xf32>
    %36 = arith.truncf %35 : vector<48x32xf32> to vector<48x32xbf16>
    %c0_14 = arith.constant 0 : index
    %c0_15 = arith.constant 0 : index
    %c0_16 = arith.constant 0 : index
    %37 = vector.load %arg7[%c0_14, %c0_15, %c0_16] : memref<1x32x96xbf16, #tpu.memory_space<vmem>>, vector<1x32x96xbf16>
    %38 = vector.shape_cast %37 : vector<1x32x96xbf16> to vector<32x96xbf16>
    %cst_17 = arith.constant dense<0.000000e+00> : vector<48x96xf32>
    %39 = tpu.matmul %36, %38, %cst_17 {dimension_numbers = #tpu.dot_dimension_numbers<[1], [0], [0], [1], [0, 0, 1, 1], [], []>} : vector<48x32xbf16>, vector<32x96xbf16>, vector<48x96xf32> -> vector<48x96xf32>
    %40 = vector.extract_strided_slice %39 {offsets = [0, 0], sizes = [24, 8], strides = [1, 1]} : vector<48x96xf32> to vector<24x8xf32>
    %41 = vector.extract_strided_slice %39 {offsets = [0, 32], sizes = [24, 8], strides = [1, 1]} : vector<48x96xf32> to vector<24x8xf32>
    %42 = tpu.transpose %41, [1, 0] : vector<24x8xf32> -> vector<8x24xf32>
    %43 = vector.extract_strided_slice %39 {offsets = [0, 64], sizes = [24, 8], strides = [1, 1]} : vector<48x96xf32> to vector<24x8xf32>
    %44 = arith.truncf %40 : vector<24x8xf32> to vector<24x8xbf16>
    %45 = arith.truncf %42 : vector<8x24xf32> to vector<8x24xbf16>
    %cst_18 = arith.constant dense<0.000000e+00> : vector<24x24xf32>
    %46 = tpu.matmul %44, %45, %cst_18 {dimension_numbers = #tpu.dot_dimension_numbers<[1], [0], [0], [1], [0, 0, 1, 1], [], []>} : vector<24x8xbf16>, vector<8x24xbf16>, vector<24x24xf32> -> vector<24x24xf32>
    %47 = vector.broadcast %9 : vector<1x24xf32> to vector<24x24xf32>
    %48 = arith.addf %46, %47 : vector<24x24xf32>
    %cst_19 = arith.constant dense<0xFF800000> : vector<24xf32>
    %49 = vector.multi_reduction <maximumf>, %48, %cst_19 [1] : vector<24x24xf32> to vector<24xf32>
    %50 = vector.shape_cast %49 : vector<24xf32> to vector<24x1xf32>
    %51 = vector.broadcast %50 : vector<24x1xf32> to vector<24x24xf32>
    %52 = arith.subf %48, %51 : vector<24x24xf32>
    %53 = math.exp %52 : vector<24x24xf32>
    %cst_20 = arith.constant dense<0.000000e+00> : vector<24xf32>
    %54 = vector.multi_reduction <add>, %53, %cst_20 [1] : vector<24x24xf32> to vector<24xf32>
    %55 = vector.shape_cast %54 : vector<24xf32> to vector<24x1xf32>
    %56 = tpu.reciprocal %55 {approx = true} : vector<24x1xf32> -> vector<24x1xf32>
    %57 = vector.broadcast %56 : vector<24x1xf32> to vector<24x24xf32>
    %58 = arith.mulf %53, %57 : vector<24x24xf32>
    %59 = arith.truncf %58 : vector<24x24xf32> to vector<24x24xbf16>
    %60 = arith.truncf %43 : vector<24x8xf32> to vector<24x8xbf16>
    %cst_21 = arith.constant dense<0.000000e+00> : vector<24x8xf32>
    %61 = tpu.matmul %59, %60, %cst_21 {dimension_numbers = #tpu.dot_dimension_numbers<[1], [0], [0], [1], [0, 0, 1, 1], [], []>} : vector<24x24xbf16>, vector<24x8xbf16>, vector<24x8xf32> -> vector<24x8xf32>
    %62 = vector.extract_strided_slice %39 {offsets = [0, 8], sizes = [24, 8], strides = [1, 1]} : vector<48x96xf32> to vector<24x8xf32>
    %63 = vector.extract_strided_slice %39 {offsets = [0, 40], sizes = [24, 8], strides = [1, 1]} : vector<48x96xf32> to vector<24x8xf32>
    %64 = tpu.transpose %63, [1, 0] : vector<24x8xf32> -> vector<8x24xf32>
    %65 = vector.extract_strided_slice %39 {offsets = [0, 72], sizes = [24, 8], strides = [1, 1]} : vector<48x96xf32> to vector<24x8xf32>
    %66 = arith.truncf %62 : vector<24x8xf32> to vector<24x8xbf16>
    %67 = arith.truncf %64 : vector<8x24xf32> to vector<8x24xbf16>
    %cst_22 = arith.constant dense<0.000000e+00> : vector<24x24xf32>
    %68 = tpu.matmul %66, %67, %cst_22 {dimension_numbers = #tpu.dot_dimension_numbers<[1], [0], [0], [1], [0, 0, 1, 1], [], []>} : vector<24x8xbf16>, vector<8x24xbf16>, vector<24x24xf32> -> vector<24x24xf32>
    %69 = vector.broadcast %9 : vector<1x24xf32> to vector<24x24xf32>
    %70 = arith.addf %68, %69 : vector<24x24xf32>
    %cst_23 = arith.constant dense<0xFF800000> : vector<24xf32>
    %71 = vector.multi_reduction <maximumf>, %70, %cst_23 [1] : vector<24x24xf32> to vector<24xf32>
    %72 = vector.shape_cast %71 : vector<24xf32> to vector<24x1xf32>
    %73 = vector.broadcast %72 : vector<24x1xf32> to vector<24x24xf32>
    %74 = arith.subf %70, %73 : vector<24x24xf32>
    %75 = math.exp %74 : vector<24x24xf32>
    %cst_24 = arith.constant dense<0.000000e+00> : vector<24xf32>
    %76 = vector.multi_reduction <add>, %75, %cst_24 [1] : vector<24x24xf32> to vector<24xf32>
    %77 = vector.shape_cast %76 : vector<24xf32> to vector<24x1xf32>
    %78 = tpu.reciprocal %77 {approx = true} : vector<24x1xf32> -> vector<24x1xf32>
    %79 = vector.broadcast %78 : vector<24x1xf32> to vector<24x24xf32>
    %80 = arith.mulf %75, %79 : vector<24x24xf32>
    %81 = arith.truncf %80 : vector<24x24xf32> to vector<24x24xbf16>
    %82 = arith.truncf %65 : vector<24x8xf32> to vector<24x8xbf16>
    %cst_25 = arith.constant dense<0.000000e+00> : vector<24x8xf32>
    %83 = tpu.matmul %81, %82, %cst_25 {dimension_numbers = #tpu.dot_dimension_numbers<[1], [0], [0], [1], [0, 0, 1, 1], [], []>} : vector<24x24xbf16>, vector<24x8xbf16>, vector<24x8xf32> -> vector<24x8xf32>
    %84 = vector.extract_strided_slice %39 {offsets = [0, 16], sizes = [24, 8], strides = [1, 1]} : vector<48x96xf32> to vector<24x8xf32>
    %85 = vector.extract_strided_slice %39 {offsets = [0, 48], sizes = [24, 8], strides = [1, 1]} : vector<48x96xf32> to vector<24x8xf32>
    %86 = tpu.transpose %85, [1, 0] : vector<24x8xf32> -> vector<8x24xf32>
    %87 = vector.extract_strided_slice %39 {offsets = [0, 80], sizes = [24, 8], strides = [1, 1]} : vector<48x96xf32> to vector<24x8xf32>
    %88 = arith.truncf %84 : vector<24x8xf32> to vector<24x8xbf16>
    %89 = arith.truncf %86 : vector<8x24xf32> to vector<8x24xbf16>
    %cst_26 = arith.constant dense<0.000000e+00> : vector<24x24xf32>
    %90 = tpu.matmul %88, %89, %cst_26 {dimension_numbers = #tpu.dot_dimension_numbers<[1], [0], [0], [1], [0, 0, 1, 1], [], []>} : vector<24x8xbf16>, vector<8x24xbf16>, vector<24x24xf32> -> vector<24x24xf32>
    %91 = vector.broadcast %9 : vector<1x24xf32> to vector<24x24xf32>
    %92 = arith.addf %90, %91 : vector<24x24xf32>
    %cst_27 = arith.constant dense<0xFF800000> : vector<24xf32>
    %93 = vector.multi_reduction <maximumf>, %92, %cst_27 [1] : vector<24x24xf32> to vector<24xf32>
    %94 = vector.shape_cast %93 : vector<24xf32> to vector<24x1xf32>
    %95 = vector.broadcast %94 : vector<24x1xf32> to vector<24x24xf32>
    %96 = arith.subf %92, %95 : vector<24x24xf32>
    %97 = math.exp %96 : vector<24x24xf32>
    %cst_28 = arith.constant dense<0.000000e+00> : vector<24xf32>
    %98 = vector.multi_reduction <add>, %97, %cst_28 [1] : vector<24x24xf32> to vector<24xf32>
    %99 = vector.shape_cast %98 : vector<24xf32> to vector<24x1xf32>
    %100 = tpu.reciprocal %99 {approx = true} : vector<24x1xf32> -> vector<24x1xf32>
    %101 = vector.broadcast %100 : vector<24x1xf32> to vector<24x24xf32>
    %102 = arith.mulf %97, %101 : vector<24x24xf32>
    %103 = arith.truncf %102 : vector<24x24xf32> to vector<24x24xbf16>
    %104 = arith.truncf %87 : vector<24x8xf32> to vector<24x8xbf16>
    %cst_29 = arith.constant dense<0.000000e+00> : vector<24x8xf32>
    %105 = tpu.matmul %103, %104, %cst_29 {dimension_numbers = #tpu.dot_dimension_numbers<[1], [0], [0], [1], [0, 0, 1, 1], [], []>} : vector<24x24xbf16>, vector<24x8xbf16>, vector<24x8xf32> -> vector<24x8xf32>
    %106 = vector.extract_strided_slice %39 {offsets = [0, 24], sizes = [24, 8], strides = [1, 1]} : vector<48x96xf32> to vector<24x8xf32>
    %107 = vector.extract_strided_slice %39 {offsets = [0, 56], sizes = [24, 8], strides = [1, 1]} : vector<48x96xf32> to vector<24x8xf32>
    %108 = tpu.transpose %107, [1, 0] : vector<24x8xf32> -> vector<8x24xf32>
    %109 = vector.extract_strided_slice %39 {offsets = [0, 88], sizes = [24, 8], strides = [1, 1]} : vector<48x96xf32> to vector<24x8xf32>
    %110 = arith.truncf %106 : vector<24x8xf32> to vector<24x8xbf16>
    %111 = arith.truncf %108 : vector<8x24xf32> to vector<8x24xbf16>
    %cst_30 = arith.constant dense<0.000000e+00> : vector<24x24xf32>
    %112 = tpu.matmul %110, %111, %cst_30 {dimension_numbers = #tpu.dot_dimension_numbers<[1], [0], [0], [1], [0, 0, 1, 1], [], []>} : vector<24x8xbf16>, vector<8x24xbf16>, vector<24x24xf32> -> vector<24x24xf32>
    %113 = vector.broadcast %9 : vector<1x24xf32> to vector<24x24xf32>
    %114 = arith.addf %112, %113 : vector<24x24xf32>
    %cst_31 = arith.constant dense<0xFF800000> : vector<24xf32>
    %115 = vector.multi_reduction <maximumf>, %114, %cst_31 [1] : vector<24x24xf32> to vector<24xf32>
    %116 = vector.shape_cast %115 : vector<24xf32> to vector<24x1xf32>
    %117 = vector.broadcast %116 : vector<24x1xf32> to vector<24x24xf32>
    %118 = arith.subf %114, %117 : vector<24x24xf32>
    %119 = math.exp %118 : vector<24x24xf32>
    %cst_32 = arith.constant dense<0.000000e+00> : vector<24xf32>
    %120 = vector.multi_reduction <add>, %119, %cst_32 [1] : vector<24x24xf32> to vector<24xf32>
    %121 = vector.shape_cast %120 : vector<24xf32> to vector<24x1xf32>
    %122 = tpu.reciprocal %121 {approx = true} : vector<24x1xf32> -> vector<24x1xf32>
    %123 = vector.broadcast %122 : vector<24x1xf32> to vector<24x24xf32>
    %124 = arith.mulf %119, %123 : vector<24x24xf32>
    %125 = arith.truncf %124 : vector<24x24xf32> to vector<24x24xbf16>
    %126 = arith.truncf %109 : vector<24x8xf32> to vector<24x8xbf16>
    %cst_33 = arith.constant dense<0.000000e+00> : vector<24x8xf32>
    %127 = tpu.matmul %125, %126, %cst_33 {dimension_numbers = #tpu.dot_dimension_numbers<[1], [0], [0], [1], [0, 0, 1, 1], [], []>} : vector<24x24xbf16>, vector<24x8xbf16>, vector<24x8xf32> -> vector<24x8xf32>
    %128 = tpu.concatenate %61, %83, %105, %127 in 1 : vector<24x8xf32>, vector<24x8xf32>, vector<24x8xf32>, vector<24x8xf32> -> vector<24x32xf32>
    %129 = vector.extract_strided_slice %39 {offsets = [24, 0], sizes = [24, 8], strides = [1, 1]} : vector<48x96xf32> to vector<24x8xf32>
    %130 = vector.extract_strided_slice %39 {offsets = [24, 32], sizes = [24, 8], strides = [1, 1]} : vector<48x96xf32> to vector<24x8xf32>
    %131 = tpu.transpose %130, [1, 0] : vector<24x8xf32> -> vector<8x24xf32>
    %132 = vector.extract_strided_slice %39 {offsets = [24, 64], sizes = [24, 8], strides = [1, 1]} : vector<48x96xf32> to vector<24x8xf32>
    %133 = arith.truncf %129 : vector<24x8xf32> to vector<24x8xbf16>
    %134 = arith.truncf %131 : vector<8x24xf32> to vector<8x24xbf16>
    %cst_34 = arith.constant dense<0.000000e+00> : vector<24x24xf32>
    %135 = tpu.matmul %133, %134, %cst_34 {dimension_numbers = #tpu.dot_dimension_numbers<[1], [0], [0], [1], [0, 0, 1, 1], [], []>} : vector<24x8xbf16>, vector<8x24xbf16>, vector<24x24xf32> -> vector<24x24xf32>
    %136 = vector.broadcast %9 : vector<1x24xf32> to vector<24x24xf32>
    %137 = arith.addf %135, %136 : vector<24x24xf32>
    %cst_35 = arith.constant dense<0xFF800000> : vector<24xf32>
    %138 = vector.multi_reduction <maximumf>, %137, %cst_35 [1] : vector<24x24xf32> to vector<24xf32>
    %139 = vector.shape_cast %138 : vector<24xf32> to vector<24x1xf32>
    %140 = vector.broadcast %139 : vector<24x1xf32> to vector<24x24xf32>
    %141 = arith.subf %137, %140 : vector<24x24xf32>
    %142 = math.exp %141 : vector<24x24xf32>
    %cst_36 = arith.constant dense<0.000000e+00> : vector<24xf32>
    %143 = vector.multi_reduction <add>, %142, %cst_36 [1] : vector<24x24xf32> to vector<24xf32>
    %144 = vector.shape_cast %143 : vector<24xf32> to vector<24x1xf32>
    %145 = tpu.reciprocal %144 {approx = true} : vector<24x1xf32> -> vector<24x1xf32>
    %146 = vector.broadcast %145 : vector<24x1xf32> to vector<24x24xf32>
    %147 = arith.mulf %142, %146 : vector<24x24xf32>
    %148 = arith.truncf %147 : vector<24x24xf32> to vector<24x24xbf16>
    %149 = arith.truncf %132 : vector<24x8xf32> to vector<24x8xbf16>
    %cst_37 = arith.constant dense<0.000000e+00> : vector<24x8xf32>
    %150 = tpu.matmul %148, %149, %cst_37 {dimension_numbers = #tpu.dot_dimension_numbers<[1], [0], [0], [1], [0, 0, 1, 1], [], []>} : vector<24x24xbf16>, vector<24x8xbf16>, vector<24x8xf32> -> vector<24x8xf32>
    %151 = vector.extract_strided_slice %39 {offsets = [24, 8], sizes = [24, 8], strides = [1, 1]} : vector<48x96xf32> to vector<24x8xf32>
    %152 = vector.extract_strided_slice %39 {offsets = [24, 40], sizes = [24, 8], strides = [1, 1]} : vector<48x96xf32> to vector<24x8xf32>
    %153 = tpu.transpose %152, [1, 0] : vector<24x8xf32> -> vector<8x24xf32>
    %154 = vector.extract_strided_slice %39 {offsets = [24, 72], sizes = [24, 8], strides = [1, 1]} : vector<48x96xf32> to vector<24x8xf32>
    %155 = arith.truncf %151 : vector<24x8xf32> to vector<24x8xbf16>
    %156 = arith.truncf %153 : vector<8x24xf32> to vector<8x24xbf16>
    %cst_38 = arith.constant dense<0.000000e+00> : vector<24x24xf32>
    %157 = tpu.matmul %155, %156, %cst_38 {dimension_numbers = #tpu.dot_dimension_numbers<[1], [0], [0], [1], [0, 0, 1, 1], [], []>} : vector<24x8xbf16>, vector<8x24xbf16>, vector<24x24xf32> -> vector<24x24xf32>
    %158 = vector.broadcast %9 : vector<1x24xf32> to vector<24x24xf32>
    %159 = arith.addf %157, %158 : vector<24x24xf32>
    %cst_39 = arith.constant dense<0xFF800000> : vector<24xf32>
    %160 = vector.multi_reduction <maximumf>, %159, %cst_39 [1] : vector<24x24xf32> to vector<24xf32>
    %161 = vector.shape_cast %160 : vector<24xf32> to vector<24x1xf32>
    %162 = vector.broadcast %161 : vector<24x1xf32> to vector<24x24xf32>
    %163 = arith.subf %159, %162 : vector<24x24xf32>
    %164 = math.exp %163 : vector<24x24xf32>
    %cst_40 = arith.constant dense<0.000000e+00> : vector<24xf32>
    %165 = vector.multi_reduction <add>, %164, %cst_40 [1] : vector<24x24xf32> to vector<24xf32>
    %166 = vector.shape_cast %165 : vector<24xf32> to vector<24x1xf32>
    %167 = tpu.reciprocal %166 {approx = true} : vector<24x1xf32> -> vector<24x1xf32>
    %168 = vector.broadcast %167 : vector<24x1xf32> to vector<24x24xf32>
    %169 = arith.mulf %164, %168 : vector<24x24xf32>
    %170 = arith.truncf %169 : vector<24x24xf32> to vector<24x24xbf16>
    %171 = arith.truncf %154 : vector<24x8xf32> to vector<24x8xbf16>
    %cst_41 = arith.constant dense<0.000000e+00> : vector<24x8xf32>
    %172 = tpu.matmul %170, %171, %cst_41 {dimension_numbers = #tpu.dot_dimension_numbers<[1], [0], [0], [1], [0, 0, 1, 1], [], []>} : vector<24x24xbf16>, vector<24x8xbf16>, vector<24x8xf32> -> vector<24x8xf32>
    %173 = vector.extract_strided_slice %39 {offsets = [24, 16], sizes = [24, 8], strides = [1, 1]} : vector<48x96xf32> to vector<24x8xf32>
    %174 = vector.extract_strided_slice %39 {offsets = [24, 48], sizes = [24, 8], strides = [1, 1]} : vector<48x96xf32> to vector<24x8xf32>
    %175 = tpu.transpose %174, [1, 0] : vector<24x8xf32> -> vector<8x24xf32>
    %176 = vector.extract_strided_slice %39 {offsets = [24, 80], sizes = [24, 8], strides = [1, 1]} : vector<48x96xf32> to vector<24x8xf32>
    %177 = arith.truncf %173 : vector<24x8xf32> to vector<24x8xbf16>
    %178 = arith.truncf %175 : vector<8x24xf32> to vector<8x24xbf16>
    %cst_42 = arith.constant dense<0.000000e+00> : vector<24x24xf32>
    %179 = tpu.matmul %177, %178, %cst_42 {dimension_numbers = #tpu.dot_dimension_numbers<[1], [0], [0], [1], [0, 0, 1, 1], [], []>} : vector<24x8xbf16>, vector<8x24xbf16>, vector<24x24xf32> -> vector<24x24xf32>
    %180 = vector.broadcast %9 : vector<1x24xf32> to vector<24x24xf32>
    %181 = arith.addf %179, %180 : vector<24x24xf32>
    %cst_43 = arith.constant dense<0xFF800000> : vector<24xf32>
    %182 = vector.multi_reduction <maximumf>, %181, %cst_43 [1] : vector<24x24xf32> to vector<24xf32>
    %183 = vector.shape_cast %182 : vector<24xf32> to vector<24x1xf32>
    %184 = vector.broadcast %183 : vector<24x1xf32> to vector<24x24xf32>
    %185 = arith.subf %181, %184 : vector<24x24xf32>
    %186 = math.exp %185 : vector<24x24xf32>
    %cst_44 = arith.constant dense<0.000000e+00> : vector<24xf32>
    %187 = vector.multi_reduction <add>, %186, %cst_44 [1] : vector<24x24xf32> to vector<24xf32>
    %188 = vector.shape_cast %187 : vector<24xf32> to vector<24x1xf32>
    %189 = tpu.reciprocal %188 {approx = true} : vector<24x1xf32> -> vector<24x1xf32>
    %190 = vector.broadcast %189 : vector<24x1xf32> to vector<24x24xf32>
    %191 = arith.mulf %186, %190 : vector<24x24xf32>
    %192 = arith.truncf %191 : vector<24x24xf32> to vector<24x24xbf16>
    %193 = arith.truncf %176 : vector<24x8xf32> to vector<24x8xbf16>
    %cst_45 = arith.constant dense<0.000000e+00> : vector<24x8xf32>
    %194 = tpu.matmul %192, %193, %cst_45 {dimension_numbers = #tpu.dot_dimension_numbers<[1], [0], [0], [1], [0, 0, 1, 1], [], []>} : vector<24x24xbf16>, vector<24x8xbf16>, vector<24x8xf32> -> vector<24x8xf32>
    %195 = vector.extract_strided_slice %39 {offsets = [24, 24], sizes = [24, 8], strides = [1, 1]} : vector<48x96xf32> to vector<24x8xf32>
    %196 = vector.extract_strided_slice %39 {offsets = [24, 56], sizes = [24, 8], strides = [1, 1]} : vector<48x96xf32> to vector<24x8xf32>
    %197 = tpu.transpose %196, [1, 0] : vector<24x8xf32> -> vector<8x24xf32>
    %198 = vector.extract_strided_slice %39 {offsets = [24, 88], sizes = [24, 8], strides = [1, 1]} : vector<48x96xf32> to vector<24x8xf32>
    %199 = arith.truncf %195 : vector<24x8xf32> to vector<24x8xbf16>
    %200 = arith.truncf %197 : vector<8x24xf32> to vector<8x24xbf16>
    %cst_46 = arith.constant dense<0.000000e+00> : vector<24x24xf32>
    %201 = tpu.matmul %199, %200, %cst_46 {dimension_numbers = #tpu.dot_dimension_numbers<[1], [0], [0], [1], [0, 0, 1, 1], [], []>} : vector<24x8xbf16>, vector<8x24xbf16>, vector<24x24xf32> -> vector<24x24xf32>
    %202 = vector.broadcast %9 : vector<1x24xf32> to vector<24x24xf32>
    %203 = arith.addf %201, %202 : vector<24x24xf32>
    %cst_47 = arith.constant dense<0xFF800000> : vector<24xf32>
    %204 = vector.multi_reduction <maximumf>, %203, %cst_47 [1] : vector<24x24xf32> to vector<24xf32>
    %205 = vector.shape_cast %204 : vector<24xf32> to vector<24x1xf32>
    %206 = vector.broadcast %205 : vector<24x1xf32> to vector<24x24xf32>
    %207 = arith.subf %203, %206 : vector<24x24xf32>
    %208 = math.exp %207 : vector<24x24xf32>
    %cst_48 = arith.constant dense<0.000000e+00> : vector<24xf32>
    %209 = vector.multi_reduction <add>, %208, %cst_48 [1] : vector<24x24xf32> to vector<24xf32>
    %210 = vector.shape_cast %209 : vector<24xf32> to vector<24x1xf32>
    %211 = tpu.reciprocal %210 {approx = true} : vector<24x1xf32> -> vector<24x1xf32>
    %212 = vector.broadcast %211 : vector<24x1xf32> to vector<24x24xf32>
    %213 = arith.mulf %208, %212 : vector<24x24xf32>
    %214 = arith.truncf %213 : vector<24x24xf32> to vector<24x24xbf16>
    %215 = arith.truncf %198 : vector<24x8xf32> to vector<24x8xbf16>
    %cst_49 = arith.constant dense<0.000000e+00> : vector<24x8xf32>
    %216 = tpu.matmul %214, %215, %cst_49 {dimension_numbers = #tpu.dot_dimension_numbers<[1], [0], [0], [1], [0, 0, 1, 1], [], []>} : vector<24x24xbf16>, vector<24x8xbf16>, vector<24x8xf32> -> vector<24x8xf32>
    %217 = tpu.concatenate %150, %172, %194, %216 in 1 : vector<24x8xf32>, vector<24x8xf32>, vector<24x8xf32>, vector<24x8xf32> -> vector<24x32xf32>
    %218 = tpu.concatenate %128, %217 in 0 : vector<24x32xf32>, vector<24x32xf32> -> vector<48x32xf32>
    %219 = arith.truncf %218 : vector<48x32xf32> to vector<48x32xbf16>
    %c0_50 = arith.constant 0 : index
    %c0_51 = arith.constant 0 : index
    %c0_52 = arith.constant 0 : index
    %220 = vector.load %arg8[%c0_50, %c0_51, %c0_52] : memref<1x32x32xbf16, #tpu.memory_space<vmem>>, vector<1x32x32xbf16>
    %221 = vector.shape_cast %220 : vector<1x32x32xbf16> to vector<32x32xbf16>
    %cst_53 = arith.constant dense<0.000000e+00> : vector<48x32xf32>
    %222 = tpu.matmul %219, %221, %cst_53 {dimension_numbers = #tpu.dot_dimension_numbers<[1], [0], [0], [1], [0, 0, 1, 1], [], []>} : vector<48x32xbf16>, vector<32x32xbf16>, vector<48x32xf32> -> vector<48x32xf32>
    %223 = arith.addf %3, %222 : vector<48x32xf32>
    %c0_54 = arith.constant 0 : index
    %c0_55 = arith.constant 0 : index
    %c0_56 = arith.constant 0 : index
    %224 = vector.load %arg9[%c0_54, %c0_55, %c0_56] : memref<1x1x32xf32, #tpu.memory_space<vmem>>, vector<1x1x32xf32>
    %225 = vector.shape_cast %224 : vector<1x1x32xf32> to vector<1x32xf32>
    %c0_57 = arith.constant 0 : index
    %c0_58 = arith.constant 0 : index
    %c0_59 = arith.constant 0 : index
    %226 = vector.load %arg10[%c0_57, %c0_58, %c0_59] : memref<1x1x32xf32, #tpu.memory_space<vmem>>, vector<1x1x32xf32>
    %227 = vector.shape_cast %226 : vector<1x1x32xf32> to vector<1x32xf32>
    %cst_60 = arith.constant dense<0.000000e+00> : vector<48xf32>
    %228 = vector.multi_reduction <add>, %223, %cst_60 [1] : vector<48x32xf32> to vector<48xf32>
    %229 = vector.shape_cast %228 : vector<48xf32> to vector<48x1xf32>
    %cst_61 = arith.constant 3.200000e+01 : f32
    %230 = vector.broadcast %cst_61 : f32 to vector<48x1xf32>
    %231 = arith.divf %229, %230 : vector<48x1xf32>
    %232 = vector.broadcast %231 : vector<48x1xf32> to vector<48x32xf32>
    %233 = arith.subf %223, %232 : vector<48x32xf32>
    %234 = arith.mulf %233, %233 : vector<48x32xf32>
    %cst_62 = arith.constant dense<0.000000e+00> : vector<48xf32>
    %235 = vector.multi_reduction <add>, %234, %cst_62 [1] : vector<48x32xf32> to vector<48xf32>
    %236 = vector.shape_cast %235 : vector<48xf32> to vector<48x1xf32>
    %cst_63 = arith.constant 3.200000e+01 : f32
    %237 = vector.broadcast %cst_63 : f32 to vector<48x1xf32>
    %238 = arith.divf %236, %237 : vector<48x1xf32>
    %239 = vector.broadcast %231 : vector<48x1xf32> to vector<48x32xf32>
    %240 = arith.subf %223, %239 : vector<48x32xf32>
    %cst_64 = arith.constant 9.99999974E-6 : f32
    %241 = vector.broadcast %cst_64 : f32 to vector<48x1xf32>
    %242 = arith.addf %238, %241 : vector<48x1xf32>
    %243 = math.rsqrt %242 : vector<48x1xf32>
    %244 = vector.broadcast %243 : vector<48x1xf32> to vector<48x32xf32>
    %245 = arith.mulf %240, %244 : vector<48x32xf32>
    %246 = vector.broadcast %225 : vector<1x32xf32> to vector<48x32xf32>
    %247 = arith.mulf %245, %246 : vector<48x32xf32>
    %248 = vector.broadcast %227 : vector<1x32xf32> to vector<48x32xf32>
    %249 = arith.addf %247, %248 : vector<48x32xf32>
    %250 = arith.truncf %249 : vector<48x32xf32> to vector<48x32xbf16>
    %c0_65 = arith.constant 0 : index
    %c0_66 = arith.constant 0 : index
    %c0_67 = arith.constant 0 : index
    %251 = vector.load %arg11[%c0_65, %c0_66, %c0_67] : memref<1x32x64xbf16, #tpu.memory_space<vmem>>, vector<1x32x64xbf16>
    %252 = vector.shape_cast %251 : vector<1x32x64xbf16> to vector<32x64xbf16>
    %cst_68 = arith.constant dense<0.000000e+00> : vector<48x64xf32>
    %253 = tpu.matmul %250, %252, %cst_68 {dimension_numbers = #tpu.dot_dimension_numbers<[1], [0], [0], [1], [0, 0, 1, 1], [], []>} : vector<48x32xbf16>, vector<32x64xbf16>, vector<48x64xf32> -> vector<48x64xf32>
    %c0_69 = arith.constant 0 : index
    %c0_70 = arith.constant 0 : index
    %c0_71 = arith.constant 0 : index
    %254 = vector.load %arg12[%c0_69, %c0_70, %c0_71] : memref<1x1x64xf32, #tpu.memory_space<vmem>>, vector<1x1x64xf32>
    %255 = vector.shape_cast %254 : vector<1x1x64xf32> to vector<1x64xf32>
    %256 = vector.broadcast %255 : vector<1x64xf32> to vector<48x64xf32>
    %257 = arith.addf %253, %256 : vector<48x64xf32>
    %cst_72 = arith.constant 5.000000e-01 : f32
    %258 = vector.broadcast %cst_72 : f32 to vector<48x64xf32>
    %259 = arith.mulf %258, %257 : vector<48x64xf32>
    %cst_73 = arith.constant 4.471500e-02 : f32
    %260 = vector.broadcast %cst_73 : f32 to vector<48x64xf32>
    %261 = arith.mulf %260, %257 : vector<48x64xf32>
    %262 = arith.mulf %261, %257 : vector<48x64xf32>
    %263 = arith.mulf %262, %257 : vector<48x64xf32>
    %264 = arith.addf %257, %263 : vector<48x64xf32>
    %cst_74 = arith.constant 0.797884583 : f32
    %265 = vector.broadcast %cst_74 : f32 to vector<48x64xf32>
    %266 = arith.mulf %265, %264 : vector<48x64xf32>
    %267 = math.tanh %266 : vector<48x64xf32>
    %cst_75 = arith.constant 1.000000e+00 : f32
    %268 = vector.broadcast %cst_75 : f32 to vector<48x64xf32>
    %269 = arith.addf %268, %267 : vector<48x64xf32>
    %270 = arith.mulf %259, %269 : vector<48x64xf32>
    %271 = arith.truncf %270 : vector<48x64xf32> to vector<48x64xbf16>
    %c0_76 = arith.constant 0 : index
    %c0_77 = arith.constant 0 : index
    %c0_78 = arith.constant 0 : index
    %272 = vector.load %arg13[%c0_76, %c0_77, %c0_78] : memref<1x64x32xbf16, #tpu.memory_space<vmem>>, vector<1x64x32xbf16>
    %273 = vector.shape_cast %272 : vector<1x64x32xbf16> to vector<64x32xbf16>
    %cst_79 = arith.constant dense<0.000000e+00> : vector<48x32xf32>
    %274 = tpu.matmul %271, %273, %cst_79 {dimension_numbers = #tpu.dot_dimension_numbers<[1], [0], [0], [1], [0, 0, 1, 1], [], []>} : vector<48x64xbf16>, vector<64x32xbf16>, vector<48x32xf32> -> vector<48x32xf32>
    %275 = arith.addf %223, %274 : vector<48x32xf32>
    %c0_80 = arith.constant 0 : index
    %c0_81 = arith.constant 0 : index
    %c0_82 = arith.constant 0 : index
    %276 = vector.load %arg14[%c0_80, %c0_81, %c0_82] : memref<1x1x32xf32, #tpu.memory_space<vmem>>, vector<1x1x32xf32>
    %277 = vector.shape_cast %276 : vector<1x1x32xf32> to vector<1x32xf32>
    %278 = vector.broadcast %277 : vector<1x32xf32> to vector<48x32xf32>
    %279 = arith.addf %275, %278 : vector<48x32xf32>
    %c0_83 = arith.constant 0 : index
    %c0_84 = arith.constant 0 : index
    %280 = vector.load %arg20[%c0_83, %c0_84] : memref<48x32xf32, #tpu.memory_space<vmem>>, vector<48x32xf32>
    tpu.vector_store %arg20[%c0_83, %c0_84], %279 {strides = array<i32>} : memref<48x32xf32, #tpu.memory_space<vmem>>, vector<48x32xf32>,
    %c1_i32 = arith.constant 1 : i32
    %281 = arith.cmpi eq, %arg1, %c1_i32 : i32
    %282 = arith.extui %281 : i1 to i32
    %c0_i32_85 = arith.constant 0 : i32
    %283 = arith.cmpi ne, %282, %c0_i32_85 : i32
    scf.if %283 {
      %284 = vector.extract_strided_slice %279 {offsets = [0, 0], sizes = [1, 32], strides = [1, 1]} : vector<48x32xf32> to vector<1x32xf32>
      %285 = vector.extract_strided_slice %279 {offsets = [24, 0], sizes = [1, 32], strides = [1, 1]} : vector<48x32xf32> to vector<1x32xf32>
      %286 = tpu.concatenate %284, %285 in 0 : vector<1x32xf32>, vector<1x32xf32> -> vector<2x32xf32>
      %c0_86 = arith.constant 0 : index
      %c0_87 = arith.constant 0 : index
      %287 = vector.load %arg15[%c0_86, %c0_87] : memref<1x32xf32, #tpu.memory_space<vmem>>, vector<1x32xf32>
      %c0_88 = arith.constant 0 : index
      %c0_89 = arith.constant 0 : index
      %288 = vector.load %arg16[%c0_88, %c0_89] : memref<1x32xf32, #tpu.memory_space<vmem>>, vector<1x32xf32>
      %cst_90 = arith.constant dense<0.000000e+00> : vector<2xf32>
      %289 = vector.multi_reduction <add>, %286, %cst_90 [1] : vector<2x32xf32> to vector<2xf32>
      %290 = vector.shape_cast %289 : vector<2xf32> to vector<2x1xf32>
      %cst_91 = arith.constant 3.200000e+01 : f32
      %291 = vector.broadcast %cst_91 : f32 to vector<2x1xf32>
      %292 = arith.divf %290, %291 : vector<2x1xf32>
      %293 = vector.broadcast %292 : vector<2x1xf32> to vector<2x32xf32>
      %294 = arith.subf %286, %293 : vector<2x32xf32>
      %295 = arith.mulf %294, %294 : vector<2x32xf32>
      %cst_92 = arith.constant dense<0.000000e+00> : vector<2xf32>
      %296 = vector.multi_reduction <add>, %295, %cst_92 [1] : vector<2x32xf32> to vector<2xf32>
      %297 = vector.shape_cast %296 : vector<2xf32> to vector<2x1xf32>
      %cst_93 = arith.constant 3.200000e+01 : f32
      %298 = vector.broadcast %cst_93 : f32 to vector<2x1xf32>
      %299 = arith.divf %297, %298 : vector<2x1xf32>
      %300 = vector.broadcast %292 : vector<2x1xf32> to vector<2x32xf32>
      %301 = arith.subf %286, %300 : vector<2x32xf32>
      %cst_94 = arith.constant 9.99999974E-6 : f32
      %302 = vector.broadcast %cst_94 : f32 to vector<2x1xf32>
      %303 = arith.addf %299, %302 : vector<2x1xf32>
      %304 = math.rsqrt %303 : vector<2x1xf32>
      %305 = vector.broadcast %304 : vector<2x1xf32> to vector<2x32xf32>
      %306 = arith.mulf %301, %305 : vector<2x32xf32>
      %307 = vector.broadcast %287 : vector<1x32xf32> to vector<2x32xf32>
      %308 = arith.mulf %306, %307 : vector<2x32xf32>
      %309 = vector.broadcast %288 : vector<1x32xf32> to vector<2x32xf32>
      %310 = arith.addf %308, %309 : vector<2x32xf32>
      %c0_95 = arith.constant 0 : index
      %c0_96 = arith.constant 0 : index
      %311 = vector.load %arg17[%c0_95, %c0_96] : memref<32x10xf32, #tpu.memory_space<vmem>>, vector<32x10xf32>
      %cst_97 = arith.constant dense<0.000000e+00> : vector<2x10xf32>
      %312 = tpu.matmul %310, %311, %cst_97 {dimension_numbers = #tpu.dot_dimension_numbers<[1], [0], [0], [1], [0, 0, 1, 1], [], []>} : vector<2x32xf32>, vector<32x10xf32>, vector<2x10xf32> -> vector<2x10xf32>
      %c0_98 = arith.constant 0 : index
      %c0_99 = arith.constant 0 : index
      %313 = vector.load %arg18[%c0_98, %c0_99] : memref<1x10xf32, #tpu.memory_space<vmem>>, vector<1x10xf32>
      %314 = vector.broadcast %313 : vector<1x10xf32> to vector<2x10xf32>
      %315 = arith.addf %312, %314 : vector<2x10xf32>
      %cst_100 = arith.constant dense<0xFF800000> : vector<2xf32>
      %316 = vector.multi_reduction <maximumf>, %315, %cst_100 [1] : vector<2x10xf32> to vector<2xf32>
      %317 = vector.shape_cast %316 : vector<2xf32> to vector<2x1xf32>
      %318 = vector.broadcast %317 : vector<2x1xf32> to vector<2x10xf32>
      %319 = arith.subf %315, %318 : vector<2x10xf32>
      %320 = math.exp %319 : vector<2x10xf32>
      %cst_101 = arith.constant dense<0.000000e+00> : vector<2xf32>
      %321 = vector.multi_reduction <add>, %320, %cst_101 [1] : vector<2x10xf32> to vector<2xf32>
      %322 = vector.shape_cast %321 : vector<2xf32> to vector<2x1xf32>
      %323 = vector.broadcast %322 : vector<2x1xf32> to vector<2x10xf32>
      %324 = arith.divf %320, %323 : vector<2x10xf32>
      %c0_102 = arith.constant 0 : index
      %c0_103 = arith.constant 0 : index
      %c0_104 = arith.constant 0 : index
      %325 = vector.load %arg19[%c0_102, %c0_103, %c0_104] : memref<1x2x10xf32, #tpu.memory_space<vmem>>, vector<1x2x10xf32>
      %326 = vector.shape_cast %325 : vector<1x2x10xf32> to vector<2x10xf32>
      %327 = vector.shape_cast %324 : vector<2x10xf32> to vector<1x2x10xf32>
      tpu.vector_store %arg19[%c0_102, %c0_103, %c0_104], %327 {strides = array<i32>} : memref<1x2x10xf32, #tpu.memory_space<vmem>>, vector<1x2x10xf32>,
    } else {
    }
    return
  }
  func.func @transform_0(%arg0: i32, %arg1: i32) -> (i32, i32, i32) {
    %c0_i32 = arith.constant 0 : i32
    %c0_i32_0 = arith.constant 0 : i32
    %c0_i32_1 = arith.constant 0 : i32
    return %arg0, %c0_i32, %c0_i32_0 : i32, i32, i32
  }
  func.func @transform_1(%arg0: i32, %arg1: i32) -> (i32, i32) {
    %c0_i32 = arith.constant 0 : i32
    %c0_i32_0 = arith.constant 0 : i32
    %c0_i32_1 = arith.constant 0 : i32
    return %c0_i32, %c0_i32_0 : i32, i32
  }
  func.func @transform_2(%arg0: i32, %arg1: i32) -> (i32, i32) {
    %c0_i32 = arith.constant 0 : i32
    %c0_i32_0 = arith.constant 0 : i32
    %c0_i32_1 = arith.constant 0 : i32
    return %c0_i32, %c0_i32_0 : i32, i32
  }
  func.func @transform_3(%arg0: i32, %arg1: i32) -> (i32, i32, i32) {
    %c0_i32 = arith.constant 0 : i32
    %c0_i32_0 = arith.constant 0 : i32
    %c0_i32_1 = arith.constant 0 : i32
    return %arg1, %c0_i32, %c0_i32_0 : i32, i32, i32
  }
  func.func @transform_4(%arg0: i32, %arg1: i32) -> (i32, i32, i32) {
    %c0_i32 = arith.constant 0 : i32
    %c0_i32_0 = arith.constant 0 : i32
    %c0_i32_1 = arith.constant 0 : i32
    return %arg1, %c0_i32, %c0_i32_0 : i32, i32, i32
  }
  func.func @transform_5(%arg0: i32, %arg1: i32) -> (i32, i32, i32) {
    %c0_i32 = arith.constant 0 : i32
    %c0_i32_0 = arith.constant 0 : i32
    %c0_i32_1 = arith.constant 0 : i32
    return %arg1, %c0_i32, %c0_i32_0 : i32, i32, i32
  }
  func.func @transform_6(%arg0: i32, %arg1: i32) -> (i32, i32, i32) {
    %c0_i32 = arith.constant 0 : i32
    %c0_i32_0 = arith.constant 0 : i32
    %c0_i32_1 = arith.constant 0 : i32
    return %arg1, %c0_i32, %c0_i32_0 : i32, i32, i32
  }
  func.func @transform_7(%arg0: i32, %arg1: i32) -> (i32, i32, i32) {
    %c0_i32 = arith.constant 0 : i32
    %c0_i32_0 = arith.constant 0 : i32
    %c0_i32_1 = arith.constant 0 : i32
    return %arg1, %c0_i32, %c0_i32_0 : i32, i32, i32
  }
  func.func @transform_8(%arg0: i32, %arg1: i32) -> (i32, i32, i32) {
    %c0_i32 = arith.constant 0 : i32
    %c0_i32_0 = arith.constant 0 : i32
    %c0_i32_1 = arith.constant 0 : i32
    return %arg1, %c0_i32, %c0_i32_0 : i32, i32, i32
  }
  func.func @transform_9(%arg0: i32, %arg1: i32) -> (i32, i32, i32) {
    %c0_i32 = arith.constant 0 : i32
    %c0_i32_0 = arith.constant 0 : i32
    %c0_i32_1 = arith.constant 0 : i32
    return %arg1, %c0_i32, %c0_i32_0 : i32, i32, i32
  }
  func.func @transform_10(%arg0: i32, %arg1: i32) -> (i32, i32, i32) {
    %c0_i32 = arith.constant 0 : i32
    %c0_i32_0 = arith.constant 0 : i32
    %c0_i32_1 = arith.constant 0 : i32
    return %arg1, %c0_i32, %c0_i32_0 : i32, i32, i32
  }
  func.func @transform_11(%arg0: i32, %arg1: i32) -> (i32, i32, i32) {
    %c0_i32 = arith.constant 0 : i32
    %c0_i32_0 = arith.constant 0 : i32
    %c0_i32_1 = arith.constant 0 : i32
    return %arg1, %c0_i32, %c0_i32_0 : i32, i32, i32
  }
  func.func @transform_12(%arg0: i32, %arg1: i32) -> (i32, i32, i32) {
    %c0_i32 = arith.constant 0 : i32
    %c0_i32_0 = arith.constant 0 : i32
    %c0_i32_1 = arith.constant 0 : i32
    return %arg1, %c0_i32, %c0_i32_0 : i32, i32, i32
  }
  func.func @transform_13(%arg0: i32, %arg1: i32) -> (i32, i32) {
    %c0_i32 = arith.constant 0 : i32
    %c0_i32_0 = arith.constant 0 : i32
    %c0_i32_1 = arith.constant 0 : i32
    return %c0_i32, %c0_i32_0 : i32, i32
  }
  func.func @transform_14(%arg0: i32, %arg1: i32) -> (i32, i32) {
    %c0_i32 = arith.constant 0 : i32
    %c0_i32_0 = arith.constant 0 : i32
    %c0_i32_1 = arith.constant 0 : i32
    return %c0_i32, %c0_i32_0 : i32, i32
  }
  func.func @transform_15(%arg0: i32, %arg1: i32) -> (i32, i32) {
    %c0_i32 = arith.constant 0 : i32
    %c0_i32_0 = arith.constant 0 : i32
    %c0_i32_1 = arith.constant 0 : i32
    return %c0_i32, %c0_i32_0 : i32, i32
  }
  func.func @transform_16(%arg0: i32, %arg1: i32) -> (i32, i32) {
    %c0_i32 = arith.constant 0 : i32
    %c0_i32_0 = arith.constant 0 : i32
    %c0_i32_1 = arith.constant 0 : i32
    return %c0_i32, %c0_i32_0 : i32, i32
  }
  func.func @transform_17(%arg0: i32, %arg1: i32) -> (i32, i32, i32) {
    %c0_i32 = arith.constant 0 : i32
    %c0_i32_0 = arith.constant 0 : i32
    %c0_i32_1 = arith.constant 0 : i32
    return %arg0, %c0_i32, %c0_i32_0 : i32, i32, i32
  }
}

</mosaic_0001>

<llo_original>
// kernel: vit_forward.1
$region0: #{vit_forward.1}
  #allocation0 [shape = 'u32[]', space=smem, size = 0x4, offset = 0x4, fixed_abs, tag = 'smem constant byte address 0x4 - core index']
  #allocation1 [shape = 'u32[144,128]{1,0:T(1,128)}', space=vmem, size = 0x12000, scoped, tag = 'internal scratch']
  #allocation2 [shape = 'f32[48,32]{1,0:T(8,128)}', space=vmem, size = 0x6000, scoped, tag = 'scratch operand']
  %s0 = inlined_call_operand.vmem [shape: bf16[2,48,64], index: 0, kind: input, shape index: {}]
  %s1 = inlined_call_operand.vmem [shape: bf16[64,32], index: 1, kind: input, shape index: {}]
  %s2 = inlined_call_operand.vmem [shape: f32[48,32], index: 2, kind: input, shape index: {}]
  %s3 = inlined_call_operand.vmem [shape: f32[2,1,32], index: 3, kind: input, shape index: {}]
  %s4 = inlined_call_operand.vmem [shape: f32[2,1,32], index: 4, kind: input, shape index: {}]
  %s5 = inlined_call_operand.vmem [shape: bf16[2,32,96], index: 5, kind: input, shape index: {}]
  %s6 = inlined_call_operand.vmem [shape: bf16[2,32,32], index: 6, kind: input, shape index: {}]
  %s7 = inlined_call_operand.vmem [shape: f32[2,1,32], index: 7, kind: input, shape index: {}]
  %s8 = inlined_call_operand.vmem [shape: f32[2,1,32], index: 8, kind: input, shape index: {}]
  %s9 = inlined_call_operand.vmem [shape: bf16[2,32,64], index: 9, kind: input, shape index: {}]
  %s10 = inlined_call_operand.vmem [shape: f32[2,1,64], index: 10, kind: input, shape index: {}]
  %s11 = inlined_call_operand.vmem [shape: bf16[2,64,32], index: 11, kind: input, shape index: {}]
  %s12 = inlined_call_operand.vmem [shape: f32[2,1,32], index: 12, kind: input, shape index: {}]
  %s13 = inlined_call_operand.vmem [shape: f32[1,32], index: 13, kind: input, shape index: {}]
  %s14 = inlined_call_operand.vmem [shape: f32[1,32], index: 14, kind: input, shape index: {}]
  %s15 = inlined_call_operand.vmem [shape: f32[32,10], index: 15, kind: input, shape index: {}]
  %s16 = inlined_call_operand.vmem [shape: f32[1,10], index: 16, kind: input, shape index: {}]
  %s17 = inlined_call_operand.hbm [shape: f32[2,2,10], index: 17, kind: output, shape index: {}]
  %s18 = sld [smem:[#allocation0]]
  $region109: #{vit_forward.1} parent=0
    _
  %s20 = ssub.s32 1, %s18
  %s21 = scalar_select 0, %s20, %s18
  $region1: #{vit_forward.1} parent=0
    #allocation3 [shape = 'u8[2048]{0}', space=vmem, size = 0x800, scoped, tag = 'output window, operand 0']
    #allocation4 [shape = 's32[2]{0}', space=sflag, size = 0x8, scoped, tag = 'scoped memory for vit_forward.1']
    %22 = vsyncpa [#allocation4], 0
    %s23 = scalar_lea.sflag [#allocation4], 1
    %24 = vsyncpa %s23, 0
    loop: start=0, step=1, limit=6
    $region2: #{vit_forward.1} parent=1 // loop_pre_header
      _
    $region3: #{vit_forward.1} parent=1 // loop_header
      %s26 = sphi 0, %s30
      %p27 = scmp.ge.s32.totalorder %s26, 6
      %s33 = sphi 0, %s45
      %s34 = sphi 0, %s41
      %s35 = sphi 0, %s33
      %s36 = sphi 0, %s34
      %s37 = sphi 0, %s35
      %s38 = sphi 0, %s36
      %s48 = sphi 0, %s50
      %s51 = sphi 0, %s48
      %s52 = sphi 0, %s51
      %s68 = sphi 0, %s52
      %s72 = sphi 0, %s72
      %s74 = sphi 0, %s72
      %s75 = sphi 0, %s74
      %s89 = sphi 0, %s75
      %s93 = sphi 0, %s93
      %s95 = sphi 0, %s93
      %s96 = sphi 0, %s95
      %s110 = sphi 0, %s96
      %s116 = sphi 0, %s118
      %s119 = sphi 0, %s116
      %s120 = sphi 0, %s119
      %s136 = sphi 0, %s120
      %s142 = sphi 0, %s144
      %s145 = sphi 0, %s142
      %s146 = sphi 0, %s145
      %s162 = sphi 0, %s146
      %s168 = sphi 0, %s170
      %s171 = sphi 0, %s168
      %s172 = sphi 0, %s171
      %s188 = sphi 0, %s172
      %s194 = sphi 0, %s196
      %s197 = sphi 0, %s194
      %s198 = sphi 0, %s197
      %s214 = sphi 0, %s198
      %s220 = sphi 0, %s222
      %s223 = sphi 0, %s220
      %s224 = sphi 0, %s223
      %s240 = sphi 0, %s224
      %s246 = sphi 0, %s248
      %s249 = sphi 0, %s246
      %s250 = sphi 0, %s249
      %s266 = sphi 0, %s250
      %s272 = sphi 0, %s274
      %s275 = sphi 0, %s272
      %s276 = sphi 0, %s275
      %s292 = sphi 0, %s276
      %s298 = sphi 0, %s300
      %s301 = sphi 0, %s298
      %s302 = sphi 0, %s301
      %s318 = sphi 0, %s302
      %s324 = sphi 0, %s326
      %s327 = sphi 0, %s324
      %s328 = sphi 0, %s327
      %s344 = sphi 0, %s328
      %s350 = sphi 0, %s352
      %s353 = sphi 0, %s350
      %s354 = sphi 0, %s353
      %s370 = sphi 0, %s354
      %s374 = sphi 0, %s374
      %s376 = sphi 0, %s374
      %s377 = sphi 0, %s376
      %s391 = sphi 0, %s377
      %s395 = sphi 0, %s395
      %s397 = sphi 0, %s395
      %s398 = sphi 0, %s397
      %s412 = sphi 0, %s398
      %s416 = sphi 0, %s416
      %s418 = sphi 0, %s416
      %s419 = sphi 0, %s418
      %s433 = sphi 0, %s419
      %s437 = sphi 0, %s437
      %s439 = sphi 0, %s437
      %s440 = sphi 0, %s439
      %s454 = sphi 0, %s440
      %s460 = sphi 0, %s462
      %s463 = sphi 0, %s460
      %s464 = sphi 0, %s463
      %s480 = sphi 0, %s464
    $region4: #{vit_forward.1} parent=1 // loop_header_branch
      %29 = sbr.rel (%p27) target = $region8
    $region5: #{vit_forward.1} parent=1 // loop_body
      %s31 = ssub.s32 %s26, 1
      %s32 = ssub.s32 %s26, 2
      %s39 = sadd.s32 1, %s34
      %p40 = scmp.ge.s32.totalorder %s39, 2
      %s41 = scalar_select %p40, 0, %s39
      %s42 = sadd.s32 1, %s33
      %s43 = scalar_select %p40, %s42, %s33
      %p44 = scmp.ge.s32.totalorder %s43, 2
      %s45 = scalar_select %p44, 0, %s43
      %s46 = ssub.s32 %s33, %s45
      %p47 = scmp.eq.s32.totalorder %s46, 0
      %s49 = sadd.s32 %s48, 1
      %s50 = scalar_select %p47, %s48, %s49
      %p53 = pneg %p47
      %p54 = scmp.eq.s32.totalorder %s26, 3
      %p55 = por %p53, %p54
      %p56 = scmp.ne.s32.totalorder %s48, %s51
      %p57 = scmp.eq.s32.totalorder %s26, 0
      %p58 = por %p56, %p57
      %p59 = scmp.ne.s32.totalorder %s48, %s51
      %p60 = scmp.eq.s32.totalorder %s31, 3
      %p61 = por %p59, %p60
      %p62 = scmp.ne.s32.totalorder %s51, %s52
      %p63 = scmp.eq.s32.totalorder %s31, 0
      %p64 = por %p62, %p63
      %p65 = scmp.ne.s32.totalorder %s51, %s52
      %p66 = scmp.eq.s32.totalorder %s32, 3
      %p67 = por %p65, %p66
      %p69 = scmp.ne.s32.totalorder %s52, %s68
      %p70 = scmp.eq.s32.totalorder %s32, 0
      %p71 = por %p69, %p70
      %s73 = sadd.s32 %s72, 1
      %p76 = scmp.eq.s32.totalorder %s26, 3
      %p77 = scmp.ne.s32.totalorder %s72, %s74
      %p78 = scmp.eq.s32.totalorder %s26, 0
      %p79 = por %p77, %p78
      %p80 = scmp.ne.s32.totalorder %s72, %s74
      %p81 = scmp.eq.s32.totalorder %s31, 3
      %p82 = por %p80, %p81
      %p83 = scmp.ne.s32.totalorder %s74, %s75
      %p84 = scmp.eq.s32.totalorder %s31, 0
      %p85 = por %p83, %p84
      %p86 = scmp.ne.s32.totalorder %s74, %s75
      %p87 = scmp.eq.s32.totalorder %s32, 3
      %p88 = por %p86, %p87
      %p90 = scmp.ne.s32.totalorder %s75, %s89
      %p91 = scmp.eq.s32.totalorder %s32, 0
      %p92 = por %p90, %p91
      %s94 = sadd.s32 %s93, 1
      %p97 = scmp.eq.s32.totalorder %s26, 3
      %p98 = scmp.ne.s32.totalorder %s93, %s95
      %p99 = scmp.eq.s32.totalorder %s26, 0
      %p100 = por %p98, %p99
      %p101 = scmp.ne.s32.totalorder %s93, %s95
      %p102 = scmp.eq.s32.totalorder %s31, 3
      %p103 = por %p101, %p102
      %p104 = scmp.ne.s32.totalorder %s95, %s96
      %p105 = scmp.eq.s32.totalorder %s31, 0
      %p106 = por %p104, %p105
      %p107 = scmp.ne.s32.totalorder %s95, %s96
      %p108 = scmp.eq.s32.totalorder %s32, 3
      %p109 = por %p107, %p108
      %p111 = scmp.ne.s32.totalorder %s96, %s110
      %p112 = scmp.eq.s32.totalorder %s32, 0
      %p113 = por %p111, %p112
      %s114 = ssub.s32 %s34, %s41
      %p115 = scmp.eq.s32.totalorder %s114, 0
      %s117 = sadd.s32 %s116, 1
      %s118 = scalar_select %p115, %s116, %s117
      %p121 = pneg %p115
      %p122 = scmp.eq.s32.totalorder %s26, 3
      %p123 = por %p121, %p122
      %p124 = scmp.ne.s32.totalorder %s116, %s119
      %p125 = scmp.eq.s32.totalorder %s26, 0
      %p126 = por %p124, %p125
      %p127 = scmp.ne.s32.totalorder %s116, %s119
      %p128 = scmp.eq.s32.totalorder %s31, 3
      %p129 = por %p127, %p128
      %p130 = scmp.ne.s32.totalorder %s119, %s120
      %p131 = scmp.eq.s32.totalorder %s31, 0
      %p132 = por %p130, %p131
      %p133 = scmp.ne.s32.totalorder %s119, %s120
      %p134 = scmp.eq.s32.totalorder %s32, 3
      %p135 = por %p133, %p134
      %p137 = scmp.ne.s32.totalorder %s120, %s136
      %p138 = scmp.eq.s32.totalorder %s32, 0
      %p139 = por %p137, %p138
      %s140 = ssub.s32 %s34, %s41
      %p141 = scmp.eq.s32.totalorder %s140, 0
      %s143 = sadd.s32 %s142, 1
      %s144 = scalar_select %p141, %s142, %s143
      %p147 = pneg %p141
      %p148 = scmp.eq.s32.totalorder %s26, 3
      %p149 = por %p147, %p148
      %p150 = scmp.ne.s32.totalorder %s142, %s145
      %p151 = scmp.eq.s32.totalorder %s26, 0
      %p152 = por %p150, %p151
      %p153 = scmp.ne.s32.totalorder %s142, %s145
      %p154 = scmp.eq.s32.totalorder %s31, 3
      %p155 = por %p153, %p154
      %p156 = scmp.ne.s32.totalorder %s145, %s146
      %p157 = scmp.eq.s32.totalorder %s31, 0
      %p158 = por %p156, %p157
      %p159 = scmp.ne.s32.totalorder %s145, %s146
      %p160 = scmp.eq.s32.totalorder %s32, 3
      %p161 = por %p159, %p160
      %p163 = scmp.ne.s32.totalorder %s146, %s162
      %p164 = scmp.eq.s32.totalorder %s32, 0
      %p165 = por %p163, %p164
      %s166 = ssub.s32 %s34, %s41
      %p167 = scmp.eq.s32.totalorder %s166, 0
      %s169 = sadd.s32 %s168, 1
      %s170 = scalar_select %p167, %s168, %s169
      %p173 = pneg %p167
      %p174 = scmp.eq.s32.totalorder %s26, 3
      %p175 = por %p173, %p174
      %p176 = scmp.ne.s32.totalorder %s168, %s171
      %p177 = scmp.eq.s32.totalorder %s26, 0
      %p178 = por %p176, %p177
      %p179 = scmp.ne.s32.totalorder %s168, %s171
      %p180 = scmp.eq.s32.totalorder %s31, 3
      %p181 = por %p179, %p180
      %p182 = scmp.ne.s32.totalorder %s171, %s172
      %p183 = scmp.eq.s32.totalorder %s31, 0
      %p184 = por %p182, %p183
      %p185 = scmp.ne.s32.totalorder %s171, %s172
      %p186 = scmp.eq.s32.totalorder %s32, 3
      %p187 = por %p185, %p186
      %p189 = scmp.ne.s32.totalorder %s172, %s188
      %p190 = scmp.eq.s32.totalorder %s32, 0
      %p191 = por %p189, %p190
      %s192 = ssub.s32 %s34, %s41
      %p193 = scmp.eq.s32.totalorder %s192, 0
      %s195 = sadd.s32 %s194, 1
      %s196 = scalar_select %p193, %s194, %s195
      %p199 = pneg %p193
      %p200 = scmp.eq.s32.totalorder %s26, 3
      %p201 = por %p199, %p200
      %p202 = scmp.ne.s32.totalorder %s194, %s197
      %p203 = scmp.eq.s32.totalorder %s26, 0
      %p204 = por %p202, %p203
      %p205 = scmp.ne.s32.totalorder %s194, %s197
      %p206 = scmp.eq.s32.totalorder %s31, 3
      %p207 = por %p205, %p206
      %p208 = scmp.ne.s32.totalorder %s197, %s198
      %p209 = scmp.eq.s32.totalorder %s31, 0
      %p210 = por %p208, %p209
      %p211 = scmp.ne.s32.totalorder %s197, %s198
      %p212 = scmp.eq.s32.totalorder %s32, 3
      %p213 = por %p211, %p212
      %p215 = scmp.ne.s32.totalorder %s198, %s214
      %p216 = scmp.eq.s32.totalorder %s32, 0
      %p217 = por %p215, %p216
      %s218 = ssub.s32 %s34, %s41
      %p219 = scmp.eq.s32.totalorder %s218, 0
      %s221 = sadd.s32 %s220, 1
      %s222 = scalar_select %p219, %s220, %s221
      %p225 = pneg %p219
      %p226 = scmp.eq.s32.totalorder %s26, 3
      %p227 = por %p225, %p226
      %p228 = scmp.ne.s32.totalorder %s220, %s223
      %p229 = scmp.eq.s32.totalorder %s26, 0
      %p230 = por %p228, %p229
      %p231 = scmp.ne.s32.totalorder %s220, %s223
      %p232 = scmp.eq.s32.totalorder %s31, 3
      %p233 = por %p231, %p232
      %p234 = scmp.ne.s32.totalorder %s223, %s224
      %p235 = scmp.eq.s32.totalorder %s31, 0
      %p236 = por %p234, %p235
      %p237 = scmp.ne.s32.totalorder %s223, %s224
      %p238 = scmp.eq.s32.totalorder %s32, 3
      %p239 = por %p237, %p238
      %p241 = scmp.ne.s32.totalorder %s224, %s240
      %p242 = scmp.eq.s32.totalorder %s32, 0
      %p243 = por %p241, %p242
      %s244 = ssub.s32 %s34, %s41
      %p245 = scmp.eq.s32.totalorder %s244, 0
      %s247 = sadd.s32 %s246, 1
      %s248 = scalar_select %p245, %s246, %s247
      %p251 = pneg %p245
      %p252 = scmp.eq.s32.totalorder %s26, 3
      %p253 = por %p251, %p252
      %p254 = scmp.ne.s32.totalorder %s246, %s249
      %p255 = scmp.eq.s32.totalorder %s26, 0
      %p256 = por %p254, %p255
      %p257 = scmp.ne.s32.totalorder %s246, %s249
      %p258 = scmp.eq.s32.totalorder %s31, 3
      %p259 = por %p257, %p258
      %p260 = scmp.ne.s32.totalorder %s249, %s250
      %p261 = scmp.eq.s32.totalorder %s31, 0
      %p262 = por %p260, %p261
      %p263 = scmp.ne.s32.totalorder %s249, %s250
      %p264 = scmp.eq.s32.totalorder %s32, 3
      %p265 = por %p263, %p264
      %p267 = scmp.ne.s32.totalorder %s250, %s266
      %p268 = scmp.eq.s32.totalorder %s32, 0
      %p269 = por %p267, %p268
      %s270 = ssub.s32 %s34, %s41
      %p271 = scmp.eq.s32.totalorder %s270, 0
      %s273 = sadd.s32 %s272, 1
      %s274 = scalar_select %p271, %s272, %s273
      %p277 = pneg %p271
      %p278 = scmp.eq.s32.totalorder %s26, 3
      %p279 = por %p277, %p278
      %p280 = scmp.ne.s32.totalorder %s272, %s275
      %p281 = scmp.eq.s32.totalorder %s26, 0
      %p282 = por %p280, %p281
      %p283 = scmp.ne.s32.totalorder %s272, %s275
      %p284 = scmp.eq.s32.totalorder %s31, 3
      %p285 = por %p283, %p284
      %p286 = scmp.ne.s32.totalorder %s275, %s276
      %p287 = scmp.eq.s32.totalorder %s31, 0
      %p288 = por %p286, %p287
      %p289 = scmp.ne.s32.totalorder %s275, %s276
      %p290 = scmp.eq.s32.totalorder %s32, 3
      %p291 = por %p289, %p290
      %p293 = scmp.ne.s32.totalorder %s276, %s292
      %p294 = scmp.eq.s32.totalorder %s32, 0
      %p295 = por %p293, %p294
      %s296 = ssub.s32 %s34, %s41
      %p297 = scmp.eq.s32.totalorder %s296, 0
      %s299 = sadd.s32 %s298, 1
      %s300 = scalar_select %p297, %s298, %s299
      %p303 = pneg %p297
      %p304 = scmp.eq.s32.totalorder %s26, 3
      %p305 = por %p303, %p304
      %p306 = scmp.ne.s32.totalorder %s298, %s301
      %p307 = scmp.eq.s32.totalorder %s26, 0
      %p308 = por %p306, %p307
      %p309 = scmp.ne.s32.totalorder %s298, %s301
      %p310 = scmp.eq.s32.totalorder %s31, 3
      %p311 = por %p309, %p310
      %p312 = scmp.ne.s32.totalorder %s301, %s302
      %p313 = scmp.eq.s32.totalorder %s31, 0
      %p314 = por %p312, %p313
      %p315 = scmp.ne.s32.totalorder %s301, %s302
      %p316 = scmp.eq.s32.totalorder %s32, 3
      %p317 = por %p315, %p316
      %p319 = scmp.ne.s32.totalorder %s302, %s318
      %p320 = scmp.eq.s32.totalorder %s32, 0
      %p321 = por %p319, %p320
      %s322 = ssub.s32 %s34, %s41
      %p323 = scmp.eq.s32.totalorder %s322, 0
      %s325 = sadd.s32 %s324, 1
      %s326 = scalar_select %p323, %s324, %s325
      %p329 = pneg %p323
      %p330 = scmp.eq.s32.totalorder %s26, 3
      %p331 = por %p329, %p330
      %p332 = scmp.ne.s32.totalorder %s324, %s327
      %p333 = scmp.eq.s32.totalorder %s26, 0
      %p334 = por %p332, %p333
      %p335 = scmp.ne.s32.totalorder %s324, %s327
      %p336 = scmp.eq.s32.totalorder %s31, 3
      %p337 = por %p335, %p336
      %p338 = scmp.ne.s32.totalorder %s327, %s328
      %p339 = scmp.eq.s32.totalorder %s31, 0
      %p340 = por %p338, %p339
      %p341 = scmp.ne.s32.totalorder %s327, %s328
      %p342 = scmp.eq.s32.totalorder %s32, 3
      %p343 = por %p341, %p342
      %p345 = scmp.ne.s32.totalorder %s328, %s344
      %p346 = scmp.eq.s32.totalorder %s32, 0
      %p347 = por %p345, %p346
      %s348 = ssub.s32 %s34, %s41
      %p349 = scmp.eq.s32.totalorder %s348, 0
      %s351 = sadd.s32 %s350, 1
      %s352 = scalar_select %p349, %s350, %s351
      %p355 = pneg %p349
      %p356 = scmp.eq.s32.totalorder %s26, 3
      %p357 = por %p355, %p356
      %p358 = scmp.ne.s32.totalorder %s350, %s353
      %p359 = scmp.eq.s32.totalorder %s26, 0
      %p360 = por %p358, %p359
      %p361 = scmp.ne.s32.totalorder %s350, %s353
      %p362 = scmp.eq.s32.totalorder %s31, 3
      %p363 = por %p361, %p362
      %p364 = scmp.ne.s32.totalorder %s353, %s354
      %p365 = scmp.eq.s32.totalorder %s31, 0
      %p366 = por %p364, %p365
      %p367 = scmp.ne.s32.totalorder %s353, %s354
      %p368 = scmp.eq.s32.totalorder %s32, 3
      %p369 = por %p367, %p368
      %p371 = scmp.ne.s32.totalorder %s354, %s370
      %p372 = scmp.eq.s32.totalorder %s32, 0
      %p373 = por %p371, %p372
      %s375 = sadd.s32 %s374, 1
      %p378 = scmp.eq.s32.totalorder %s26, 3
      %p379 = scmp.ne.s32.totalorder %s374, %s376
      %p380 = scmp.eq.s32.totalorder %s26, 0
      %p381 = por %p379, %p380
      %p382 = scmp.ne.s32.totalorder %s374, %s376
      %p383 = scmp.eq.s32.totalorder %s31, 3
      %p384 = por %p382, %p383
      %p385 = scmp.ne.s32.totalorder %s376, %s377
      %p386 = scmp.eq.s32.totalorder %s31, 0
      %p387 = por %p385, %p386
      %p388 = scmp.ne.s32.totalorder %s376, %s377
      %p389 = scmp.eq.s32.totalorder %s32, 3
      %p390 = por %p388, %p389
      %p392 = scmp.ne.s32.totalorder %s377, %s391
      %p393 = scmp.eq.s32.totalorder %s32, 0
      %p394 = por %p392, %p393
      %s396 = sadd.s32 %s395, 1
      %p399 = scmp.eq.s32.totalorder %s26, 3
      %p400 = scmp.ne.s32.totalorder %s395, %s397
      %p401 = scmp.eq.s32.totalorder %s26, 0
      %p402 = por %p400, %p401
      %p403 = scmp.ne.s32.totalorder %s395, %s397
      %p404 = scmp.eq.s32.totalorder %s31, 3
      %p405 = por %p403, %p404
      %p406 = scmp.ne.s32.totalorder %s397, %s398
      %p407 = scmp.eq.s32.totalorder %s31, 0
      %p408 = por %p406, %p407
      %p409 = scmp.ne.s32.totalorder %s397, %s398
      %p410 = scmp.eq.s32.totalorder %s32, 3
      %p411 = por %p409, %p410
      %p413 = scmp.ne.s32.totalorder %s398, %s412
      %p414 = scmp.eq.s32.totalorder %s32, 0
      %p415 = por %p413, %p414
      %s417 = sadd.s32 %s416, 1
      %p420 = scmp.eq.s32.totalorder %s26, 3
      %p421 = scmp.ne.s32.totalorder %s416, %s418
      %p422 = scmp.eq.s32.totalorder %s26, 0
      %p423 = por %p421, %p422
      %p424 = scmp.ne.s32.totalorder %s416, %s418
      %p425 = scmp.eq.s32.totalorder %s31, 3
      %p426 = por %p424, %p425
      %p427 = scmp.ne.s32.totalorder %s418, %s419
      %p428 = scmp.eq.s32.totalorder %s31, 0
      %p429 = por %p427, %p428
      %p430 = scmp.ne.s32.totalorder %s418, %s419
      %p431 = scmp.eq.s32.totalorder %s32, 3
      %p432 = por %p430, %p431
      %p434 = scmp.ne.s32.totalorder %s419, %s433
      %p435 = scmp.eq.s32.totalorder %s32, 0
      %p436 = por %p434, %p435
      %s438 = sadd.s32 %s437, 1
      %p441 = scmp.eq.s32.totalorder %s26, 3
      %p442 = scmp.ne.s32.totalorder %s437, %s439
      %p443 = scmp.eq.s32.totalorder %s26, 0
      %p444 = por %p442, %p443
      %p445 = scmp.ne.s32.totalorder %s437, %s439
      %p446 = scmp.eq.s32.totalorder %s31, 3
      %p447 = por %p445, %p446
      %p448 = scmp.ne.s32.totalorder %s439, %s440
      %p449 = scmp.eq.s32.totalorder %s31, 0
      %p450 = por %p448, %p449
      %p451 = scmp.ne.s32.totalorder %s439, %s440
      %p452 = scmp.eq.s32.totalorder %s32, 3
      %p453 = por %p451, %p452
      %p455 = scmp.ne.s32.totalorder %s440, %s454
      %p456 = scmp.eq.s32.totalorder %s32, 0
      %p457 = por %p455, %p456
      %s458 = ssub.s32 %s33, %s45
      %p459 = scmp.eq.s32.totalorder %s458, 0
      %s461 = sadd.s32 %s460, 1
      %s462 = scalar_select %p459, %s460, %s461
      %p465 = pneg %p459
      %p466 = scmp.eq.s32.totalorder %s26, 3
      %p467 = por %p465, %p466
      %p468 = scmp.ne.s32.totalorder %s460, %s463
      %p469 = scmp.eq.s32.totalorder %s26, 0
      %p470 = por %p468, %p469
      %p471 = scmp.ne.s32.totalorder %s460, %s463
      %p472 = scmp.eq.s32.totalorder %s31, 3
      %p473 = por %p471, %p472
      %p474 = scmp.ne.s32.totalorder %s463, %s464
      %p475 = scmp.eq.s32.totalorder %s31, 0
      %p476 = por %p474, %p475
      %p477 = scmp.ne.s32.totalorder %s463, %s464
      %p478 = scmp.eq.s32.totalorder %s32, 3
      %p479 = por %p477, %p478
      %p481 = scmp.ne.s32.totalorder %s464, %s480
      %p482 = scmp.eq.s32.totalorder %s32, 0
      %p483 = por %p481, %p482
      %p484 = scmp.le.s32.totalorder 1, %s26
      %p485 = scmp.lt.s32.totalorder %s26, 5
      %p486 = pnand %p484, %p485
      %p487 = pneg %p486
      // Predicated region
      $region9: #{vit_forward.1} parent=5 // pred_check
        _
      $region10: #{vit_forward.1} parent=5 // pred_check_branch
        %489 = sbr.rel (%p486) target = $region12
      $region11: #{vit_forward.1} parent=5 // pred_region
        %s490 = ssub.s32 %s26, 1
        // Predicated region
        $region13: #{vit_forward.1} parent=11 // pred_check
          %p491 = pneg %p85
        $region14: #{vit_forward.1} parent=11 // pred_check_branch
          %493 = sbr.rel (%p491) target = $region16
        $region15: #{vit_forward.1} parent=11 // pred_region
          _
        $region16: #{vit_forward.1} parent=11 // pred_fallthru
          _
        // Predicated region
        $region17: #{vit_forward.1} parent=11 // pred_check
          %p494 = pneg %p106
        $region18: #{vit_forward.1} parent=11 // pred_check_branch
          %496 = sbr.rel (%p494) target = $region20
        $region19: #{vit_forward.1} parent=11 // pred_region
          _
        $region20: #{vit_forward.1} parent=11 // pred_fallthru
          _
        // Predicated region
        $region21: #{vit_forward.1} parent=11 // pred_check
          %p497 = pneg %p387
        $region22: #{vit_forward.1} parent=11 // pred_check_branch
          %499 = sbr.rel (%p497) target = $region24
        $region23: #{vit_forward.1} parent=11 // pred_region
          _
        $region24: #{vit_forward.1} parent=11 // pred_fallthru
          _
        // Predicated region
        $region25: #{vit_forward.1} parent=11 // pred_check
          %p500 = pneg %p408
        $region26: #{vit_forward.1} parent=11 // pred_check_branch
          %502 = sbr.rel (%p500) target = $region28
        $region27: #{vit_forward.1} parent=11 // pred_region
          _
        $region28: #{vit_forward.1} parent=11 // pred_fallthru
          _
        // Predicated region
        $region29: #{vit_forward.1} parent=11 // pred_check
          %p503 = pneg %p429
        $region30: #{vit_forward.1} parent=11 // pred_check_branch
          %505 = sbr.rel (%p503) target = $region32
        $region31: #{vit_forward.1} parent=11 // pred_region
          _
        $region32: #{vit_forward.1} parent=11 // pred_fallthru
          _
        // Predicated region
        $region33: #{vit_forward.1} parent=11 // pred_check
          %p506 = pneg %p450
        $region34: #{vit_forward.1} parent=11 // pred_check_branch
          %508 = sbr.rel (%p506) target = $region36
        $region35: #{vit_forward.1} parent=11 // pred_region
          _
        $region36: #{vit_forward.1} parent=11 // pred_fallthru
          _
      $region12: #{vit_forward.1} parent=5 // pred_fallthru
        _
      %p509 = scmp.lt.s32.totalorder %s26, 4
      // Predicated region
      $region37: #{vit_forward.1} parent=5 // pred_check
        %p510 = pneg %p509
      $region38: #{vit_forward.1} parent=5 // pred_check_branch
        %512 = sbr.rel (%p510) target = $region40
      $region39: #{vit_forward.1} parent=5 // pred_region
        // Predicated region
        $region41: #{vit_forward.1} parent=39 // pred_check
          %p513 = pneg %p58
        $region42: #{vit_forward.1} parent=39 // pred_check_branch
          %515 = sbr.rel (%p513) target = $region44
        $region43: #{vit_forward.1} parent=39 // pred_region
          %p516 = scmp.lt.s32.totalorder %s33, 1
          %s517 = scalar_select %p516, %s33, 1
          %s518 = smul.addr %s517, 6
          %s519 = smul.addr %s518, 4
          %s520 = scalar_lea.vmem %s0, %s519
        $region44: #{vit_forward.1} parent=39 // pred_fallthru
          _
        // Predicated region
        $region45: #{vit_forward.1} parent=39 // pred_check
          %p521 = pneg %p126
        $region46: #{vit_forward.1} parent=39 // pred_check_branch
          %523 = sbr.rel (%p521) target = $region48
        $region47: #{vit_forward.1} parent=39 // pred_region
          %p524 = scmp.lt.s32.totalorder %s34, 1
          %s525 = scalar_select %p524, %s34, 1
          %s526 = scalar_lea.vmem %s3, %s525
        $region48: #{vit_forward.1} parent=39 // pred_fallthru
          _
        // Predicated region
        $region49: #{vit_forward.1} parent=39 // pred_check
          %p527 = pneg %p152
        $region50: #{vit_forward.1} parent=39 // pred_check_branch
          %529 = sbr.rel (%p527) target = $region52
        $region51: #{vit_forward.1} parent=39 // pred_region
          %p530 = scmp.lt.s32.totalorder %s34, 1
          %s531 = scalar_select %p530, %s34, 1
          %s532 = scalar_lea.vmem %s4, %s531
        $region52: #{vit_forward.1} parent=39 // pred_fallthru
          _
        // Predicated region
        $region53: #{vit_forward.1} parent=39 // pred_check
          %p533 = pneg %p178
        $region54: #{vit_forward.1} parent=39 // pred_check_branch
          %535 = sbr.rel (%p533) target = $region56
        $region55: #{vit_forward.1} parent=39 // pred_region
          %p536 = scmp.lt.s32.totalorder %s34, 1
          %s537 = scalar_select %p536, %s34, 1
          %s538 = smul.addr %s537, 4
          %s539 = smul.addr %s538, 4
          %s540 = scalar_lea.vmem %s5, %s539
        $region56: #{vit_forward.1} parent=39 // pred_fallthru
          _
        // Predicated region
        $region57: #{vit_forward.1} parent=39 // pred_check
          %p541 = pneg %p204
        $region58: #{vit_forward.1} parent=39 // pred_check_branch
          %543 = sbr.rel (%p541) target = $region60
        $region59: #{vit_forward.1} parent=39 // pred_region
          %p544 = scmp.lt.s32.totalorder %s34, 1
          %s545 = scalar_select %p544, %s34, 1
          %s546 = smul.addr %s545, 4
          %s547 = smul.addr %s546, 4
          %s548 = scalar_lea.vmem %s6, %s547
        $region60: #{vit_forward.1} parent=39 // pred_fallthru
          _
        // Predicated region
        $region61: #{vit_forward.1} parent=39 // pred_check
          %p549 = pneg %p230
        $region62: #{vit_forward.1} parent=39 // pred_check_branch
          %551 = sbr.rel (%p549) target = $region64
        $region63: #{vit_forward.1} parent=39 // pred_region
          %p552 = scmp.lt.s32.totalorder %s34, 1
          %s553 = scalar_select %p552, %s34, 1
          %s554 = scalar_lea.vmem %s7, %s553
        $region64: #{vit_forward.1} parent=39 // pred_fallthru
          _
        // Predicated region
        $region65: #{vit_forward.1} parent=39 // pred_check
          %p555 = pneg %p256
        $region66: #{vit_forward.1} parent=39 // pred_check_branch
          %557 = sbr.rel (%p555) target = $region68
        $region67: #{vit_forward.1} parent=39 // pred_region
          %p558 = scmp.lt.s32.totalorder %s34, 1
          %s559 = scalar_select %p558, %s34, 1
          %s560 = scalar_lea.vmem %s8, %s559
        $region68: #{vit_forward.1} parent=39 // pred_fallthru
          _
        // Predicated region
        $region69: #{vit_forward.1} parent=39 // pred_check
          %p561 = pneg %p282
        $region70: #{vit_forward.1} parent=39 // pred_check_branch
          %563 = sbr.rel (%p561) target = $region72
        $region71: #{vit_forward.1} parent=39 // pred_region
          %p564 = scmp.lt.s32.totalorder %s34, 1
          %s565 = scalar_select %p564, %s34, 1
          %s566 = smul.addr %s565, 4
          %s567 = smul.addr %s566, 4
          %s568 = scalar_lea.vmem %s9, %s567
        $region72: #{vit_forward.1} parent=39 // pred_fallthru
          _
        // Predicated region
        $region73: #{vit_forward.1} parent=39 // pred_check
          %p569 = pneg %p308
        $region74: #{vit_forward.1} parent=39 // pred_check_branch
          %571 = sbr.rel (%p569) target = $region76
        $region75: #{vit_forward.1} parent=39 // pred_region
          %p572 = scmp.lt.s32.totalorder %s34, 1
          %s573 = scalar_select %p572, %s34, 1
          %s574 = scalar_lea.vmem %s10, %s573
        $region76: #{vit_forward.1} parent=39 // pred_fallthru
          _
        // Predicated region
        $region77: #{vit_forward.1} parent=39 // pred_check
          %p575 = pneg %p334
        $region78: #{vit_forward.1} parent=39 // pred_check_branch
          %577 = sbr.rel (%p575) target = $region80
        $region79: #{vit_forward.1} parent=39 // pred_region
          %p578 = scmp.lt.s32.totalorder %s34, 1
          %s579 = scalar_select %p578, %s34, 1
          %s580 = smul.addr %s579, 8
          %s581 = smul.addr %s580, 4
          %s582 = scalar_lea.vmem %s11, %s581
        $region80: #{vit_forward.1} parent=39 // pred_fallthru
          _
        // Predicated region
        $region81: #{vit_forward.1} parent=39 // pred_check
          %p583 = pneg %p360
        $region82: #{vit_forward.1} parent=39 // pred_check_branch
          %585 = sbr.rel (%p583) target = $region84
        $region83: #{vit_forward.1} parent=39 // pred_region
          %p586 = scmp.lt.s32.totalorder %s34, 1
          %s587 = scalar_select %p586, %s34, 1
          %s588 = scalar_lea.vmem %s12, %s587
        $region84: #{vit_forward.1} parent=39 // pred_fallthru
          _
      $region40: #{vit_forward.1} parent=5 // pred_fallthru
        _
      %p589 = scmp.le.s32.totalorder 1, %s26
      %p590 = scmp.lt.s32.totalorder %s26, 5
      %p591 = pnand %p589, %p590
      %p592 = pneg %p591
      // Predicated region
      $region85: #{vit_forward.1} parent=5 // pred_check
        _
      $region86: #{vit_forward.1} parent=5 // pred_check_branch
        %594 = sbr.rel (%p591) target = $region88
      $region87: #{vit_forward.1} parent=5 // pred_region
        %s595 = ssub.s32 %s26, 1
        %p596 = scmp.lt.s32.totalorder %s35, 1
        %s597 = scalar_select %p596, %s35, 1
        %s598 = smul.addr %s597, 6
        %s599 = smul.addr %s598, 4
        %s600 = scalar_lea.vmem %s0, %s599
        %p601 = pneg %p64
        %p602 = pneg %p61
        %p603 = pneg %p85
        %p604 = pneg %p82
        %p605 = pneg %p106
        %p606 = pneg %p103
        %p607 = scmp.lt.s32.totalorder %s36, 1
        %s608 = scalar_select %p607, %s36, 1
        %s609 = scalar_lea.vmem %s3, %s608
        %p610 = pneg %p132
        %p611 = pneg %p129
        %p612 = scmp.lt.s32.totalorder %s36, 1
        %s613 = scalar_select %p612, %s36, 1
        %s614 = scalar_lea.vmem %s4, %s613
        %p615 = pneg %p158
        %p616 = pneg %p155
        %p617 = scmp.lt.s32.totalorder %s36, 1
        %s618 = scalar_select %p617, %s36, 1
        %s619 = smul.addr %s618, 4
        %s620 = smul.addr %s619, 4
        %s621 = scalar_lea.vmem %s5, %s620
        %p622 = pneg %p184
        %p623 = pneg %p181
        %p624 = scmp.lt.s32.totalorder %s36, 1
        %s625 = scalar_select %p624, %s36, 1
        %s626 = smul.addr %s625, 4
        %s627 = smul.addr %s626, 4
        %s628 = scalar_lea.vmem %s6, %s627
        %p629 = pneg %p210
        %p630 = pneg %p207
        %p631 = scmp.lt.s32.totalorder %s36, 1
        %s632 = scalar_select %p631, %s36, 1
        %s633 = scalar_lea.vmem %s7, %s632
        %p634 = pneg %p236
        %p635 = pneg %p233
        %p636 = scmp.lt.s32.totalorder %s36, 1
        %s637 = scalar_select %p636, %s36, 1
        %s638 = scalar_lea.vmem %s8, %s637
        %p639 = pneg %p262
        %p640 = pneg %p259
        %p641 = scmp.lt.s32.totalorder %s36, 1
        %s642 = scalar_select %p641, %s36, 1
        %s643 = smul.addr %s642, 4
        %s644 = smul.addr %s643, 4
        %s645 = scalar_lea.vmem %s9, %s644
        %p646 = pneg %p288
        %p647 = pneg %p285
        %p648 = scmp.lt.s32.totalorder %s36, 1
        %s649 = scalar_select %p648, %s36, 1
        %s650 = scalar_lea.vmem %s10, %s649
        %p651 = pneg %p314
        %p652 = pneg %p311
        %p653 = scmp.lt.s32.totalorder %s36, 1
        %s654 = scalar_select %p653, %s36, 1
        %s655 = smul.addr %s654, 8
        %s656 = smul.addr %s655, 4
        %s657 = scalar_lea.vmem %s11, %s656
        %p658 = pneg %p340
        %p659 = pneg %p337
        %p660 = scmp.lt.s32.totalorder %s36, 1
        %s661 = scalar_select %p660, %s36, 1
        %s662 = scalar_lea.vmem %s12, %s661
        %p663 = pneg %p366
        %p664 = pneg %p363
        %p665 = pneg %p387
        %p666 = pneg %p384
        %p667 = pneg %p408
        %p668 = pneg %p405
        %p669 = pneg %p429
        %p670 = pneg %p426
        %p671 = pneg %p450
        %p672 = pneg %p447
        %p673 = pneg %p476
        %p674 = pneg %p473
        %s675 = sand.u32 %s463, 1
        %s676 = scalar_lea.sflag [#allocation4], %s675
        %s677 = sand.u32 %s463, 1
        %s678 = smul.addr %s677, 2
        %s679 = scalar_lea.vmem [#allocation3], %s678
        %p680 = scmp.lt.s32.totalorder %s35, 1
        %s681 = scalar_select %p680, %s35, 1
        %s682 = smul.addr %s681, 6
        %s683 = smul.addr %s682, 4
        %s684 = scalar_lea.vmem %s0, %s683
        %p685 = scmp.lt.s32.totalorder %s36, 1
        %s686 = scalar_select %p685, %s36, 1
        %s687 = scalar_lea.vmem %s3, %s686
        %p688 = scmp.lt.s32.totalorder %s36, 1
        %s689 = scalar_select %p688, %s36, 1
        %s690 = scalar_lea.vmem %s4, %s689
        %p691 = scmp.lt.s32.totalorder %s36, 1
        %s692 = scalar_select %p691, %s36, 1
        %s693 = smul.addr %s692, 4
        %s694 = smul.addr %s693, 4
        %s695 = scalar_lea.vmem %s5, %s694
        %p696 = scmp.lt.s32.totalorder %s36, 1
        %s697 = scalar_select %p696, %s36, 1
        %s698 = smul.addr %s697, 4
        %s699 = smul.addr %s698, 4
        %s700 = scalar_lea.vmem %s6, %s699
        %p701 = scmp.lt.s32.totalorder %s36, 1
        %s702 = scalar_select %p701, %s36, 1
        %s703 = scalar_lea.vmem %s7, %s702
        %p704 = scmp.lt.s32.totalorder %s36, 1
        %s705 = scalar_select %p704, %s36, 1
        %s706 = scalar_lea.vmem %s8, %s705
        %p707 = scmp.lt.s32.totalorder %s36, 1
        %s708 = scalar_select %p707, %s36, 1
        %s709 = smul.addr %s708, 4
        %s710 = smul.addr %s709, 4
        %s711 = scalar_lea.vmem %s9, %s710
        %p712 = scmp.lt.s32.totalorder %s36, 1
        %s713 = scalar_select %p712, %s36, 1
        %s714 = scalar_lea.vmem %s10, %s713
        %p715 = scmp.lt.s32.totalorder %s36, 1
        %s716 = scalar_select %p715, %s36, 1
        %s717 = smul.addr %s716, 8
        %s718 = smul.addr %s717, 4
        %s719 = scalar_lea.vmem %s11, %s718
        %p720 = scmp.lt.s32.totalorder %s36, 1
        %s721 = scalar_select %p720, %s36, 1
        %s722 = scalar_lea.vmem %s12, %s721
        %p724 = scmp.eq.s32.totalorder %s36, 0
        // Predicated region
        $region89: #{vit_forward.1} parent=87 // pred_check
          %p725 = pneg %p724
        $region90: #{vit_forward.1} parent=87 // pred_check_branch
          %727 = sbr.rel (%p725) target = $region92
        $region91: #{vit_forward.1} parent=87 // pred_region
          %v728 = vld [vmem:[%s684] sm:$0xf]
          %v729 = vld [vmem:[%s684 + $0x4] sm:$0xf]
          %v730 = vld [vmem:[%s684 + $0x8] sm:$0xf]
          %v731 = vld [vmem:[%s684 + $0xc] sm:$0xf]
          %v732 = vld [vmem:[%s684 + $0x10] sm:$0xf]
          %v733 = vld [vmem:[%s684 + $0x14] sm:$0xf]
          %v734 = vld [vmem:[%s1] sm:$0xf]
          %v735 = vld [vmem:[%s1 + $0x4] sm:$0xf]
          %v736 = vld [vmem:[%s1 + $0x8] sm:$0xf]
          %v737 = vld [vmem:[%s1 + $0xc] sm:$0xf]
          %v738 = vld [vmem:[%s1 + $0x10] sm:$0xf]
          %v739 = vld [vmem:[%s1 + $0x14] sm:$0xf]
          %v740 = vld [vmem:[%s1 + $0x18] sm:$0xf]
          %v741 = vld [vmem:[%s1 + $0x1c] sm:$0xf]
          %v742 = vld [vmem:[%s2] sm:$0xff]
          %v743 = vld [vmem:[%s2 + $0x8] sm:$0xff]
          %v744 = vld [vmem:[%s2 + $0x10] sm:$0xff]
          %v745 = vld [vmem:[%s2 + $0x18] sm:$0xff]
          %v746 = vld [vmem:[%s2 + $0x20] sm:$0xff]
          %v747 = vld [vmem:[%s2 + $0x28] sm:$0xff]
          %v754 = vunpack.c.l.b16 %v728
          %v755 = vunpack.c.l.b16 %v729
          %v756 = vunpack.c.l.b16 %v730
          %v757 = vunpack.c.l.b16 %v731
          %v758 = vunpack.c.l.b16 %v732
          %v759 = vunpack.c.l.b16 %v733
          %v760 = vpack.c.b16 %v755, %v754
          %v761 = vpack.c.b16 %v757, %v756
          %v762 = vpack.c.b16 %v759, %v758
          %v771 = vunpack.c.l.b16 %v734
          %v772 = vunpack.c.l.b16 %v735
          %v773 = vunpack.c.l.b16 %v736
          %v774 = vunpack.c.l.b16 %v737
          %v775 = vunpack.c.l.b16 %v738
          %v776 = vunpack.c.l.b16 %v739
          %v777 = vunpack.c.l.b16 %v740
          %v778 = vunpack.c.l.b16 %v741
          %v779 = vpack.c.b16 %v772, %v771
          %v780 = vpack.c.b16 %v774, %v773
          %v781 = vpack.c.b16 %v776, %v775
          %v782 = vpack.c.b16 %v778, %v777
          %vm787 = vcmask 523264
          %v789 = vsel %vm787, %v760, 0
          %v792 = vsel %vm787, %v761, 0
          %v795 = vsel %vm787, %v762, 0
          %797 = vmatprep.subr.bf16.mxu0 0
          %798 = vmatpush1.bf16.msra.mxu0 0
          %799 = vmatprep.subr.bf16.mxu0 0
          %800 = vmatpush1.bf16.msra.mxu0 0
          %801 = vmatprep.subr.bf16.mxu0 0
          %802 = vmatpush1.bf16.msra.mxu0 0
          %803 = vmatprep.subr.bf16.mxu0 0
          %804 = vmatpush1.bf16.msra.mxu0 0
          %805 = vmatprep.subr.bf16.mxu0 0
          %806 = vmatpush1.bf16.msra.mxu0 %v782
          %807 = vmatprep.subr.bf16.mxu0 0
          %808 = vmatpush1.bf16.msra.mxu0 %v781
          %809 = vmatprep.subr.bf16.mxu0 0
          %810 = vmatpush1.bf16.msra.mxu0 %v780
          %811 = vmatprep.subr.bf16.mxu0 0
          %812 = vmatpush1.bf16.msra.mxu0 %v779
          %813 = vmatprep.subr.bf16.mxu0 0
          %814 = vmatpush2.bf16.msra.mxu0 0
          %815 = vmatprep.subr.bf16.mxu0 0
          %816 = vmatpush2.bf16.msra.mxu0 0
          %817 = vmatprep.subr.bf16.mxu0 0
          %818 = vmatpush2.bf16.msra.mxu0 0
          %819 = vmatprep.subr.bf16.mxu0 0
          %820 = vmatpush2.bf16.msra.mxu0 0
          %821 = vmatprep.subr.bf16.mxu0 0
          %822 = vmatpush2.bf16.msra.mxu0 0
          %823 = vmatprep.subr.bf16.mxu0 0
          %824 = vmatpush2.bf16.msra.mxu0 0
          %825 = vmatprep.subr.bf16.mxu0 0
          %826 = vmatpush2.bf16.msra.mxu0 0
          %827 = vmatprep.subr.bf16.mxu0 0
          %828 = vmatpush2.bf16.msra.mxu0 0
          %829 = vmatprep.mubr.bf16.mxu0 0
          %830 = vmatmul.mubr.bf16.gmra.mxu0 %v789
          %v831 = vpop.f32.mrf.mxu0
          %v832 = vadd.f32 %v742, %v831
          %v833 = vpop.f32.mrf.mxu0
          %v834 = vpop.f32.mrf.mxu0
          %v835 = vadd.f32 %v743, %v834
          %v836 = vpop.f32.mrf.mxu0
          %837 = vmatprep.mubr.bf16.mxu0 0
          %838 = vmatmul.mubr.bf16.gmra.mxu0 %v792
          %v839 = vpop.f32.mrf.mxu0
          %v840 = vadd.f32 %v744, %v839
          %v841 = vpop.f32.mrf.mxu0
          %v842 = vpop.f32.mrf.mxu0
          %v843 = vadd.f32 %v745, %v842
          %v844 = vpop.f32.mrf.mxu0
          %845 = vmatprep.mubr.bf16.mxu0 0
          %846 = vmatmul.mubr.bf16.gmra.mxu0 %v795
          %v847 = vpop.f32.mrf.mxu0
          %v848 = vadd.f32 %v746, %v847
          %v849 = vpop.f32.mrf.mxu0
          %v850 = vpop.f32.mrf.mxu0
          %v851 = vadd.f32 %v747, %v850
          %v852 = vpop.f32.mrf.mxu0
          %853 = vdwg.mxu0
          %vm854 = vcmask 261120
          %855 = vst.msk [vmem:[#allocation2] sm:$0xff] %vm854, %v832
          %856 = vst.msk [vmem:[#allocation2 + $0x8] sm:$0xff] %vm854, %v835
          %857 = vst.msk [vmem:[#allocation2 + $0x10] sm:$0xff] %vm854, %v840
          %858 = vst.msk [vmem:[#allocation2 + $0x18] sm:$0xff] %vm854, %v843
          %859 = vst.msk [vmem:[#allocation2 + $0x20] sm:$0xff] %vm854, %v848
          %860 = vst.msk [vmem:[#allocation2 + $0x28] sm:$0xff] %vm854, %v851
        $region92: #{vit_forward.1} parent=87 // pred_fallthru
          _
        %v861 = vld [vmem:[#allocation2] sm:$0xff]
        %v862 = vld [vmem:[#allocation2 + $0x8] sm:$0xff]
        %v863 = vld [vmem:[#allocation2 + $0x10] sm:$0xff]
        %v864 = vld [vmem:[#allocation2 + $0x18] sm:$0xff]
        %v865 = vld [vmem:[#allocation2 + $0x20] sm:$0xff]
        %v866 = vld [vmem:[#allocation2 + $0x28] sm:$0xff]
        %v867 = vlaneseq
        %v868 = vand.u32 %v867, 127
        %vm869 = vcmp.lt.s32.totalorder %v868, 17
        %v870 = vsel %vm869, 0.0, -1e+30
        %v871 = vld [vmem:[%s687] sm:$0x1]
        %v872 = vld [vmem:[%s690] sm:$0x1]
        %vm873 = vcmask 261120
        %v874 = vsel %vm873, %v861, 0.0
        %875 = vadd.xlane.f32.xlu0 %v874
        %v876 = vpop.xlane.xlu0 %875
        %v877 = vsel %vm873, %v862, 0.0
        %878 = vadd.xlane.f32.xlu0 %v877
        %v879 = vpop.xlane.xlu0 %878
        %v880 = vsel %vm873, %v863, 0.0
        %881 = vadd.xlane.f32.xlu0 %v880
        %v882 = vpop.xlane.xlu0 %881
        %v883 = vsel %vm873, %v864, 0.0
        %884 = vadd.xlane.f32.xlu0 %v883
        %v885 = vpop.xlane.xlu0 %884
        %v886 = vsel %vm873, %v865, 0.0
        %887 = vadd.xlane.f32.xlu0 %v886
        %v888 = vpop.xlane.xlu0 %887
        %v889 = vsel %vm873, %v866, 0.0
        %890 = vadd.xlane.f32.xlu0 %v889
        %v891 = vpop.xlane.xlu0 %890
        %v892 = vrcp.pop 32.0
        %v893 = vmul.f32 %v876, %v892
        %v894 = vmul.f32 %v879, %v892
        %v895 = vmul.f32 %v882, %v892
        %v896 = vmul.f32 %v885, %v892
        %v897 = vmul.f32 %v888, %v892
        %v898 = vmul.f32 %v891, %v892
        %v899 = vsub.f32 %v861, %v893
        %v900 = vsub.f32 %v862, %v894
        %v901 = vsub.f32 %v863, %v895
        %v902 = vsub.f32 %v864, %v896
        %v903 = vsub.f32 %v865, %v897
        %v904 = vsub.f32 %v866, %v898
        %v905 = vmul.f32 %v899, %v899
        %v906 = vmul.f32 %v900, %v900
        %v907 = vmul.f32 %v901, %v901
        %v908 = vmul.f32 %v902, %v902
        %v909 = vmul.f32 %v903, %v903
        %v910 = vmul.f32 %v904, %v904
        %v911 = vsel %vm873, %v905, 0.0
        %912 = vadd.xlane.f32.xlu0 %v911
        %v913 = vpop.xlane.xlu0 %912
        %v914 = vsel %vm873, %v906, 0.0
        %915 = vadd.xlane.f32.xlu0 %v914
        %v916 = vpop.xlane.xlu0 %915
        %v917 = vsel %vm873, %v907, 0.0
        %918 = vadd.xlane.f32.xlu0 %v917
        %v919 = vpop.xlane.xlu0 %918
        %v920 = vsel %vm873, %v908, 0.0
        %921 = vadd.xlane.f32.xlu0 %v920
        %v922 = vpop.xlane.xlu0 %921
        %v923 = vsel %vm873, %v909, 0.0
        %924 = vadd.xlane.f32.xlu0 %v923
        %v925 = vpop.xlane.xlu0 %924
        %v926 = vsel %vm873, %v910, 0.0
        %927 = vadd.xlane.f32.xlu0 %v926
        %v928 = vpop.xlane.xlu0 %927
        %v929 = vmul.f32 %v913, %v892
        %v930 = vmul.f32 %v916, %v892
        %v931 = vmul.f32 %v919, %v892
        %v932 = vmul.f32 %v922, %v892
        %v933 = vmul.f32 %v925, %v892
        %v934 = vmul.f32 %v928, %v892
        %v935 = vadd.f32 %v929, 1e-05
        %v936 = vadd.f32 %v930, 1e-05
        %v937 = vadd.f32 %v931, 1e-05
        %v938 = vadd.f32 %v932, 1e-05
        %v939 = vadd.f32 %v933, 1e-05
        %v940 = vadd.f32 %v934, 1e-05
        %v941 = vrsqrt.pop %v935
        %v942 = vrsqrt.pop %v936
        %v943 = vrsqrt.pop %v937
        %v944 = vrsqrt.pop %v938
        %v945 = vrsqrt.pop %v939
        %v946 = vrsqrt.pop %v940
        %v947 = vmul.f32 %v899, %v941
        %v948 = vmul.f32 %v900, %v942
        %v949 = vmul.f32 %v901, %v943
        %v950 = vmul.f32 %v902, %v944
        %v951 = vmul.f32 %v903, %v945
        %v952 = vmul.f32 %v904, %v946
        %v954 = vlaneseq
        %v955 = vshrl.u32 %v954, 7
        %v956 = vsub.s32 0, %v955
        %v957 = vrot.slane %v871, %v956
        %v959 = vmul.f32 %v947, %v957
        %v960 = vmul.f32 %v948, %v957
        %v961 = vmul.f32 %v949, %v957
        %v962 = vmul.f32 %v950, %v957
        %v963 = vmul.f32 %v951, %v957
        %v964 = vmul.f32 %v952, %v957
        %v966 = vlaneseq
        %v967 = vshrl.u32 %v966, 7
        %v968 = vsub.s32 0, %v967
        %v969 = vrot.slane %v872, %v968
        %v971 = vadd.f32 %v959, %v969
        %v972 = vadd.f32 %v960, %v969
        %v973 = vadd.f32 %v961, %v969
        %v974 = vadd.f32 %v962, %v969
        %v975 = vadd.f32 %v963, %v969
        %v976 = vadd.f32 %v964, %v969
        %v977 = vpack.c.bf16 %v972, %v971
        %v978 = vpack.c.bf16 %v974, %v973
        %v979 = vpack.c.bf16 %v976, %v975
        %v980 = vld [vmem:[%s695] sm:$0xf]
        %v981 = vld [vmem:[%s695 + $0x4] sm:$0xf]
        %v982 = vld [vmem:[%s695 + $0x8] sm:$0xf]
        %v983 = vld [vmem:[%s695 + $0xc] sm:$0xf]
        %v988 = vunpack.c.l.b16 %v980
        %v989 = vunpack.c.l.b16 %v981
        %v990 = vunpack.c.l.b16 %v982
        %v991 = vunpack.c.l.b16 %v983
        %v992 = vpack.c.b16 %v989, %v988
        %v993 = vpack.c.b16 %v991, %v990
        %v997 = vsel %vm873, %v977, 0
        %v1000 = vsel %vm873, %v978, 0
        %v1003 = vsel %vm873, %v979, 0
        %1005 = vmatprep.subr.bf16.mxu0 0
        %1006 = vmatpush1.bf16.msra.mxu0 0
        %1007 = vmatprep.subr.bf16.mxu0 0
        %1008 = vmatpush1.bf16.msra.mxu0 0
        %1009 = vmatprep.subr.bf16.mxu0 0
        %1010 = vmatpush1.bf16.msra.mxu0 0
        %1011 = vmatprep.subr.bf16.mxu0 0
        %1012 = vmatpush1.bf16.msra.mxu0 0
        %1013 = vmatprep.subr.bf16.mxu0 0
        %1014 = vmatpush1.bf16.msra.mxu0 0
        %1015 = vmatprep.subr.bf16.mxu0 0
        %1016 = vmatpush1.bf16.msra.mxu0 0
        %1017 = vmatprep.subr.bf16.mxu0 0
        %1018 = vmatpush1.bf16.msra.mxu0 %v993
        %1019 = vmatprep.subr.bf16.mxu0 0
        %1020 = vmatpush1.bf16.msra.mxu0 %v992
        %1021 = vmatprep.subr.bf16.mxu0 0
        %1022 = vmatpush2.bf16.msra.mxu0 0
        %1023 = vmatprep.subr.bf16.mxu0 0
        %1024 = vmatpush2.bf16.msra.mxu0 0
        %1025 = vmatprep.subr.bf16.mxu0 0
        %1026 = vmatpush2.bf16.msra.mxu0 0
        %1027 = vmatprep.subr.bf16.mxu0 0
        %1028 = vmatpush2.bf16.msra.mxu0 0
        %1029 = vmatprep.subr.bf16.mxu0 0
        %1030 = vmatpush2.bf16.msra.mxu0 0
        %1031 = vmatprep.subr.bf16.mxu0 0
        %1032 = vmatpush2.bf16.msra.mxu0 0
        %1033 = vmatprep.subr.bf16.mxu0 0
        %1034 = vmatpush2.bf16.msra.mxu0 0
        %1035 = vmatprep.subr.bf16.mxu0 0
        %1036 = vmatpush2.bf16.msra.mxu0 0
        %1037 = vmatprep.mubr.bf16.mxu0 0
        %1038 = vmatmul.mubr.bf16.gmra.mxu0 %v997
        %v1039 = vpop.f32.mrf.mxu0
        %v1040 = vadd.f32 0.0, %v1039
        %v1041 = vpop.f32.mrf.mxu0
        %v1042 = vpop.f32.mrf.mxu0
        %v1043 = vadd.f32 0.0, %v1042
        %v1044 = vpop.f32.mrf.mxu0
        %1045 = vmatprep.mubr.bf16.mxu0 0
        %1046 = vmatmul.mubr.bf16.gmra.mxu0 %v1000
        %v1047 = vpop.f32.mrf.mxu0
        %v1048 = vadd.f32 0.0, %v1047
        %v1049 = vpop.f32.mrf.mxu0
        %v1050 = vpop.f32.mrf.mxu0
        %v1051 = vadd.f32 0.0, %v1050
        %v1052 = vpop.f32.mrf.mxu0
        %1053 = vmatprep.mubr.bf16.mxu0 0
        %1054 = vmatmul.mubr.bf16.gmra.mxu0 %v1003
        %v1055 = vpop.f32.mrf.mxu0
        %v1056 = vadd.f32 0.0, %v1055
        %v1057 = vpop.f32.mrf.mxu0
        %v1058 = vpop.f32.mrf.mxu0
        %v1059 = vadd.f32 0.0, %v1058
        %v1060 = vpop.f32.mrf.mxu0
        %1061 = vdwg.mxu0
        %1065 = vrot.lane.b32.xlu0 %v1040, 96
        %v1066 = vpop.permute.xlu0 %1065
        %1067 = vrot.lane.b32.xlu0 %v1043, 96
        %v1068 = vpop.permute.xlu0 %1067
        %1069 = vrot.lane.b32.xlu0 %v1048, 96
        %v1070 = vpop.permute.xlu0 %1069
        %1074 = vxpose.xlu0.b32.start [1/16] %v1066, 128
        %1075 = vxpose.xlu0.b32.cont [2/16] %v1068, 128
        %1076 = vxpose.xlu0.b32.cont [3/16] %v1070, 128
        %1077 = vxpose.xlu0.b32.cont [4/16] 0.0, 128
        %1078 = vxpose.xlu0.b32.cont [5/16] 0.0, 128
        %1079 = vxpose.xlu0.b32.cont [6/16] 0.0, 128
        %1080 = vxpose.xlu0.b32.cont [7/16] 0.0, 128
        %1081 = vxpose.xlu0.b32.cont [8/16] 0.0, 128
        %1082 = vxpose.xlu0.b32.cont [9/16] 0.0, 128
        %1083 = vxpose.xlu0.b32.cont [10/16] 0.0, 128
        %1084 = vxpose.xlu0.b32.cont [11/16] 0.0, 128
        %1085 = vxpose.xlu0.b32.cont [12/16] 0.0, 128
        %1086 = vxpose.xlu0.b32.cont [13/16] 0.0, 128
        %1087 = vxpose.xlu0.b32.cont [14/16] 0.0, 128
        %1088 = vxpose.xlu0.b32.cont [15/16] 0.0, 128
        %1089 = vxpose.xlu0.b32.end [16/16] 0.0, 128
        %v1090 = vpop.trf.xlu0
        %v1091 = vpop.trf.xlu0
        %v1092 = vpop.trf.xlu0
        %v1093 = vpop.trf.xlu0
        %v1094 = vpop.trf.xlu0
        %v1095 = vpop.trf.xlu0
        %v1096 = vpop.trf.xlu0
        %v1097 = vpop.trf.xlu0
        %v1098 = vpop.trf.xlu0
        %v1099 = vpop.trf.xlu0
        %v1100 = vpop.trf.xlu0
        %v1101 = vpop.trf.xlu0
        %v1102 = vpop.trf.xlu0
        %v1103 = vpop.trf.xlu0
        %v1104 = vpop.trf.xlu0
        %v1105 = vpop.trf.xlu0
        %v1106 = vpack.c.bf16 %v1043, %v1040
        %v1107 = vpack.c.bf16 %v1048, %v1048
        %v1108 = vpack.c.bf16 %v1090, %v1090
        %vm1109 = vcmask 64512
        %v1111 = vsel %vm1109, %v1106, 0
        %v1114 = vsel %vm1109, %v1107, 0
        %vm1116 = vcmask 1043456
        %v1118 = vsel %vm1116, %v1108, 0
        %1120 = vmatprep.subr.bf16.mxu0 0
        %1121 = vmatpush1.bf16.msra.mxu0 0
        %1122 = vmatprep.subr.bf16.mxu0 0
        %1123 = vmatpush1.bf16.msra.mxu0 0
        %1124 = vmatprep.subr.bf16.mxu0 0
        %1125 = vmatpush1.bf16.msra.mxu0 0
        %1126 = vmatprep.subr.bf16.mxu0 0
        %1127 = vmatpush1.bf16.msra.mxu0 0
        %1128 = vmatprep.subr.bf16.mxu0 0
        %1129 = vmatpush1.bf16.msra.mxu0 0
        %1130 = vmatprep.subr.bf16.mxu0 0
        %1131 = vmatpush1.bf16.msra.mxu0 0
        %1132 = vmatprep.subr.bf16.mxu0 0
        %1133 = vmatpush1.bf16.msra.mxu0 0
        %1134 = vmatprep.subr.bf16.mxu0 0
        %1135 = vmatpush1.bf16.msra.mxu0 %v1118
        %1136 = vmatprep.subr.bf16.mxu0 0
        %1137 = vmatpush2.bf16.msra.mxu0 0
        %1138 = vmatprep.subr.bf16.mxu0 0
        %1139 = vmatpush2.bf16.msra.mxu0 0
        %1140 = vmatprep.subr.bf16.mxu0 0
        %1141 = vmatpush2.bf16.msra.mxu0 0
        %1142 = vmatprep.subr.bf16.mxu0 0
        %1143 = vmatpush2.bf16.msra.mxu0 0
        %1144 = vmatprep.subr.bf16.mxu0 0
        %1145 = vmatpush2.bf16.msra.mxu0 0
        %1146 = vmatprep.subr.bf16.mxu0 0
        %1147 = vmatpush2.bf16.msra.mxu0 0
        %1148 = vmatprep.subr.bf16.mxu0 0
        %1149 = vmatpush2.bf16.msra.mxu0 0
        %1150 = vmatprep.subr.bf16.mxu0 0
        %1151 = vmatpush2.bf16.msra.mxu0 0
        %1152 = vmatprep.mubr.bf16.mxu0 0
        %1153 = vmatmul.mubr.bf16.gmra.mxu0 %v1111
        %v1154 = vpop.f32.mrf.mxu0
        %v1155 = vadd.f32 %v870, %v1154
        %v1156 = vpop.f32.mrf.mxu0
        %v1157 = vpop.f32.mrf.mxu0
        %v1158 = vadd.f32 %v870, %v1157
        %v1159 = vpop.f32.mrf.mxu0
        %1160 = vmatprep.mubr.bf16.mxu0 0
        %1161 = vmatmul.mubr.bf16.gmra.mxu0 %v1114
        %v1162 = vpop.f32.mrf.mxu0
        %v1163 = vadd.f32 %v870, %v1162
        %v1164 = vpop.f32.mrf.mxu0
        %v1165 = vpop.f32.mrf.mxu0
        %v1166 = vpop.f32.mrf.mxu0
        %1167 = vdwg.mxu0
        %vm1168 = vcmask 195584
        %v1169 = vsel %vm1168, %v1155, -inf
        %1170 = vmax.xlane.f32.xlu0 %v1169
        %v1171 = vpop.xlane.xlu0 %1170
        %v1172 = vsel %vm1168, %v1158, -inf
        %1173 = vmax.xlane.f32.xlu0 %v1172
        %v1174 = vpop.xlane.xlu0 %1173
        %v1175 = vsel %vm1168, %v1163, -inf
        %1176 = vmax.xlane.f32.xlu0 %v1175
        %v1177 = vpop.xlane.xlu0 %1176
        %v1178 = vsub.f32 %v1155, %v1171
        %v1179 = vsub.f32 %v1158, %v1174
        %v1180 = vsub.f32 %v1163, %v1177
        %v1181 = vmul.f32 %v1178, 1.442695
        %v1182 = vpow.pop %v1181
        %v1183 = vmul.f32 %v1179, 1.442695
        %v1184 = vpow.pop %v1183
        %v1185 = vmul.f32 %v1180, 1.442695
        %v1186 = vpow.pop %v1185
        %v1187 = vsel %vm1168, %v1182, 0.0
        %1188 = vadd.xlane.f32.xlu0 %v1187
        %v1189 = vpop.xlane.xlu0 %1188
        %v1190 = vsel %vm1168, %v1184, 0.0
        %1191 = vadd.xlane.f32.xlu0 %v1190
        %v1192 = vpop.xlane.xlu0 %1191
        %v1193 = vsel %vm1168, %v1186, 0.0
        %1194 = vadd.xlane.f32.xlu0 %v1193
        %v1195 = vpop.xlane.xlu0 %1194
        %v1196 = vrcp.pop %v1189
        %v1197 = vrcp.pop %v1192
        %v1198 = vrcp.pop %v1195
        %v1199 = vmul.f32 %v1182, %v1196
        %v1200 = vmul.f32 %v1184, %v1197
        %v1201 = vmul.f32 %v1186, %v1198
        %v1202 = vpack.c.bf16 %v1200, %v1199
        %v1203 = vpack.c.bf16 %v1201, %v1201
        %1206 = vrot.lane.b32.xlu0 %v1106, 64
        %v1207 = vpop.permute.xlu0 %1206
        %1208 = vrot.lane.b32.xlu0 %v1107, 64
        %v1209 = vpop.permute.xlu0 %1208
        %v1212 = vsel %vm1168, %v1202, 0
        %v1215 = vsel %vm1168, %v1203, 0
        %v1218 = vsel %vm1116, %v1209, 0
        %1220 = vmatprep.subr.bf16.mxu0 0
        %1221 = vmatpush1.bf16.msra.mxu0 0
        %1222 = vmatprep.subr.bf16.mxu0 0
        %1223 = vmatpush1.bf16.msra.mxu0 0
        %1224 = vmatprep.subr.bf16.mxu0 0
        %1225 = vmatpush1.bf16.msra.mxu0 0
        %1226 = vmatprep.subr.bf16.mxu0 0
        %1227 = vmatpush1.bf16.msra.mxu0 0
        %1228 = vmatprep.subr.bf16.mxu0 0
        %1229 = vmatpush1.bf16.msra.mxu0 0
        %1230 = vmatprep.subr.bf16.mxu0 0
        %1231 = vmatpush1.bf16.msra.mxu0 0
        %1232 = vmatprep.subr.bf16.mxu0 0
        %1233 = vmatpush1.bf16.msra.mxu0 %v1218
        %1234 = vmatprep.subr.bf16.mxu0 0
        %1235 = vmatpush1.bf16.msra.mxu0 %v1207
        %1236 = vmatprep.subr.bf16.mxu0 0
        %1237 = vmatpush2.bf16.msra.mxu0 0
        %1238 = vmatprep.subr.bf16.mxu0 0
        %1239 = vmatpush2.bf16.msra.mxu0 0
        %1240 = vmatprep.subr.bf16.mxu0 0
        %1241 = vmatpush2.bf16.msra.mxu0 0
        %1242 = vmatprep.subr.bf16.mxu0 0
        %1243 = vmatpush2.bf16.msra.mxu0 0
        %1244 = vmatprep.subr.bf16.mxu0 0
        %1245 = vmatpush2.bf16.msra.mxu0 0
        %1246 = vmatprep.subr.bf16.mxu0 0
        %1247 = vmatpush2.bf16.msra.mxu0 0
        %1248 = vmatprep.subr.bf16.mxu0 0
        %1249 = vmatpush2.bf16.msra.mxu0 0
        %1250 = vmatprep.subr.bf16.mxu0 0
        %1251 = vmatpush2.bf16.msra.mxu0 0
        %1252 = vmatprep.mubr.bf16.mxu0 0
        %1253 = vmatmul.mubr.bf16.gmra.mxu0 %v1212
        %v1254 = vpop.f32.mrf.mxu0
        %v1255 = vadd.f32 0.0, %v1254
        %v1256 = vpop.f32.mrf.mxu0
        %v1257 = vpop.f32.mrf.mxu0
        %v1258 = vadd.f32 0.0, %v1257
        %v1259 = vpop.f32.mrf.mxu0
        %1260 = vmatprep.mubr.bf16.mxu0 0
        %1261 = vmatmul.mubr.bf16.gmra.mxu0 %v1215
        %v1262 = vpop.f32.mrf.mxu0
        %v1263 = vadd.f32 0.0, %v1262
        %v1264 = vpop.f32.mrf.mxu0
        %v1265 = vpop.f32.mrf.mxu0
        %v1266 = vpop.f32.mrf.mxu0
        %1267 = vdwg.mxu0
        %1268 = vrot.lane.b32.xlu0 %v1040, 88
        %v1269 = vpop.permute.xlu0 %1268
        %1270 = vrot.lane.b32.xlu0 %v1043, 88
        %v1271 = vpop.permute.xlu0 %1270
        %1272 = vrot.lane.b32.xlu0 %v1048, 88
        %v1273 = vpop.permute.xlu0 %1272
        %1277 = vxpose.xlu0.b32.start [1/16] %v1269, 128
        %1278 = vxpose.xlu0.b32.cont [2/16] %v1271, 128
        %1279 = vxpose.xlu0.b32.cont [3/16] %v1273, 128
        %1280 = vxpose.xlu0.b32.cont [4/16] 0.0, 128
        %1281 = vxpose.xlu0.b32.cont [5/16] 0.0, 128
        %1282 = vxpose.xlu0.b32.cont [6/16] 0.0, 128
        %1283 = vxpose.xlu0.b32.cont [7/16] 0.0, 128
        %1284 = vxpose.xlu0.b32.cont [8/16] 0.0, 128
        %1285 = vxpose.xlu0.b32.cont [9/16] 0.0, 128
        %1286 = vxpose.xlu0.b32.cont [10/16] 0.0, 128
        %1287 = vxpose.xlu0.b32.cont [11/16] 0.0, 128
        %1288 = vxpose.xlu0.b32.cont [12/16] 0.0, 128
        %1289 = vxpose.xlu0.b32.cont [13/16] 0.0, 128
        %1290 = vxpose.xlu0.b32.cont [14/16] 0.0, 128
        %1291 = vxpose.xlu0.b32.cont [15/16] 0.0, 128
        %1292 = vxpose.xlu0.b32.end [16/16] 0.0, 128
        %v1293 = vpop.trf.xlu0
        %v1294 = vpop.trf.xlu0
        %v1295 = vpop.trf.xlu0
        %v1296 = vpop.trf.xlu0
        %v1297 = vpop.trf.xlu0
        %v1298 = vpop.trf.xlu0
        %v1299 = vpop.trf.xlu0
        %v1300 = vpop.trf.xlu0
        %v1301 = vpop.trf.xlu0
        %v1302 = vpop.trf.xlu0
        %v1303 = vpop.trf.xlu0
        %v1304 = vpop.trf.xlu0
        %v1305 = vpop.trf.xlu0
        %v1306 = vpop.trf.xlu0
        %v1307 = vpop.trf.xlu0
        %v1308 = vpop.trf.xlu0
        %v1309 = vpack.c.bf16 %v1293, %v1293
        %1310 = vrot.lane.b32.xlu0 %v1106, 120
        %v1311 = vpop.permute.xlu0 %1310
        %1312 = vrot.lane.b32.xlu0 %v1107, 120
        %v1313 = vpop.permute.xlu0 %1312
        %v1315 = vsel %vm1109, %v1311, 0
        %v1318 = vsel %vm1109, %v1313, 0
        %v1321 = vsel %vm1116, %v1309, 0
        %1323 = vmatprep.subr.bf16.mxu0 0
        %1324 = vmatpush1.bf16.msra.mxu0 0
        %1325 = vmatprep.subr.bf16.mxu0 0
        %1326 = vmatpush1.bf16.msra.mxu0 0
        %1327 = vmatprep.subr.bf16.mxu0 0
        %1328 = vmatpush1.bf16.msra.mxu0 0
        %1329 = vmatprep.subr.bf16.mxu0 0
        %1330 = vmatpush1.bf16.msra.mxu0 0
        %1331 = vmatprep.subr.bf16.mxu0 0
        %1332 = vmatpush1.bf16.msra.mxu0 0
        %1333 = vmatprep.subr.bf16.mxu0 0
        %1334 = vmatpush1.bf16.msra.mxu0 0
        %1335 = vmatprep.subr.bf16.mxu0 0
        %1336 = vmatpush1.bf16.msra.mxu0 0
        %1337 = vmatprep.subr.bf16.mxu0 0
        %1338 = vmatpush1.bf16.msra.mxu0 %v1321
        %1339 = vmatprep.subr.bf16.mxu0 0
        %1340 = vmatpush2.bf16.msra.mxu0 0
        %1341 = vmatprep.subr.bf16.mxu0 0
        %1342 = vmatpush2.bf16.msra.mxu0 0
        %1343 = vmatprep.subr.bf16.mxu0 0
        %1344 = vmatpush2.bf16.msra.mxu0 0
        %1345 = vmatprep.subr.bf16.mxu0 0
        %1346 = vmatpush2.bf16.msra.mxu0 0
        %1347 = vmatprep.subr.bf16.mxu0 0
        %1348 = vmatpush2.bf16.msra.mxu0 0
        %1349 = vmatprep.subr.bf16.mxu0 0
        %1350 = vmatpush2.bf16.msra.mxu0 0
        %1351 = vmatprep.subr.bf16.mxu0 0
        %1352 = vmatpush2.bf16.msra.mxu0 0
        %1353 = vmatprep.subr.bf16.mxu0 0
        %1354 = vmatpush2.bf16.msra.mxu0 0
        %1355 = vmatprep.mubr.bf16.mxu0 0
        %1356 = vmatmul.mubr.bf16.gmra.mxu0 %v1315
        %v1357 = vpop.f32.mrf.mxu0
        %v1358 = vadd.f32 %v870, %v1357
        %v1359 = vpop.f32.mrf.mxu0
        %v1360 = vpop.f32.mrf.mxu0
        %v1361 = vadd.f32 %v870, %v1360
        %v1362 = vpop.f32.mrf.mxu0
        %1363 = vmatprep.mubr.bf16.mxu0 0
        %1364 = vmatmul.mubr.bf16.gmra.mxu0 %v1318
        %v1365 = vpop.f32.mrf.mxu0
        %v1366 = vadd.f32 %v870, %v1365
        %v1367 = vpop.f32.mrf.mxu0
        %v1368 = vpop.f32.mrf.mxu0
        %v1369 = vpop.f32.mrf.mxu0
        %1370 = vdwg.mxu0
        %v1371 = vsel %vm1168, %v1358, -inf
        %1372 = vmax.xlane.f32.xlu0 %v1371
        %v1373 = vpop.xlane.xlu0 %1372
        %v1374 = vsel %vm1168, %v1361, -inf
        %1375 = vmax.xlane.f32.xlu0 %v1374
        %v1376 = vpop.xlane.xlu0 %1375
        %v1377 = vsel %vm1168, %v1366, -inf
        %1378 = vmax.xlane.f32.xlu0 %v1377
        %v1379 = vpop.xlane.xlu0 %1378
        %v1380 = vsub.f32 %v1358, %v1373
        %v1381 = vsub.f32 %v1361, %v1376
        %v1382 = vsub.f32 %v1366, %v1379
        %v1383 = vmul.f32 %v1380, 1.442695
        %v1384 = vpow.pop %v1383
        %v1385 = vmul.f32 %v1381, 1.442695
        %v1386 = vpow.pop %v1385
        %v1387 = vmul.f32 %v1382, 1.442695
        %v1388 = vpow.pop %v1387
        %v1389 = vsel %vm1168, %v1384, 0.0
        %1390 = vadd.xlane.f32.xlu0 %v1389
        %v1391 = vpop.xlane.xlu0 %1390
        %v1392 = vsel %vm1168, %v1386, 0.0
        %1393 = vadd.xlane.f32.xlu0 %v1392
        %v1394 = vpop.xlane.xlu0 %1393
        %v1395 = vsel %vm1168, %v1388, 0.0
        %1396 = vadd.xlane.f32.xlu0 %v1395
        %v1397 = vpop.xlane.xlu0 %1396
        %v1398 = vrcp.pop %v1391
        %v1399 = vrcp.pop %v1394
        %v1400 = vrcp.pop %v1397
        %v1401 = vmul.f32 %v1384, %v1398
        %v1402 = vmul.f32 %v1386, %v1399
        %v1403 = vmul.f32 %v1388, %v1400
        %v1404 = vpack.c.bf16 %v1402, %v1401
        %v1405 = vpack.c.bf16 %v1403, %v1403
        %1406 = vrot.lane.b32.xlu0 %v1106, 56
        %v1407 = vpop.permute.xlu0 %1406
        %1408 = vrot.lane.b32.xlu0 %v1107, 56
        %v1409 = vpop.permute.xlu0 %1408
        %v1412 = vsel %vm1168, %v1404, 0
        %v1415 = vsel %vm1168, %v1405, 0
        %v1418 = vsel %vm1116, %v1409, 0
        %1420 = vmatprep.subr.bf16.mxu0 0
        %1421 = vmatpush1.bf16.msra.mxu0 0
        %1422 = vmatprep.subr.bf16.mxu0 0
        %1423 = vmatpush1.bf16.msra.mxu0 0
        %1424 = vmatprep.subr.bf16.mxu0 0
        %1425 = vmatpush1.bf16.msra.mxu0 0
        %1426 = vmatprep.subr.bf16.mxu0 0
        %1427 = vmatpush1.bf16.msra.mxu0 0
        %1428 = vmatprep.subr.bf16.mxu0 0
        %1429 = vmatpush1.bf16.msra.mxu0 0
        %1430 = vmatprep.subr.bf16.mxu0 0
        %1431 = vmatpush1.bf16.msra.mxu0 0
        %1432 = vmatprep.subr.bf16.mxu0 0
        %1433 = vmatpush1.bf16.msra.mxu0 %v1418
        %1434 = vmatprep.subr.bf16.mxu0 0
        %1435 = vmatpush1.bf16.msra.mxu0 %v1407
        %1436 = vmatprep.subr.bf16.mxu0 0
        %1437 = vmatpush2.bf16.msra.mxu0 0
        %1438 = vmatprep.subr.bf16.mxu0 0
        %1439 = vmatpush2.bf16.msra.mxu0 0
        %1440 = vmatprep.subr.bf16.mxu0 0
        %1441 = vmatpush2.bf16.msra.mxu0 0
        %1442 = vmatprep.subr.bf16.mxu0 0
        %1443 = vmatpush2.bf16.msra.mxu0 0
        %1444 = vmatprep.subr.bf16.mxu0 0
        %1445 = vmatpush2.bf16.msra.mxu0 0
        %1446 = vmatprep.subr.bf16.mxu0 0
        %1447 = vmatpush2.bf16.msra.mxu0 0
        %1448 = vmatprep.subr.bf16.mxu0 0
        %1449 = vmatpush2.bf16.msra.mxu0 0
        %1450 = vmatprep.subr.bf16.mxu0 0
        %1451 = vmatpush2.bf16.msra.mxu0 0
        %1452 = vmatprep.mubr.bf16.mxu0 0
        %1453 = vmatmul.mubr.bf16.gmra.mxu0 %v1412
        %v1454 = vpop.f32.mrf.mxu0
        %v1455 = vadd.f32 0.0, %v1454
        %v1456 = vpop.f32.mrf.mxu0
        %v1457 = vpop.f32.mrf.mxu0
        %v1458 = vadd.f32 0.0, %v1457
        %v1459 = vpop.f32.mrf.mxu0
        %1460 = vmatprep.mubr.bf16.mxu0 0
        %1461 = vmatmul.mubr.bf16.gmra.mxu0 %v1415
        %v1462 = vpop.f32.mrf.mxu0
        %v1463 = vadd.f32 0.0, %v1462
        %v1464 = vpop.f32.mrf.mxu0
        %v1465 = vpop.f32.mrf.mxu0
        %v1466 = vpop.f32.mrf.mxu0
        %1467 = vdwg.mxu0
        %1468 = vrot.lane.b32.xlu0 %v1040, 80
        %v1469 = vpop.permute.xlu0 %1468
        %1470 = vrot.lane.b32.xlu0 %v1043, 80
        %v1471 = vpop.permute.xlu0 %1470
        %1472 = vrot.lane.b32.xlu0 %v1048, 80
        %v1473 = vpop.permute.xlu0 %1472
        %1477 = vxpose.xlu0.b32.start [1/16] %v1469, 128
        %1478 = vxpose.xlu0.b32.cont [2/16] %v1471, 128
        %1479 = vxpose.xlu0.b32.cont [3/16] %v1473, 128
        %1480 = vxpose.xlu0.b32.cont [4/16] 0.0, 128
        %1481 = vxpose.xlu0.b32.cont [5/16] 0.0, 128
        %1482 = vxpose.xlu0.b32.cont [6/16] 0.0, 128
        %1483 = vxpose.xlu0.b32.cont [7/16] 0.0, 128
        %1484 = vxpose.xlu0.b32.cont [8/16] 0.0, 128
        %1485 = vxpose.xlu0.b32.cont [9/16] 0.0, 128
        %1486 = vxpose.xlu0.b32.cont [10/16] 0.0, 128
        %1487 = vxpose.xlu0.b32.cont [11/16] 0.0, 128
        %1488 = vxpose.xlu0.b32.cont [12/16] 0.0, 128
        %1489 = vxpose.xlu0.b32.cont [13/16] 0.0, 128
        %1490 = vxpose.xlu0.b32.cont [14/16] 0.0, 128
        %1491 = vxpose.xlu0.b32.cont [15/16] 0.0, 128
        %1492 = vxpose.xlu0.b32.end [16/16] 0.0, 128
        %v1493 = vpop.trf.xlu0
        %v1494 = vpop.trf.xlu0
        %v1495 = vpop.trf.xlu0
        %v1496 = vpop.trf.xlu0
        %v1497 = vpop.trf.xlu0
        %v1498 = vpop.trf.xlu0
        %v1499 = vpop.trf.xlu0
        %v1500 = vpop.trf.xlu0
        %v1501 = vpop.trf.xlu0
        %v1502 = vpop.trf.xlu0
        %v1503 = vpop.trf.xlu0
        %v1504 = vpop.trf.xlu0
        %v1505 = vpop.trf.xlu0
        %v1506 = vpop.trf.xlu0
        %v1507 = vpop.trf.xlu0
        %v1508 = vpop.trf.xlu0
        %v1509 = vpack.c.bf16 %v1493, %v1493
        %1510 = vrot.lane.b32.xlu0 %v1106, 112
        %v1511 = vpop.permute.xlu0 %1510
        %1512 = vrot.lane.b32.xlu0 %v1107, 112
        %v1513 = vpop.permute.xlu0 %1512
        %v1515 = vsel %vm1109, %v1511, 0
        %v1518 = vsel %vm1109, %v1513, 0
        %v1521 = vsel %vm1116, %v1509, 0
        %1523 = vmatprep.subr.bf16.mxu0 0
        %1524 = vmatpush1.bf16.msra.mxu0 0
        %1525 = vmatprep.subr.bf16.mxu0 0
        %1526 = vmatpush1.bf16.msra.mxu0 0
        %1527 = vmatprep.subr.bf16.mxu0 0
        %1528 = vmatpush1.bf16.msra.mxu0 0
        %1529 = vmatprep.subr.bf16.mxu0 0
        %1530 = vmatpush1.bf16.msra.mxu0 0
        %1531 = vmatprep.subr.bf16.mxu0 0
        %1532 = vmatpush1.bf16.msra.mxu0 0
        %1533 = vmatprep.subr.bf16.mxu0 0
        %1534 = vmatpush1.bf16.msra.mxu0 0
        %1535 = vmatprep.subr.bf16.mxu0 0
        %1536 = vmatpush1.bf16.msra.mxu0 0
        %1537 = vmatprep.subr.bf16.mxu0 0
        %1538 = vmatpush1.bf16.msra.mxu0 %v1521
        %1539 = vmatprep.subr.bf16.mxu0 0
        %1540 = vmatpush2.bf16.msra.mxu0 0
        %1541 = vmatprep.subr.bf16.mxu0 0
        %1542 = vmatpush2.bf16.msra.mxu0 0
        %1543 = vmatprep.subr.bf16.mxu0 0
        %1544 = vmatpush2.bf16.msra.mxu0 0
        %1545 = vmatprep.subr.bf16.mxu0 0
        %1546 = vmatpush2.bf16.msra.mxu0 0
        %1547 = vmatprep.subr.bf16.mxu0 0
        %1548 = vmatpush2.bf16.msra.mxu0 0
        %1549 = vmatprep.subr.bf16.mxu0 0
        %1550 = vmatpush2.bf16.msra.mxu0 0
        %1551 = vmatprep.subr.bf16.mxu0 0
        %1552 = vmatpush2.bf16.msra.mxu0 0
        %1553 = vmatprep.subr.bf16.mxu0 0
        %1554 = vmatpush2.bf16.msra.mxu0 0
        %1555 = vmatprep.mubr.bf16.mxu0 0
        %1556 = vmatmul.mubr.bf16.gmra.mxu0 %v1515
        %v1557 = vpop.f32.mrf.mxu0
        %v1558 = vadd.f32 %v870, %v1557
        %v1559 = vpop.f32.mrf.mxu0
        %v1560 = vpop.f32.mrf.mxu0
        %v1561 = vadd.f32 %v870, %v1560
        %v1562 = vpop.f32.mrf.mxu0
        %1563 = vmatprep.mubr.bf16.mxu0 0
        %1564 = vmatmul.mubr.bf16.gmra.mxu0 %v1518
        %v1565 = vpop.f32.mrf.mxu0
        %v1566 = vadd.f32 %v870, %v1565
        %v1567 = vpop.f32.mrf.mxu0
        %v1568 = vpop.f32.mrf.mxu0
        %v1569 = vpop.f32.mrf.mxu0
        %1570 = vdwg.mxu0
        %v1571 = vsel %vm1168, %v1558, -inf
        %1572 = vmax.xlane.f32.xlu0 %v1571
        %v1573 = vpop.xlane.xlu0 %1572
        %v1574 = vsel %vm1168, %v1561, -inf
        %1575 = vmax.xlane.f32.xlu0 %v1574
        %v1576 = vpop.xlane.xlu0 %1575
        %v1577 = vsel %vm1168, %v1566, -inf
        %1578 = vmax.xlane.f32.xlu0 %v1577
        %v1579 = vpop.xlane.xlu0 %1578
        %v1580 = vsub.f32 %v1558, %v1573
        %v1581 = vsub.f32 %v1561, %v1576
        %v1582 = vsub.f32 %v1566, %v1579
        %v1583 = vmul.f32 %v1580, 1.442695
        %v1584 = vpow.pop %v1583
        %v1585 = vmul.f32 %v1581, 1.442695
        %v1586 = vpow.pop %v1585
        %v1587 = vmul.f32 %v1582, 1.442695
        %v1588 = vpow.pop %v1587
        %v1589 = vsel %vm1168, %v1584, 0.0
        %1590 = vadd.xlane.f32.xlu0 %v1589
        %v1591 = vpop.xlane.xlu0 %1590
        %v1592 = vsel %vm1168, %v1586, 0.0
        %1593 = vadd.xlane.f32.xlu0 %v1592
        %v1594 = vpop.xlane.xlu0 %1593
        %v1595 = vsel %vm1168, %v1588, 0.0
        %1596 = vadd.xlane.f32.xlu0 %v1595
        %v1597 = vpop.xlane.xlu0 %1596
        %v1598 = vrcp.pop %v1591
        %v1599 = vrcp.pop %v1594
        %v1600 = vrcp.pop %v1597
        %v1601 = vmul.f32 %v1584, %v1598
        %v1602 = vmul.f32 %v1586, %v1599
        %v1603 = vmul.f32 %v1588, %v1600
        %v1604 = vpack.c.bf16 %v1602, %v1601
        %v1605 = vpack.c.bf16 %v1603, %v1603
        %1606 = vrot.lane.b32.xlu0 %v1106, 48
        %v1607 = vpop.permute.xlu0 %1606
        %1608 = vrot.lane.b32.xlu0 %v1107, 48
        %v1609 = vpop.permute.xlu0 %1608
        %v1612 = vsel %vm1168, %v1604, 0
        %v1615 = vsel %vm1168, %v1605, 0
        %v1618 = vsel %vm1116, %v1609, 0
        %1620 = vmatprep.subr.bf16.mxu0 0
        %1621 = vmatpush1.bf16.msra.mxu0 0
        %1622 = vmatprep.subr.bf16.mxu0 0
        %1623 = vmatpush1.bf16.msra.mxu0 0
        %1624 = vmatprep.subr.bf16.mxu0 0
        %1625 = vmatpush1.bf16.msra.mxu0 0
        %1626 = vmatprep.subr.bf16.mxu0 0
        %1627 = vmatpush1.bf16.msra.mxu0 0
        %1628 = vmatprep.subr.bf16.mxu0 0
        %1629 = vmatpush1.bf16.msra.mxu0 0
        %1630 = vmatprep.subr.bf16.mxu0 0
        %1631 = vmatpush1.bf16.msra.mxu0 0
        %1632 = vmatprep.subr.bf16.mxu0 0
        %1633 = vmatpush1.bf16.msra.mxu0 %v1618
        %1634 = vmatprep.subr.bf16.mxu0 0
        %1635 = vmatpush1.bf16.msra.mxu0 %v1607
        %1636 = vmatprep.subr.bf16.mxu0 0
        %1637 = vmatpush2.bf16.msra.mxu0 0
        %1638 = vmatprep.subr.bf16.mxu0 0
        %1639 = vmatpush2.bf16.msra.mxu0 0
        %1640 = vmatprep.subr.bf16.mxu0 0
        %1641 = vmatpush2.bf16.msra.mxu0 0
        %1642 = vmatprep.subr.bf16.mxu0 0
        %1643 = vmatpush2.bf16.msra.mxu0 0
        %1644 = vmatprep.subr.bf16.mxu0 0
        %1645 = vmatpush2.bf16.msra.mxu0 0
        %1646 = vmatprep.subr.bf16.mxu0 0
        %1647 = vmatpush2.bf16.msra.mxu0 0
        %1648 = vmatprep.subr.bf16.mxu0 0
        %1649 = vmatpush2.bf16.msra.mxu0 0
        %1650 = vmatprep.subr.bf16.mxu0 0
        %1651 = vmatpush2.bf16.msra.mxu0 0
        %1652 = vmatprep.mubr.bf16.mxu0 0
        %1653 = vmatmul.mubr.bf16.gmra.mxu0 %v1612
        %v1654 = vpop.f32.mrf.mxu0
        %v1655 = vadd.f32 0.0, %v1654
        %v1656 = vpop.f32.mrf.mxu0
        %v1657 = vpop.f32.mrf.mxu0
        %v1658 = vadd.f32 0.0, %v1657
        %v1659 = vpop.f32.mrf.mxu0
        %1660 = vmatprep.mubr.bf16.mxu0 0
        %1661 = vmatmul.mubr.bf16.gmra.mxu0 %v1615
        %v1662 = vpop.f32.mrf.mxu0
        %v1663 = vadd.f32 0.0, %v1662
        %v1664 = vpop.f32.mrf.mxu0
        %v1665 = vpop.f32.mrf.mxu0
        %v1666 = vpop.f32.mrf.mxu0
        %1667 = vdwg.mxu0
        %1668 = vrot.lane.b32.xlu0 %v1040, 72
        %v1669 = vpop.permute.xlu0 %1668
        %1670 = vrot.lane.b32.xlu0 %v1043, 72
        %v1671 = vpop.permute.xlu0 %1670
        %1672 = vrot.lane.b32.xlu0 %v1048, 72
        %v1673 = vpop.permute.xlu0 %1672
        %1677 = vxpose.xlu0.b32.start [1/16] %v1669, 128
        %1678 = vxpose.xlu0.b32.cont [2/16] %v1671, 128
        %1679 = vxpose.xlu0.b32.cont [3/16] %v1673, 128
        %1680 = vxpose.xlu0.b32.cont [4/16] 0.0, 128
        %1681 = vxpose.xlu0.b32.cont [5/16] 0.0, 128
        %1682 = vxpose.xlu0.b32.cont [6/16] 0.0, 128
        %1683 = vxpose.xlu0.b32.cont [7/16] 0.0, 128
        %1684 = vxpose.xlu0.b32.cont [8/16] 0.0, 128
        %1685 = vxpose.xlu0.b32.cont [9/16] 0.0, 128
        %1686 = vxpose.xlu0.b32.cont [10/16] 0.0, 128
        %1687 = vxpose.xlu0.b32.cont [11/16] 0.0, 128
        %1688 = vxpose.xlu0.b32.cont [12/16] 0.0, 128
        %1689 = vxpose.xlu0.b32.cont [13/16] 0.0, 128
        %1690 = vxpose.xlu0.b32.cont [14/16] 0.0, 128
        %1691 = vxpose.xlu0.b32.cont [15/16] 0.0, 128
        %1692 = vxpose.xlu0.b32.end [16/16] 0.0, 128
        %v1693 = vpop.trf.xlu0
        %v1694 = vpop.trf.xlu0
        %v1695 = vpop.trf.xlu0
        %v1696 = vpop.trf.xlu0
        %v1697 = vpop.trf.xlu0
        %v1698 = vpop.trf.xlu0
        %v1699 = vpop.trf.xlu0
        %v1700 = vpop.trf.xlu0
        %v1701 = vpop.trf.xlu0
        %v1702 = vpop.trf.xlu0
        %v1703 = vpop.trf.xlu0
        %v1704 = vpop.trf.xlu0
        %v1705 = vpop.trf.xlu0
        %v1706 = vpop.trf.xlu0
        %v1707 = vpop.trf.xlu0
        %v1708 = vpop.trf.xlu0
        %v1709 = vpack.c.bf16 %v1693, %v1693
        %1710 = vrot.lane.b32.xlu0 %v1106, 104
        %v1711 = vpop.permute.xlu0 %1710
        %1712 = vrot.lane.b32.xlu0 %v1107, 104
        %v1713 = vpop.permute.xlu0 %1712
        %v1715 = vsel %vm1109, %v1711, 0
        %v1718 = vsel %vm1109, %v1713, 0
        %v1721 = vsel %vm1116, %v1709, 0
        %1723 = vmatprep.subr.bf16.mxu0 0
        %1724 = vmatpush1.bf16.msra.mxu0 0
        %1725 = vmatprep.subr.bf16.mxu0 0
        %1726 = vmatpush1.bf16.msra.mxu0 0
        %1727 = vmatprep.subr.bf16.mxu0 0
        %1728 = vmatpush1.bf16.msra.mxu0 0
        %1729 = vmatprep.subr.bf16.mxu0 0
        %1730 = vmatpush1.bf16.msra.mxu0 0
        %1731 = vmatprep.subr.bf16.mxu0 0
        %1732 = vmatpush1.bf16.msra.mxu0 0
        %1733 = vmatprep.subr.bf16.mxu0 0
        %1734 = vmatpush1.bf16.msra.mxu0 0
        %1735 = vmatprep.subr.bf16.mxu0 0
        %1736 = vmatpush1.bf16.msra.mxu0 0
        %1737 = vmatprep.subr.bf16.mxu0 0
        %1738 = vmatpush1.bf16.msra.mxu0 %v1721
        %1739 = vmatprep.subr.bf16.mxu0 0
        %1740 = vmatpush2.bf16.msra.mxu0 0
        %1741 = vmatprep.subr.bf16.mxu0 0
        %1742 = vmatpush2.bf16.msra.mxu0 0
        %1743 = vmatprep.subr.bf16.mxu0 0
        %1744 = vmatpush2.bf16.msra.mxu0 0
        %1745 = vmatprep.subr.bf16.mxu0 0
        %1746 = vmatpush2.bf16.msra.mxu0 0
        %1747 = vmatprep.subr.bf16.mxu0 0
        %1748 = vmatpush2.bf16.msra.mxu0 0
        %1749 = vmatprep.subr.bf16.mxu0 0
        %1750 = vmatpush2.bf16.msra.mxu0 0
        %1751 = vmatprep.subr.bf16.mxu0 0
        %1752 = vmatpush2.bf16.msra.mxu0 0
        %1753 = vmatprep.subr.bf16.mxu0 0
        %1754 = vmatpush2.bf16.msra.mxu0 0
        %1755 = vmatprep.mubr.bf16.mxu0 0
        %1756 = vmatmul.mubr.bf16.gmra.mxu0 %v1715
        %v1757 = vpop.f32.mrf.mxu0
        %v1758 = vadd.f32 %v870, %v1757
        %v1759 = vpop.f32.mrf.mxu0
        %v1760 = vpop.f32.mrf.mxu0
        %v1761 = vadd.f32 %v870, %v1760
        %v1762 = vpop.f32.mrf.mxu0
        %1763 = vmatprep.mubr.bf16.mxu0 0
        %1764 = vmatmul.mubr.bf16.gmra.mxu0 %v1718
        %v1765 = vpop.f32.mrf.mxu0
        %v1766 = vadd.f32 %v870, %v1765
        %v1767 = vpop.f32.mrf.mxu0
        %v1768 = vpop.f32.mrf.mxu0
        %v1769 = vpop.f32.mrf.mxu0
        %1770 = vdwg.mxu0
        %v1771 = vsel %vm1168, %v1758, -inf
        %1772 = vmax.xlane.f32.xlu0 %v1771
        %v1773 = vpop.xlane.xlu0 %1772
        %v1774 = vsel %vm1168, %v1761, -inf
        %1775 = vmax.xlane.f32.xlu0 %v1774
        %v1776 = vpop.xlane.xlu0 %1775
        %v1777 = vsel %vm1168, %v1766, -inf
        %1778 = vmax.xlane.f32.xlu0 %v1777
        %v1779 = vpop.xlane.xlu0 %1778
        %v1780 = vsub.f32 %v1758, %v1773
        %v1781 = vsub.f32 %v1761, %v1776
        %v1782 = vsub.f32 %v1766, %v1779
        %v1783 = vmul.f32 %v1780, 1.442695
        %v1784 = vpow.pop %v1783
        %v1785 = vmul.f32 %v1781, 1.442695
        %v1786 = vpow.pop %v1785
        %v1787 = vmul.f32 %v1782, 1.442695
        %v1788 = vpow.pop %v1787
        %v1789 = vsel %vm1168, %v1784, 0.0
        %1790 = vadd.xlane.f32.xlu0 %v1789
        %v1791 = vpop.xlane.xlu0 %1790
        %v1792 = vsel %vm1168, %v1786, 0.0
        %1793 = vadd.xlane.f32.xlu0 %v1792
        %v1794 = vpop.xlane.xlu0 %1793
        %v1795 = vsel %vm1168, %v1788, 0.0
        %1796 = vadd.xlane.f32.xlu0 %v1795
        %v1797 = vpop.xlane.xlu0 %1796
        %v1798 = vrcp.pop %v1791
        %v1799 = vrcp.pop %v1794
        %v1800 = vrcp.pop %v1797
        %v1801 = vmul.f32 %v1784, %v1798
        %v1802 = vmul.f32 %v1786, %v1799
        %v1803 = vmul.f32 %v1788, %v1800
        %v1804 = vpack.c.bf16 %v1802, %v1801
        %v1805 = vpack.c.bf16 %v1803, %v1803
        %1806 = vrot.lane.b32.xlu0 %v1106, 40
        %v1807 = vpop.permute.xlu0 %1806
        %1808 = vrot.lane.b32.xlu0 %v1107, 40
        %v1809 = vpop.permute.xlu0 %1808
        %v1812 = vsel %vm1168, %v1804, 0
        %v1815 = vsel %vm1168, %v1805, 0
        %v1818 = vsel %vm1116, %v1809, 0
        %1820 = vmatprep.subr.bf16.mxu0 0
        %1821 = vmatpush1.bf16.msra.mxu0 0
        %1822 = vmatprep.subr.bf16.mxu0 0
        %1823 = vmatpush1.bf16.msra.mxu0 0
        %1824 = vmatprep.subr.bf16.mxu0 0
        %1825 = vmatpush1.bf16.msra.mxu0 0
        %1826 = vmatprep.subr.bf16.mxu0 0
        %1827 = vmatpush1.bf16.msra.mxu0 0
        %1828 = vmatprep.subr.bf16.mxu0 0
        %1829 = vmatpush1.bf16.msra.mxu0 0
        %1830 = vmatprep.subr.bf16.mxu0 0
        %1831 = vmatpush1.bf16.msra.mxu0 0
        %1832 = vmatprep.subr.bf16.mxu0 0
        %1833 = vmatpush1.bf16.msra.mxu0 %v1818
        %1834 = vmatprep.subr.bf16.mxu0 0
        %1835 = vmatpush1.bf16.msra.mxu0 %v1807
        %1836 = vmatprep.subr.bf16.mxu0 0
        %1837 = vmatpush2.bf16.msra.mxu0 0
        %1838 = vmatprep.subr.bf16.mxu0 0
        %1839 = vmatpush2.bf16.msra.mxu0 0
        %1840 = vmatprep.subr.bf16.mxu0 0
        %1841 = vmatpush2.bf16.msra.mxu0 0
        %1842 = vmatprep.subr.bf16.mxu0 0
        %1843 = vmatpush2.bf16.msra.mxu0 0
        %1844 = vmatprep.subr.bf16.mxu0 0
        %1845 = vmatpush2.bf16.msra.mxu0 0
        %1846 = vmatprep.subr.bf16.mxu0 0
        %1847 = vmatpush2.bf16.msra.mxu0 0
        %1848 = vmatprep.subr.bf16.mxu0 0
        %1849 = vmatpush2.bf16.msra.mxu0 0
        %1850 = vmatprep.subr.bf16.mxu0 0
        %1851 = vmatpush2.bf16.msra.mxu0 0
        %1852 = vmatprep.mubr.bf16.mxu0 0
        %1853 = vmatmul.mubr.bf16.gmra.mxu0 %v1812
        %v1854 = vpop.f32.mrf.mxu0
        %v1855 = vadd.f32 0.0, %v1854
        %v1856 = vpop.f32.mrf.mxu0
        %v1857 = vpop.f32.mrf.mxu0
        %v1858 = vadd.f32 0.0, %v1857
        %v1859 = vpop.f32.mrf.mxu0
        %1860 = vmatprep.mubr.bf16.mxu0 0
        %1861 = vmatmul.mubr.bf16.gmra.mxu0 %v1815
        %v1862 = vpop.f32.mrf.mxu0
        %v1863 = vadd.f32 0.0, %v1862
        %v1864 = vpop.f32.mrf.mxu0
        %v1865 = vpop.f32.mrf.mxu0
        %v1866 = vpop.f32.mrf.mxu0
        %1867 = vdwg.mxu0
        %1871 = vrot.lane.b32.xlu0 %v1455, 8
        %v1872 = vpop.permute.xlu0 %1871
        %1873 = vrot.lane.b32.xlu0 %v1458, 8
        %v1874 = vpop.permute.xlu0 %1873
        %1875 = vrot.lane.b32.xlu0 %v1463, 8
        %v1876 = vpop.permute.xlu0 %1875
        %1883 = vrot.lane.b32.xlu0 %v1655, 16
        %v1884 = vpop.permute.xlu0 %1883
        %1885 = vrot.lane.b32.xlu0 %v1658, 16
        %v1886 = vpop.permute.xlu0 %1885
        %1887 = vrot.lane.b32.xlu0 %v1663, 16
        %v1888 = vpop.permute.xlu0 %1887
        %1895 = vrot.lane.b32.xlu0 %v1855, 24
        %v1896 = vpop.permute.xlu0 %1895
        %1897 = vrot.lane.b32.xlu0 %v1858, 24
        %v1898 = vpop.permute.xlu0 %1897
        %1899 = vrot.lane.b32.xlu0 %v1863, 24
        %v1900 = vpop.permute.xlu0 %1899
        %v1904 = vsel %vm1109, %v1255, %v1872
        %v1905 = vsel %vm1109, %v1258, %v1874
        %v1906 = vsel %vm1109, %v1263, %v1876
        %vm1907 = vcmask 130048
        %v1908 = vsel %vm1907, %v1904, %v1884
        %v1909 = vsel %vm1907, %v1905, %v1886
        %v1910 = vsel %vm1907, %v1906, %v1888
        %v1911 = vsel %vm1168, %v1908, %v1896
        %v1912 = vsel %vm1168, %v1909, %v1898
        %v1913 = vsel %vm1168, %v1910, %v1900
        %1917 = vrot.lane.b32.xlu0 %v1051, 96
        %v1918 = vpop.permute.xlu0 %1917
        %1919 = vrot.lane.b32.xlu0 %v1056, 96
        %v1920 = vpop.permute.xlu0 %1919
        %1921 = vrot.lane.b32.xlu0 %v1059, 96
        %v1922 = vpop.permute.xlu0 %1921
        %1926 = vxpose.xlu0.b32.start [1/16] %v1918, 128
        %1927 = vxpose.xlu0.b32.cont [2/16] %v1920, 128
        %1928 = vxpose.xlu0.b32.cont [3/16] %v1922, 128
        %1929 = vxpose.xlu0.b32.cont [4/16] 0.0, 128
        %1930 = vxpose.xlu0.b32.cont [5/16] 0.0, 128
        %1931 = vxpose.xlu0.b32.cont [6/16] 0.0, 128
        %1932 = vxpose.xlu0.b32.cont [7/16] 0.0, 128
        %1933 = vxpose.xlu0.b32.cont [8/16] 0.0, 128
        %1934 = vxpose.xlu0.b32.cont [9/16] 0.0, 128
        %1935 = vxpose.xlu0.b32.cont [10/16] 0.0, 128
        %1936 = vxpose.xlu0.b32.cont [11/16] 0.0, 128
        %1937 = vxpose.xlu0.b32.cont [12/16] 0.0, 128
        %1938 = vxpose.xlu0.b32.cont [13/16] 0.0, 128
        %1939 = vxpose.xlu0.b32.cont [14/16] 0.0, 128
        %1940 = vxpose.xlu0.b32.cont [15/16] 0.0, 128
        %1941 = vxpose.xlu0.b32.end [16/16] 0.0, 128
        %v1942 = vpop.trf.xlu0
        %v1943 = vpop.trf.xlu0
        %v1944 = vpop.trf.xlu0
        %v1945 = vpop.trf.xlu0
        %v1946 = vpop.trf.xlu0
        %v1947 = vpop.trf.xlu0
        %v1948 = vpop.trf.xlu0
        %v1949 = vpop.trf.xlu0
        %v1950 = vpop.trf.xlu0
        %v1951 = vpop.trf.xlu0
        %v1952 = vpop.trf.xlu0
        %v1953 = vpop.trf.xlu0
        %v1954 = vpop.trf.xlu0
        %v1955 = vpop.trf.xlu0
        %v1956 = vpop.trf.xlu0
        %v1957 = vpop.trf.xlu0
        %v1958 = vpack.c.bf16 %v1056, %v1051
        %v1959 = vpack.c.bf16 %v1059, %v1059
        %v1960 = vpack.c.bf16 %v1942, %v1942
        %v1962 = vsel %vm1109, %v1958, 0
        %v1965 = vsel %vm1109, %v1959, 0
        %v1968 = vsel %vm1116, %v1960, 0
        %1970 = vmatprep.subr.bf16.mxu0 0
        %1971 = vmatpush1.bf16.msra.mxu0 0
        %1972 = vmatprep.subr.bf16.mxu0 0
        %1973 = vmatpush1.bf16.msra.mxu0 0
        %1974 = vmatprep.subr.bf16.mxu0 0
        %1975 = vmatpush1.bf16.msra.mxu0 0
        %1976 = vmatprep.subr.bf16.mxu0 0
        %1977 = vmatpush1.bf16.msra.mxu0 0
        %1978 = vmatprep.subr.bf16.mxu0 0
        %1979 = vmatpush1.bf16.msra.mxu0 0
        %1980 = vmatprep.subr.bf16.mxu0 0
        %1981 = vmatpush1.bf16.msra.mxu0 0
        %1982 = vmatprep.subr.bf16.mxu0 0
        %1983 = vmatpush1.bf16.msra.mxu0 0
        %1984 = vmatprep.subr.bf16.mxu0 0
        %1985 = vmatpush1.bf16.msra.mxu0 %v1968
        %1986 = vmatprep.subr.bf16.mxu0 0
        %1987 = vmatpush2.bf16.msra.mxu0 0
        %1988 = vmatprep.subr.bf16.mxu0 0
        %1989 = vmatpush2.bf16.msra.mxu0 0
        %1990 = vmatprep.subr.bf16.mxu0 0
        %1991 = vmatpush2.bf16.msra.mxu0 0
        %1992 = vmatprep.subr.bf16.mxu0 0
        %1993 = vmatpush2.bf16.msra.mxu0 0
        %1994 = vmatprep.subr.bf16.mxu0 0
        %1995 = vmatpush2.bf16.msra.mxu0 0
        %1996 = vmatprep.subr.bf16.mxu0 0
        %1997 = vmatpush2.bf16.msra.mxu0 0
        %1998 = vmatprep.subr.bf16.mxu0 0
        %1999 = vmatpush2.bf16.msra.mxu0 0
        %2000 = vmatprep.subr.bf16.mxu0 0
        %2001 = vmatpush2.bf16.msra.mxu0 0
        %2002 = vmatprep.mubr.bf16.mxu0 0
        %2003 = vmatmul.mubr.bf16.gmra.mxu0 %v1962
        %v2004 = vpop.f32.mrf.mxu0
        %v2005 = vadd.f32 %v870, %v2004
        %v2006 = vpop.f32.mrf.mxu0
        %v2007 = vpop.f32.mrf.mxu0
        %v2008 = vadd.f32 %v870, %v2007
        %v2009 = vpop.f32.mrf.mxu0
        %2010 = vmatprep.mubr.bf16.mxu0 0
        %2011 = vmatmul.mubr.bf16.gmra.mxu0 %v1965
        %v2012 = vpop.f32.mrf.mxu0
        %v2013 = vadd.f32 %v870, %v2012
        %v2014 = vpop.f32.mrf.mxu0
        %v2015 = vpop.f32.mrf.mxu0
        %v2016 = vpop.f32.mrf.mxu0
        %2017 = vdwg.mxu0
        %v2018 = vsel %vm1168, %v2005, -inf
        %2019 = vmax.xlane.f32.xlu0 %v2018
        %v2020 = vpop.xlane.xlu0 %2019
        %v2021 = vsel %vm1168, %v2008, -inf
        %2022 = vmax.xlane.f32.xlu0 %v2021
        %v2023 = vpop.xlane.xlu0 %2022
        %v2024 = vsel %vm1168, %v2013, -inf
        %2025 = vmax.xlane.f32.xlu0 %v2024
        %v2026 = vpop.xlane.xlu0 %2025
        %v2027 = vsub.f32 %v2005, %v2020
        %v2028 = vsub.f32 %v2008, %v2023
        %v2029 = vsub.f32 %v2013, %v2026
        %v2030 = vmul.f32 %v2027, 1.442695
        %v2031 = vpow.pop %v2030
        %v2032 = vmul.f32 %v2028, 1.442695
        %v2033 = vpow.pop %v2032
        %v2034 = vmul.f32 %v2029, 1.442695
        %v2035 = vpow.pop %v2034
        %v2036 = vsel %vm1168, %v2031, 0.0
        %2037 = vadd.xlane.f32.xlu0 %v2036
        %v2038 = vpop.xlane.xlu0 %2037
        %v2039 = vsel %vm1168, %v2033, 0.0
        %2040 = vadd.xlane.f32.xlu0 %v2039
        %v2041 = vpop.xlane.xlu0 %2040
        %v2042 = vsel %vm1168, %v2035, 0.0
        %2043 = vadd.xlane.f32.xlu0 %v2042
        %v2044 = vpop.xlane.xlu0 %2043
        %v2045 = vrcp.pop %v2038
        %v2046 = vrcp.pop %v2041
        %v2047 = vrcp.pop %v2044
        %v2048 = vmul.f32 %v2031, %v2045
        %v2049 = vmul.f32 %v2033, %v2046
        %v2050 = vmul.f32 %v2035, %v2047
        %v2051 = vpack.c.bf16 %v2049, %v2048
        %v2052 = vpack.c.bf16 %v2050, %v2050
        %2055 = vrot.lane.b32.xlu0 %v1958, 64
        %v2056 = vpop.permute.xlu0 %2055
        %2057 = vrot.lane.b32.xlu0 %v1959, 64
        %v2058 = vpop.permute.xlu0 %2057
        %v2061 = vsel %vm1168, %v2051, 0
        %v2064 = vsel %vm1168, %v2052, 0
        %v2067 = vsel %vm1116, %v2058, 0
        %2069 = vmatprep.subr.bf16.mxu0 0
        %2070 = vmatpush1.bf16.msra.mxu0 0
        %2071 = vmatprep.subr.bf16.mxu0 0
        %2072 = vmatpush1.bf16.msra.mxu0 0
        %2073 = vmatprep.subr.bf16.mxu0 0
        %2074 = vmatpush1.bf16.msra.mxu0 0
        %2075 = vmatprep.subr.bf16.mxu0 0
        %2076 = vmatpush1.bf16.msra.mxu0 0
        %2077 = vmatprep.subr.bf16.mxu0 0
        %2078 = vmatpush1.bf16.msra.mxu0 0
        %2079 = vmatprep.subr.bf16.mxu0 0
        %2080 = vmatpush1.bf16.msra.mxu0 0
        %2081 = vmatprep.subr.bf16.mxu0 0
        %2082 = vmatpush1.bf16.msra.mxu0 %v2067
        %2083 = vmatprep.subr.bf16.mxu0 0
        %2084 = vmatpush1.bf16.msra.mxu0 %v2056
        %2085 = vmatprep.subr.bf16.mxu0 0
        %2086 = vmatpush2.bf16.msra.mxu0 0
        %2087 = vmatprep.subr.bf16.mxu0 0
        %2088 = vmatpush2.bf16.msra.mxu0 0
        %2089 = vmatprep.subr.bf16.mxu0 0
        %2090 = vmatpush2.bf16.msra.mxu0 0
        %2091 = vmatprep.subr.bf16.mxu0 0
        %2092 = vmatpush2.bf16.msra.mxu0 0
        %2093 = vmatprep.subr.bf16.mxu0 0
        %2094 = vmatpush2.bf16.msra.mxu0 0
        %2095 = vmatprep.subr.bf16.mxu0 0
        %2096 = vmatpush2.bf16.msra.mxu0 0
        %2097 = vmatprep.subr.bf16.mxu0 0
        %2098 = vmatpush2.bf16.msra.mxu0 0
        %2099 = vmatprep.subr.bf16.mxu0 0
        %2100 = vmatpush2.bf16.msra.mxu0 0
        %2101 = vmatprep.mubr.bf16.mxu0 0
        %2102 = vmatmul.mubr.bf16.gmra.mxu0 %v2061
        %v2103 = vpop.f32.mrf.mxu0
        %v2104 = vadd.f32 0.0, %v2103
        %v2105 = vpop.f32.mrf.mxu0
        %v2106 = vpop.f32.mrf.mxu0
        %v2107 = vadd.f32 0.0, %v2106
        %v2108 = vpop.f32.mrf.mxu0
        %2109 = vmatprep.mubr.bf16.mxu0 0
        %2110 = vmatmul.mubr.bf16.gmra.mxu0 %v2064
        %v2111 = vpop.f32.mrf.mxu0
        %v2112 = vadd.f32 0.0, %v2111
        %v2113 = vpop.f32.mrf.mxu0
        %v2114 = vpop.f32.mrf.mxu0
        %v2115 = vpop.f32.mrf.mxu0
        %2116 = vdwg.mxu0
        %2117 = vrot.lane.b32.xlu0 %v1051, 88
        %v2118 = vpop.permute.xlu0 %2117
        %2119 = vrot.lane.b32.xlu0 %v1056, 88
        %v2120 = vpop.permute.xlu0 %2119
        %2121 = vrot.lane.b32.xlu0 %v1059, 88
        %v2122 = vpop.permute.xlu0 %2121
        %2126 = vxpose.xlu0.b32.start [1/16] %v2118, 128
        %2127 = vxpose.xlu0.b32.cont [2/16] %v2120, 128
        %2128 = vxpose.xlu0.b32.cont [3/16] %v2122, 128
        %2129 = vxpose.xlu0.b32.cont [4/16] 0.0, 128
        %2130 = vxpose.xlu0.b32.cont [5/16] 0.0, 128
        %2131 = vxpose.xlu0.b32.cont [6/16] 0.0, 128
        %2132 = vxpose.xlu0.b32.cont [7/16] 0.0, 128
        %2133 = vxpose.xlu0.b32.cont [8/16] 0.0, 128
        %2134 = vxpose.xlu0.b32.cont [9/16] 0.0, 128
        %2135 = vxpose.xlu0.b32.cont [10/16] 0.0, 128
        %2136 = vxpose.xlu0.b32.cont [11/16] 0.0, 128
        %2137 = vxpose.xlu0.b32.cont [12/16] 0.0, 128
        %2138 = vxpose.xlu0.b32.cont [13/16] 0.0, 128
        %2139 = vxpose.xlu0.b32.cont [14/16] 0.0, 128
        %2140 = vxpose.xlu0.b32.cont [15/16] 0.0, 128
        %2141 = vxpose.xlu0.b32.end [16/16] 0.0, 128
        %v2142 = vpop.trf.xlu0
        %v2143 = vpop.trf.xlu0
        %v2144 = vpop.trf.xlu0
        %v2145 = vpop.trf.xlu0
        %v2146 = vpop.trf.xlu0
        %v2147 = vpop.trf.xlu0
        %v2148 = vpop.trf.xlu0
        %v2149 = vpop.trf.xlu0
        %v2150 = vpop.trf.xlu0
        %v2151 = vpop.trf.xlu0
        %v2152 = vpop.trf.xlu0
        %v2153 = vpop.trf.xlu0
        %v2154 = vpop.trf.xlu0
        %v2155 = vpop.trf.xlu0
        %v2156 = vpop.trf.xlu0
        %v2157 = vpop.trf.xlu0
        %v2158 = vpack.c.bf16 %v2142, %v2142
        %2159 = vrot.lane.b32.xlu0 %v1958, 120
        %v2160 = vpop.permute.xlu0 %2159
        %2161 = vrot.lane.b32.xlu0 %v1959, 120
        %v2162 = vpop.permute.xlu0 %2161
        %v2164 = vsel %vm1109, %v2160, 0
        %v2167 = vsel %vm1109, %v2162, 0
        %v2170 = vsel %vm1116, %v2158, 0
        %2172 = vmatprep.subr.bf16.mxu0 0
        %2173 = vmatpush1.bf16.msra.mxu0 0
        %2174 = vmatprep.subr.bf16.mxu0 0
        %2175 = vmatpush1.bf16.msra.mxu0 0
        %2176 = vmatprep.subr.bf16.mxu0 0
        %2177 = vmatpush1.bf16.msra.mxu0 0
        %2178 = vmatprep.subr.bf16.mxu0 0
        %2179 = vmatpush1.bf16.msra.mxu0 0
        %2180 = vmatprep.subr.bf16.mxu0 0
        %2181 = vmatpush1.bf16.msra.mxu0 0
        %2182 = vmatprep.subr.bf16.mxu0 0
        %2183 = vmatpush1.bf16.msra.mxu0 0
        %2184 = vmatprep.subr.bf16.mxu0 0
        %2185 = vmatpush1.bf16.msra.mxu0 0
        %2186 = vmatprep.subr.bf16.mxu0 0
        %2187 = vmatpush1.bf16.msra.mxu0 %v2170
        %2188 = vmatprep.subr.bf16.mxu0 0
        %2189 = vmatpush2.bf16.msra.mxu0 0
        %2190 = vmatprep.subr.bf16.mxu0 0
        %2191 = vmatpush2.bf16.msra.mxu0 0
        %2192 = vmatprep.subr.bf16.mxu0 0
        %2193 = vmatpush2.bf16.msra.mxu0 0
        %2194 = vmatprep.subr.bf16.mxu0 0
        %2195 = vmatpush2.bf16.msra.mxu0 0
        %2196 = vmatprep.subr.bf16.mxu0 0
        %2197 = vmatpush2.bf16.msra.mxu0 0
        %2198 = vmatprep.subr.bf16.mxu0 0
        %2199 = vmatpush2.bf16.msra.mxu0 0
        %2200 = vmatprep.subr.bf16.mxu0 0
        %2201 = vmatpush2.bf16.msra.mxu0 0
        %2202 = vmatprep.subr.bf16.mxu0 0
        %2203 = vmatpush2.bf16.msra.mxu0 0
        %2204 = vmatprep.mubr.bf16.mxu0 0
        %2205 = vmatmul.mubr.bf16.gmra.mxu0 %v2164
        %v2206 = vpop.f32.mrf.mxu0
        %v2207 = vadd.f32 %v870, %v2206
        %v2208 = vpop.f32.mrf.mxu0
        %v2209 = vpop.f32.mrf.mxu0
        %v2210 = vadd.f32 %v870, %v2209
        %v2211 = vpop.f32.mrf.mxu0
        %2212 = vmatprep.mubr.bf16.mxu0 0
        %2213 = vmatmul.mubr.bf16.gmra.mxu0 %v2167
        %v2214 = vpop.f32.mrf.mxu0
        %v2215 = vadd.f32 %v870, %v2214
        %v2216 = vpop.f32.mrf.mxu0
        %v2217 = vpop.f32.mrf.mxu0
        %v2218 = vpop.f32.mrf.mxu0
        %2219 = vdwg.mxu0
        %v2220 = vsel %vm1168, %v2207, -inf
        %2221 = vmax.xlane.f32.xlu0 %v2220
        %v2222 = vpop.xlane.xlu0 %2221
        %v2223 = vsel %vm1168, %v2210, -inf
        %2224 = vmax.xlane.f32.xlu0 %v2223
        %v2225 = vpop.xlane.xlu0 %2224
        %v2226 = vsel %vm1168, %v2215, -inf
        %2227 = vmax.xlane.f32.xlu0 %v2226
        %v2228 = vpop.xlane.xlu0 %2227
        %v2229 = vsub.f32 %v2207, %v2222
        %v2230 = vsub.f32 %v2210, %v2225
        %v2231 = vsub.f32 %v2215, %v2228
        %v2232 = vmul.f32 %v2229, 1.442695
        %v2233 = vpow.pop %v2232
        %v2234 = vmul.f32 %v2230, 1.442695
        %v2235 = vpow.pop %v2234
        %v2236 = vmul.f32 %v2231, 1.442695
        %v2237 = vpow.pop %v2236
        %v2238 = vsel %vm1168, %v2233, 0.0
        %2239 = vadd.xlane.f32.xlu0 %v2238
        %v2240 = vpop.xlane.xlu0 %2239
        %v2241 = vsel %vm1168, %v2235, 0.0
        %2242 = vadd.xlane.f32.xlu0 %v2241
        %v2243 = vpop.xlane.xlu0 %2242
        %v2244 = vsel %vm1168, %v2237, 0.0
        %2245 = vadd.xlane.f32.xlu0 %v2244
        %v2246 = vpop.xlane.xlu0 %2245
        %v2247 = vrcp.pop %v2240
        %v2248 = vrcp.pop %v2243
        %v2249 = vrcp.pop %v2246
        %v2250 = vmul.f32 %v2233, %v2247
        %v2251 = vmul.f32 %v2235, %v2248
        %v2252 = vmul.f32 %v2237, %v2249
        %v2253 = vpack.c.bf16 %v2251, %v2250
        %v2254 = vpack.c.bf16 %v2252, %v2252
        %2255 = vrot.lane.b32.xlu0 %v1958, 56
        %v2256 = vpop.permute.xlu0 %2255
        %2257 = vrot.lane.b32.xlu0 %v1959, 56
        %v2258 = vpop.permute.xlu0 %2257
        %v2261 = vsel %vm1168, %v2253, 0
        %v2264 = vsel %vm1168, %v2254, 0
        %v2267 = vsel %vm1116, %v2258, 0
        %2269 = vmatprep.subr.bf16.mxu0 0
        %2270 = vmatpush1.bf16.msra.mxu0 0
        %2271 = vmatprep.subr.bf16.mxu0 0
        %2272 = vmatpush1.bf16.msra.mxu0 0
        %2273 = vmatprep.subr.bf16.mxu0 0
        %2274 = vmatpush1.bf16.msra.mxu0 0
        %2275 = vmatprep.subr.bf16.mxu0 0
        %2276 = vmatpush1.bf16.msra.mxu0 0
        %2277 = vmatprep.subr.bf16.mxu0 0
        %2278 = vmatpush1.bf16.msra.mxu0 0
        %2279 = vmatprep.subr.bf16.mxu0 0
        %2280 = vmatpush1.bf16.msra.mxu0 0
        %2281 = vmatprep.subr.bf16.mxu0 0
        %2282 = vmatpush1.bf16.msra.mxu0 %v2267
        %2283 = vmatprep.subr.bf16.mxu0 0
        %2284 = vmatpush1.bf16.msra.mxu0 %v2256
        %2285 = vmatprep.subr.bf16.mxu0 0
        %2286 = vmatpush2.bf16.msra.mxu0 0
        %2287 = vmatprep.subr.bf16.mxu0 0
        %2288 = vmatpush2.bf16.msra.mxu0 0
        %2289 = vmatprep.subr.bf16.mxu0 0
        %2290 = vmatpush2.bf16.msra.mxu0 0
        %2291 = vmatprep.subr.bf16.mxu0 0
        %2292 = vmatpush2.bf16.msra.mxu0 0
        %2293 = vmatprep.subr.bf16.mxu0 0
        %2294 = vmatpush2.bf16.msra.mxu0 0
        %2295 = vmatprep.subr.bf16.mxu0 0
        %2296 = vmatpush2.bf16.msra.mxu0 0
        %2297 = vmatprep.subr.bf16.mxu0 0
        %2298 = vmatpush2.bf16.msra.mxu0 0
        %2299 = vmatprep.subr.bf16.mxu0 0
        %2300 = vmatpush2.bf16.msra.mxu0 0
        %2301 = vmatprep.mubr.bf16.mxu0 0
        %2302 = vmatmul.mubr.bf16.gmra.mxu0 %v2261
        %v2303 = vpop.f32.mrf.mxu0
        %v2304 = vadd.f32 0.0, %v2303
        %v2305 = vpop.f32.mrf.mxu0
        %v2306 = vpop.f32.mrf.mxu0
        %v2307 = vadd.f32 0.0, %v2306
        %v2308 = vpop.f32.mrf.mxu0
        %2309 = vmatprep.mubr.bf16.mxu0 0
        %2310 = vmatmul.mubr.bf16.gmra.mxu0 %v2264
        %v2311 = vpop.f32.mrf.mxu0
        %v2312 = vadd.f32 0.0, %v2311
        %v2313 = vpop.f32.mrf.mxu0
        %v2314 = vpop.f32.mrf.mxu0
        %v2315 = vpop.f32.mrf.mxu0
        %2316 = vdwg.mxu0
        %2317 = vrot.lane.b32.xlu0 %v1051, 80
        %v2318 = vpop.permute.xlu0 %2317
        %2319 = vrot.lane.b32.xlu0 %v1056, 80
        %v2320 = vpop.permute.xlu0 %2319
        %2321 = vrot.lane.b32.xlu0 %v1059, 80
        %v2322 = vpop.permute.xlu0 %2321
        %2326 = vxpose.xlu0.b32.start [1/16] %v2318, 128
        %2327 = vxpose.xlu0.b32.cont [2/16] %v2320, 128
        %2328 = vxpose.xlu0.b32.cont [3/16] %v2322, 128
        %2329 = vxpose.xlu0.b32.cont [4/16] 0.0, 128
        %2330 = vxpose.xlu0.b32.cont [5/16] 0.0, 128
        %2331 = vxpose.xlu0.b32.cont [6/16] 0.0, 128
        %2332 = vxpose.xlu0.b32.cont [7/16] 0.0, 128
        %2333 = vxpose.xlu0.b32.cont [8/16] 0.0, 128
        %2334 = vxpose.xlu0.b32.cont [9/16] 0.0, 128
        %2335 = vxpose.xlu0.b32.cont [10/16] 0.0, 128
        %2336 = vxpose.xlu0.b32.cont [11/16] 0.0, 128
        %2337 = vxpose.xlu0.b32.cont [12/16] 0.0, 128
        %2338 = vxpose.xlu0.b32.cont [13/16] 0.0, 128
        %2339 = vxpose.xlu0.b32.cont [14/16] 0.0, 128
        %2340 = vxpose.xlu0.b32.cont [15/16] 0.0, 128
        %2341 = vxpose.xlu0.b32.end [16/16] 0.0, 128
        %v2342 = vpop.trf.xlu0
        %v2343 = vpop.trf.xlu0
        %v2344 = vpop.trf.xlu0
        %v2345 = vpop.trf.xlu0
        %v2346 = vpop.trf.xlu0
        %v2347 = vpop.trf.xlu0
        %v2348 = vpop.trf.xlu0
        %v2349 = vpop.trf.xlu0
        %v2350 = vpop.trf.xlu0
        %v2351 = vpop.trf.xlu0
        %v2352 = vpop.trf.xlu0
        %v2353 = vpop.trf.xlu0
        %v2354 = vpop.trf.xlu0
        %v2355 = vpop.trf.xlu0
        %v2356 = vpop.trf.xlu0
        %v2357 = vpop.trf.xlu0
        %v2358 = vpack.c.bf16 %v2342, %v2342
        %2359 = vrot.lane.b32.xlu0 %v1958, 112
        %v2360 = vpop.permute.xlu0 %2359
        %2361 = vrot.lane.b32.xlu0 %v1959, 112
        %v2362 = vpop.permute.xlu0 %2361
        %v2364 = vsel %vm1109, %v2360, 0
        %v2367 = vsel %vm1109, %v2362, 0
        %v2370 = vsel %vm1116, %v2358, 0
        %2372 = vmatprep.subr.bf16.mxu0 0
        %2373 = vmatpush1.bf16.msra.mxu0 0
        %2374 = vmatprep.subr.bf16.mxu0 0
        %2375 = vmatpush1.bf16.msra.mxu0 0
        %2376 = vmatprep.subr.bf16.mxu0 0
        %2377 = vmatpush1.bf16.msra.mxu0 0
        %2378 = vmatprep.subr.bf16.mxu0 0
        %2379 = vmatpush1.bf16.msra.mxu0 0
        %2380 = vmatprep.subr.bf16.mxu0 0
        %2381 = vmatpush1.bf16.msra.mxu0 0
        %2382 = vmatprep.subr.bf16.mxu0 0
        %2383 = vmatpush1.bf16.msra.mxu0 0
        %2384 = vmatprep.subr.bf16.mxu0 0
        %2385 = vmatpush1.bf16.msra.mxu0 0
        %2386 = vmatprep.subr.bf16.mxu0 0
        %2387 = vmatpush1.bf16.msra.mxu0 %v2370
        %2388 = vmatprep.subr.bf16.mxu0 0
        %2389 = vmatpush2.bf16.msra.mxu0 0
        %2390 = vmatprep.subr.bf16.mxu0 0
        %2391 = vmatpush2.bf16.msra.mxu0 0
        %2392 = vmatprep.subr.bf16.mxu0 0
        %2393 = vmatpush2.bf16.msra.mxu0 0
        %2394 = vmatprep.subr.bf16.mxu0 0
        %2395 = vmatpush2.bf16.msra.mxu0 0
        %2396 = vmatprep.subr.bf16.mxu0 0
        %2397 = vmatpush2.bf16.msra.mxu0 0
        %2398 = vmatprep.subr.bf16.mxu0 0
        %2399 = vmatpush2.bf16.msra.mxu0 0
        %2400 = vmatprep.subr.bf16.mxu0 0
        %2401 = vmatpush2.bf16.msra.mxu0 0
        %2402 = vmatprep.subr.bf16.mxu0 0
        %2403 = vmatpush2.bf16.msra.mxu0 0
        %2404 = vmatprep.mubr.bf16.mxu0 0
        %2405 = vmatmul.mubr.bf16.gmra.mxu0 %v2364
        %v2406 = vpop.f32.mrf.mxu0
        %v2407 = vadd.f32 %v870, %v2406
        %v2408 = vpop.f32.mrf.mxu0
        %v2409 = vpop.f32.mrf.mxu0
        %v2410 = vadd.f32 %v870, %v2409
        %v2411 = vpop.f32.mrf.mxu0
        %2412 = vmatprep.mubr.bf16.mxu0 0
        %2413 = vmatmul.mubr.bf16.gmra.mxu0 %v2367
        %v2414 = vpop.f32.mrf.mxu0
        %v2415 = vadd.f32 %v870, %v2414
        %v2416 = vpop.f32.mrf.mxu0
        %v2417 = vpop.f32.mrf.mxu0
        %v2418 = vpop.f32.mrf.mxu0
        %2419 = vdwg.mxu0
        %v2420 = vsel %vm1168, %v2407, -inf
        %2421 = vmax.xlane.f32.xlu0 %v2420
        %v2422 = vpop.xlane.xlu0 %2421
        %v2423 = vsel %vm1168, %v2410, -inf
        %2424 = vmax.xlane.f32.xlu0 %v2423
        %v2425 = vpop.xlane.xlu0 %2424
        %v2426 = vsel %vm1168, %v2415, -inf
        %2427 = vmax.xlane.f32.xlu0 %v2426
        %v2428 = vpop.xlane.xlu0 %2427
        %v2429 = vsub.f32 %v2407, %v2422
        %v2430 = vsub.f32 %v2410, %v2425
        %v2431 = vsub.f32 %v2415, %v2428
        %v2432 = vmul.f32 %v2429, 1.442695
        %v2433 = vpow.pop %v2432
        %v2434 = vmul.f32 %v2430, 1.442695
        %v2435 = vpow.pop %v2434
        %v2436 = vmul.f32 %v2431, 1.442695
        %v2437 = vpow.pop %v2436
        %v2438 = vsel %vm1168, %v2433, 0.0
        %2439 = vadd.xlane.f32.xlu0 %v2438
        %v2440 = vpop.xlane.xlu0 %2439
        %v2441 = vsel %vm1168, %v2435, 0.0
        %2442 = vadd.xlane.f32.xlu0 %v2441
        %v2443 = vpop.xlane.xlu0 %2442
        %v2444 = vsel %vm1168, %v2437, 0.0
        %2445 = vadd.xlane.f32.xlu0 %v2444
        %v2446 = vpop.xlane.xlu0 %2445
        %v2447 = vrcp.pop %v2440
        %v2448 = vrcp.pop %v2443
        %v2449 = vrcp.pop %v2446
        %v2450 = vmul.f32 %v2433, %v2447
        %v2451 = vmul.f32 %v2435, %v2448
        %v2452 = vmul.f32 %v2437, %v2449
        %v2453 = vpack.c.bf16 %v2451, %v2450
        %v2454 = vpack.c.bf16 %v2452, %v2452
        %2455 = vrot.lane.b32.xlu0 %v1958, 48
        %v2456 = vpop.permute.xlu0 %2455
        %2457 = vrot.lane.b32.xlu0 %v1959, 48
        %v2458 = vpop.permute.xlu0 %2457
        %v2461 = vsel %vm1168, %v2453, 0
        %v2464 = vsel %vm1168, %v2454, 0
        %v2467 = vsel %vm1116, %v2458, 0
        %2469 = vmatprep.subr.bf16.mxu0 0
        %2470 = vmatpush1.bf16.msra.mxu0 0
        %2471 = vmatprep.subr.bf16.mxu0 0
        %2472 = vmatpush1.bf16.msra.mxu0 0
        %2473 = vmatprep.subr.bf16.mxu0 0
        %2474 = vmatpush1.bf16.msra.mxu0 0
        %2475 = vmatprep.subr.bf16.mxu0 0
        %2476 = vmatpush1.bf16.msra.mxu0 0
        %2477 = vmatprep.subr.bf16.mxu0 0
        %2478 = vmatpush1.bf16.msra.mxu0 0
        %2479 = vmatprep.subr.bf16.mxu0 0
        %2480 = vmatpush1.bf16.msra.mxu0 0
        %2481 = vmatprep.subr.bf16.mxu0 0
        %2482 = vmatpush1.bf16.msra.mxu0 %v2467
        %2483 = vmatprep.subr.bf16.mxu0 0
        %2484 = vmatpush1.bf16.msra.mxu0 %v2456
        %2485 = vmatprep.subr.bf16.mxu0 0
        %2486 = vmatpush2.bf16.msra.mxu0 0
        %2487 = vmatprep.subr.bf16.mxu0 0
        %2488 = vmatpush2.bf16.msra.mxu0 0
        %2489 = vmatprep.subr.bf16.mxu0 0
        %2490 = vmatpush2.bf16.msra.mxu0 0
        %2491 = vmatprep.subr.bf16.mxu0 0
        %2492 = vmatpush2.bf16.msra.mxu0 0
        %2493 = vmatprep.subr.bf16.mxu0 0
        %2494 = vmatpush2.bf16.msra.mxu0 0
        %2495 = vmatprep.subr.bf16.mxu0 0
        %2496 = vmatpush2.bf16.msra.mxu0 0
        %2497 = vmatprep.subr.bf16.mxu0 0
        %2498 = vmatpush2.bf16.msra.mxu0 0
        %2499 = vmatprep.subr.bf16.mxu0 0
        %2500 = vmatpush2.bf16.msra.mxu0 0
        %2501 = vmatprep.mubr.bf16.mxu0 0
        %2502 = vmatmul.mubr.bf16.gmra.mxu0 %v2461
        %v2503 = vpop.f32.mrf.mxu0
        %v2504 = vadd.f32 0.0, %v2503
        %v2505 = vpop.f32.mrf.mxu0
        %v2506 = vpop.f32.mrf.mxu0
        %v2507 = vadd.f32 0.0, %v2506
        %v2508 = vpop.f32.mrf.mxu0
        %2509 = vmatprep.mubr.bf16.mxu0 0
        %2510 = vmatmul.mubr.bf16.gmra.mxu0 %v2464
        %v2511 = vpop.f32.mrf.mxu0
        %v2512 = vadd.f32 0.0, %v2511
        %v2513 = vpop.f32.mrf.mxu0
        %v2514 = vpop.f32.mrf.mxu0
        %v2515 = vpop.f32.mrf.mxu0
        %2516 = vdwg.mxu0
        %2517 = vrot.lane.b32.xlu0 %v1051, 72
        %v2518 = vpop.permute.xlu0 %2517
        %2519 = vrot.lane.b32.xlu0 %v1056, 72
        %v2520 = vpop.permute.xlu0 %2519
        %2521 = vrot.lane.b32.xlu0 %v1059, 72
        %v2522 = vpop.permute.xlu0 %2521
        %2526 = vxpose.xlu0.b32.start [1/16] %v2518, 128
        %2527 = vxpose.xlu0.b32.cont [2/16] %v2520, 128
        %2528 = vxpose.xlu0.b32.cont [3/16] %v2522, 128
        %2529 = vxpose.xlu0.b32.cont [4/16] 0.0, 128
        %2530 = vxpose.xlu0.b32.cont [5/16] 0.0, 128
        %2531 = vxpose.xlu0.b32.cont [6/16] 0.0, 128
        %2532 = vxpose.xlu0.b32.cont [7/16] 0.0, 128
        %2533 = vxpose.xlu0.b32.cont [8/16] 0.0, 128
        %2534 = vxpose.xlu0.b32.cont [9/16] 0.0, 128
        %2535 = vxpose.xlu0.b32.cont [10/16] 0.0, 128
        %2536 = vxpose.xlu0.b32.cont [11/16] 0.0, 128
        %2537 = vxpose.xlu0.b32.cont [12/16] 0.0, 128
        %2538 = vxpose.xlu0.b32.cont [13/16] 0.0, 128
        %2539 = vxpose.xlu0.b32.cont [14/16] 0.0, 128
        %2540 = vxpose.xlu0.b32.cont [15/16] 0.0, 128
        %2541 = vxpose.xlu0.b32.end [16/16] 0.0, 128
        %v2542 = vpop.trf.xlu0
        %v2543 = vpop.trf.xlu0
        %v2544 = vpop.trf.xlu0
        %v2545 = vpop.trf.xlu0
        %v2546 = vpop.trf.xlu0
        %v2547 = vpop.trf.xlu0
        %v2548 = vpop.trf.xlu0
        %v2549 = vpop.trf.xlu0
        %v2550 = vpop.trf.xlu0
        %v2551 = vpop.trf.xlu0
        %v2552 = vpop.trf.xlu0
        %v2553 = vpop.trf.xlu0
        %v2554 = vpop.trf.xlu0
        %v2555 = vpop.trf.xlu0
        %v2556 = vpop.trf.xlu0
        %v2557 = vpop.trf.xlu0
        %v2558 = vpack.c.bf16 %v2542, %v2542
        %2559 = vrot.lane.b32.xlu0 %v1958, 104
        %v2560 = vpop.permute.xlu0 %2559
        %2561 = vrot.lane.b32.xlu0 %v1959, 104
        %v2562 = vpop.permute.xlu0 %2561
        %v2564 = vsel %vm1109, %v2560, 0
        %v2567 = vsel %vm1109, %v2562, 0
        %v2570 = vsel %vm1116, %v2558, 0
        %2572 = vmatprep.subr.bf16.mxu0 0
        %2573 = vmatpush1.bf16.msra.mxu0 0
        %2574 = vmatprep.subr.bf16.mxu0 0
        %2575 = vmatpush1.bf16.msra.mxu0 0
        %2576 = vmatprep.subr.bf16.mxu0 0
        %2577 = vmatpush1.bf16.msra.mxu0 0
        %2578 = vmatprep.subr.bf16.mxu0 0
        %2579 = vmatpush1.bf16.msra.mxu0 0
        %2580 = vmatprep.subr.bf16.mxu0 0
        %2581 = vmatpush1.bf16.msra.mxu0 0
        %2582 = vmatprep.subr.bf16.mxu0 0
        %2583 = vmatpush1.bf16.msra.mxu0 0
        %2584 = vmatprep.subr.bf16.mxu0 0
        %2585 = vmatpush1.bf16.msra.mxu0 0
        %2586 = vmatprep.subr.bf16.mxu0 0
        %2587 = vmatpush1.bf16.msra.mxu0 %v2570
        %2588 = vmatprep.subr.bf16.mxu0 0
        %2589 = vmatpush2.bf16.msra.mxu0 0
        %2590 = vmatprep.subr.bf16.mxu0 0
        %2591 = vmatpush2.bf16.msra.mxu0 0
        %2592 = vmatprep.subr.bf16.mxu0 0
        %2593 = vmatpush2.bf16.msra.mxu0 0
        %2594 = vmatprep.subr.bf16.mxu0 0
        %2595 = vmatpush2.bf16.msra.mxu0 0
        %2596 = vmatprep.subr.bf16.mxu0 0
        %2597 = vmatpush2.bf16.msra.mxu0 0
        %2598 = vmatprep.subr.bf16.mxu0 0
        %2599 = vmatpush2.bf16.msra.mxu0 0
        %2600 = vmatprep.subr.bf16.mxu0 0
        %2601 = vmatpush2.bf16.msra.mxu0 0
        %2602 = vmatprep.subr.bf16.mxu0 0
        %2603 = vmatpush2.bf16.msra.mxu0 0
        %2604 = vmatprep.mubr.bf16.mxu0 0
        %2605 = vmatmul.mubr.bf16.gmra.mxu0 %v2564
        %v2606 = vpop.f32.mrf.mxu0
        %v2607 = vadd.f32 %v870, %v2606
        %v2608 = vpop.f32.mrf.mxu0
        %v2609 = vpop.f32.mrf.mxu0
        %v2610 = vadd.f32 %v870, %v2609
        %v2611 = vpop.f32.mrf.mxu0
        %2612 = vmatprep.mubr.bf16.mxu0 0
        %2613 = vmatmul.mubr.bf16.gmra.mxu0 %v2567
        %v2614 = vpop.f32.mrf.mxu0
        %v2615 = vadd.f32 %v870, %v2614
        %v2616 = vpop.f32.mrf.mxu0
        %v2617 = vpop.f32.mrf.mxu0
        %v2618 = vpop.f32.mrf.mxu0
        %2619 = vdwg.mxu0
        %v2620 = vsel %vm1168, %v2607, -inf
        %2621 = vmax.xlane.f32.xlu0 %v2620
        %v2622 = vpop.xlane.xlu0 %2621
        %v2623 = vsel %vm1168, %v2610, -inf
        %2624 = vmax.xlane.f32.xlu0 %v2623
        %v2625 = vpop.xlane.xlu0 %2624
        %v2626 = vsel %vm1168, %v2615, -inf
        %2627 = vmax.xlane.f32.xlu0 %v2626
        %v2628 = vpop.xlane.xlu0 %2627
        %v2629 = vsub.f32 %v2607, %v2622
        %v2630 = vsub.f32 %v2610, %v2625
        %v2631 = vsub.f32 %v2615, %v2628
        %v2632 = vmul.f32 %v2629, 1.442695
        %v2633 = vpow.pop %v2632
        %v2634 = vmul.f32 %v2630, 1.442695
        %v2635 = vpow.pop %v2634
        %v2636 = vmul.f32 %v2631, 1.442695
        %v2637 = vpow.pop %v2636
        %v2638 = vsel %vm1168, %v2633, 0.0
        %2639 = vadd.xlane.f32.xlu0 %v2638
        %v2640 = vpop.xlane.xlu0 %2639
        %v2641 = vsel %vm1168, %v2635, 0.0
        %2642 = vadd.xlane.f32.xlu0 %v2641
        %v2643 = vpop.xlane.xlu0 %2642
        %v2644 = vsel %vm1168, %v2637, 0.0
        %2645 = vadd.xlane.f32.xlu0 %v2644
        %v2646 = vpop.xlane.xlu0 %2645
        %v2647 = vrcp.pop %v2640
        %v2648 = vrcp.pop %v2643
        %v2649 = vrcp.pop %v2646
        %v2650 = vmul.f32 %v2633, %v2647
        %v2651 = vmul.f32 %v2635, %v2648
        %v2652 = vmul.f32 %v2637, %v2649
        %v2653 = vpack.c.bf16 %v2651, %v2650
        %v2654 = vpack.c.bf16 %v2652, %v2652
        %2655 = vrot.lane.b32.xlu0 %v1958, 40
        %v2656 = vpop.permute.xlu0 %2655
        %2657 = vrot.lane.b32.xlu0 %v1959, 40
        %v2658 = vpop.permute.xlu0 %2657
        %v2661 = vsel %vm1168, %v2653, 0
        %v2664 = vsel %vm1168, %v2654, 0
        %v2667 = vsel %vm1116, %v2658, 0
        %2669 = vmatprep.subr.bf16.mxu0 0
        %2670 = vmatpush1.bf16.msra.mxu0 0
        %2671 = vmatprep.subr.bf16.mxu0 0
        %2672 = vmatpush1.bf16.msra.mxu0 0
        %2673 = vmatprep.subr.bf16.mxu0 0
        %2674 = vmatpush1.bf16.msra.mxu0 0
        %2675 = vmatprep.subr.bf16.mxu0 0
        %2676 = vmatpush1.bf16.msra.mxu0 0
        %2677 = vmatprep.subr.bf16.mxu0 0
        %2678 = vmatpush1.bf16.msra.mxu0 0
        %2679 = vmatprep.subr.bf16.mxu0 0
        %2680 = vmatpush1.bf16.msra.mxu0 0
        %2681 = vmatprep.subr.bf16.mxu0 0
        %2682 = vmatpush1.bf16.msra.mxu0 %v2667
        %2683 = vmatprep.subr.bf16.mxu0 0
        %2684 = vmatpush1.bf16.msra.mxu0 %v2656
        %2685 = vmatprep.subr.bf16.mxu0 0
        %2686 = vmatpush2.bf16.msra.mxu0 0
        %2687 = vmatprep.subr.bf16.mxu0 0
        %2688 = vmatpush2.bf16.msra.mxu0 0
        %2689 = vmatprep.subr.bf16.mxu0 0
        %2690 = vmatpush2.bf16.msra.mxu0 0
        %2691 = vmatprep.subr.bf16.mxu0 0
        %2692 = vmatpush2.bf16.msra.mxu0 0
        %2693 = vmatprep.subr.bf16.mxu0 0
        %2694 = vmatpush2.bf16.msra.mxu0 0
        %2695 = vmatprep.subr.bf16.mxu0 0
        %2696 = vmatpush2.bf16.msra.mxu0 0
        %2697 = vmatprep.subr.bf16.mxu0 0
        %2698 = vmatpush2.bf16.msra.mxu0 0
        %2699 = vmatprep.subr.bf16.mxu0 0
        %2700 = vmatpush2.bf16.msra.mxu0 0
        %2701 = vmatprep.mubr.bf16.mxu0 0
        %2702 = vmatmul.mubr.bf16.gmra.mxu0 %v2661
        %v2703 = vpop.f32.mrf.mxu0
        %v2704 = vadd.f32 0.0, %v2703
        %v2705 = vpop.f32.mrf.mxu0
        %v2706 = vpop.f32.mrf.mxu0
        %v2707 = vadd.f32 0.0, %v2706
        %v2708 = vpop.f32.mrf.mxu0
        %2709 = vmatprep.mubr.bf16.mxu0 0
        %2710 = vmatmul.mubr.bf16.gmra.mxu0 %v2664
        %v2711 = vpop.f32.mrf.mxu0
        %v2712 = vadd.f32 0.0, %v2711
        %v2713 = vpop.f32.mrf.mxu0
        %v2714 = vpop.f32.mrf.mxu0
        %v2715 = vpop.f32.mrf.mxu0
        %2716 = vdwg.mxu0
        %2720 = vrot.lane.b32.xlu0 %v2304, 8
        %v2721 = vpop.permute.xlu0 %2720
        %2722 = vrot.lane.b32.xlu0 %v2307, 8
        %v2723 = vpop.permute.xlu0 %2722
        %2724 = vrot.lane.b32.xlu0 %v2312, 8
        %v2725 = vpop.permute.xlu0 %2724
        %2732 = vrot.lane.b32.xlu0 %v2504, 16
        %v2733 = vpop.permute.xlu0 %2732
        %2734 = vrot.lane.b32.xlu0 %v2507, 16
        %v2735 = vpop.permute.xlu0 %2734
        %2736 = vrot.lane.b32.xlu0 %v2512, 16
        %v2737 = vpop.permute.xlu0 %2736
        %2744 = vrot.lane.b32.xlu0 %v2704, 24
        %v2745 = vpop.permute.xlu0 %2744
        %2746 = vrot.lane.b32.xlu0 %v2707, 24
        %v2747 = vpop.permute.xlu0 %2746
        %2748 = vrot.lane.b32.xlu0 %v2712, 24
        %v2749 = vpop.permute.xlu0 %2748
        %v2753 = vsel %vm1109, %v2104, %v2721
        %v2754 = vsel %vm1109, %v2107, %v2723
        %v2755 = vsel %vm1109, %v2112, %v2725
        %v2756 = vsel %vm1907, %v2753, %v2733
        %v2757 = vsel %vm1907, %v2754, %v2735
        %v2758 = vsel %vm1907, %v2755, %v2737
        %v2759 = vsel %vm1168, %v2756, %v2745
        %v2760 = vsel %vm1168, %v2757, %v2747
        %v2761 = vsel %vm1168, %v2758, %v2749
        %v2762 = vpack.c.bf16 %v1912, %v1911
        %v2763 = vpack.c.bf16 %v2759, %v1913
        %v2764 = vpack.c.bf16 %v2761, %v2760
        %v2765 = vld [vmem:[%s700] sm:$0xf]
        %v2766 = vld [vmem:[%s700 + $0x4] sm:$0xf]
        %v2767 = vld [vmem:[%s700 + $0x8] sm:$0xf]
        %v2768 = vld [vmem:[%s700 + $0xc] sm:$0xf]
        %v2773 = vunpack.c.l.b16 %v2765
        %v2774 = vunpack.c.l.b16 %v2766
        %v2775 = vunpack.c.l.b16 %v2767
        %v2776 = vunpack.c.l.b16 %v2768
        %v2777 = vpack.c.b16 %v2774, %v2773
        %v2778 = vpack.c.b16 %v2776, %v2775
        %v2782 = vsel %vm873, %v2762, 0
        %v2785 = vsel %vm873, %v2763, 0
        %v2788 = vsel %vm873, %v2764, 0
        %2790 = vmatprep.subr.bf16.mxu0 0
        %2791 = vmatpush1.bf16.msra.mxu0 0
        %2792 = vmatprep.subr.bf16.mxu0 0
        %2793 = vmatpush1.bf16.msra.mxu0 0
        %2794 = vmatprep.subr.bf16.mxu0 0
        %2795 = vmatpush1.bf16.msra.mxu0 0
        %2796 = vmatprep.subr.bf16.mxu0 0
        %2797 = vmatpush1.bf16.msra.mxu0 0
        %2798 = vmatprep.subr.bf16.mxu0 0
        %2799 = vmatpush1.bf16.msra.mxu0 0
        %2800 = vmatprep.subr.bf16.mxu0 0
        %2801 = vmatpush1.bf16.msra.mxu0 0
        %2802 = vmatprep.subr.bf16.mxu0 0
        %2803 = vmatpush1.bf16.msra.mxu0 %v2778
        %2804 = vmatprep.subr.bf16.mxu0 0
        %2805 = vmatpush1.bf16.msra.mxu0 %v2777
        %2806 = vmatprep.subr.bf16.mxu0 0
        %2807 = vmatpush2.bf16.msra.mxu0 0
        %2808 = vmatprep.subr.bf16.mxu0 0
        %2809 = vmatpush2.bf16.msra.mxu0 0
        %2810 = vmatprep.subr.bf16.mxu0 0
        %2811 = vmatpush2.bf16.msra.mxu0 0
        %2812 = vmatprep.subr.bf16.mxu0 0
        %2813 = vmatpush2.bf16.msra.mxu0 0
        %2814 = vmatprep.subr.bf16.mxu0 0
        %2815 = vmatpush2.bf16.msra.mxu0 0
        %2816 = vmatprep.subr.bf16.mxu0 0
        %2817 = vmatpush2.bf16.msra.mxu0 0
        %2818 = vmatprep.subr.bf16.mxu0 0
        %2819 = vmatpush2.bf16.msra.mxu0 0
        %2820 = vmatprep.subr.bf16.mxu0 0
        %2821 = vmatpush2.bf16.msra.mxu0 0
        %2822 = vmatprep.mubr.bf16.mxu0 0
        %2823 = vmatmul.mubr.bf16.gmra.mxu0 %v2782
        %v2824 = vpop.f32.mrf.mxu0
        %v2825 = vadd.f32 0.0, %v2824
        %v2826 = vpop.f32.mrf.mxu0
        %v2827 = vpop.f32.mrf.mxu0
        %v2828 = vadd.f32 0.0, %v2827
        %v2829 = vpop.f32.mrf.mxu0
        %2830 = vmatprep.mubr.bf16.mxu0 0
        %2831 = vmatmul.mubr.bf16.gmra.mxu0 %v2785
        %v2832 = vpop.f32.mrf.mxu0
        %v2833 = vadd.f32 0.0, %v2832
        %v2834 = vpop.f32.mrf.mxu0
        %v2835 = vpop.f32.mrf.mxu0
        %v2836 = vadd.f32 0.0, %v2835
        %v2837 = vpop.f32.mrf.mxu0
        %2838 = vmatprep.mubr.bf16.mxu0 0
        %2839 = vmatmul.mubr.bf16.gmra.mxu0 %v2788
        %v2840 = vpop.f32.mrf.mxu0
        %v2841 = vadd.f32 0.0, %v2840
        %v2842 = vpop.f32.mrf.mxu0
        %v2843 = vpop.f32.mrf.mxu0
        %v2844 = vadd.f32 0.0, %v2843
        %v2845 = vpop.f32.mrf.mxu0
        %2846 = vdwg.mxu0
        %v2847 = vadd.f32 %v861, %v2825
        %v2848 = vadd.f32 %v862, %v2828
        %v2849 = vadd.f32 %v863, %v2833
        %v2850 = vadd.f32 %v864, %v2836
        %v2851 = vadd.f32 %v865, %v2841
        %v2852 = vadd.f32 %v866, %v2844
        %v2853 = vld [vmem:[%s703] sm:$0x1]
        %v2854 = vld [vmem:[%s706] sm:$0x1]
        %v2855 = vsel %vm873, %v2847, 0.0
        %2856 = vadd.xlane.f32.xlu0 %v2855
        %v2857 = vpop.xlane.xlu0 %2856
        %v2858 = vsel %vm873, %v2848, 0.0
        %2859 = vadd.xlane.f32.xlu0 %v2858
        %v2860 = vpop.xlane.xlu0 %2859
        %v2861 = vsel %vm873, %v2849, 0.0
        %2862 = vadd.xlane.f32.xlu0 %v2861
        %v2863 = vpop.xlane.xlu0 %2862
        %v2864 = vsel %vm873, %v2850, 0.0
        %2865 = vadd.xlane.f32.xlu0 %v2864
        %v2866 = vpop.xlane.xlu0 %2865
        %v2867 = vsel %vm873, %v2851, 0.0
        %2868 = vadd.xlane.f32.xlu0 %v2867
        %v2869 = vpop.xlane.xlu0 %2868
        %v2870 = vsel %vm873, %v2852, 0.0
        %2871 = vadd.xlane.f32.xlu0 %v2870
        %v2872 = vpop.xlane.xlu0 %2871
        %v2873 = vmul.f32 %v2857, %v892
        %v2874 = vmul.f32 %v2860, %v892
        %v2875 = vmul.f32 %v2863, %v892
        %v2876 = vmul.f32 %v2866, %v892
        %v2877 = vmul.f32 %v2869, %v892
        %v2878 = vmul.f32 %v2872, %v892
        %v2879 = vsub.f32 %v2847, %v2873
        %v2880 = vsub.f32 %v2848, %v2874
        %v2881 = vsub.f32 %v2849, %v2875
        %v2882 = vsub.f32 %v2850, %v2876
        %v2883 = vsub.f32 %v2851, %v2877
        %v2884 = vsub.f32 %v2852, %v2878
        %v2885 = vmul.f32 %v2879, %v2879
        %v2886 = vmul.f32 %v2880, %v2880
        %v2887 = vmul.f32 %v2881, %v2881
        %v2888 = vmul.f32 %v2882, %v2882
        %v2889 = vmul.f32 %v2883, %v2883
        %v2890 = vmul.f32 %v2884, %v2884
        %v2891 = vsel %vm873, %v2885, 0.0
        %2892 = vadd.xlane.f32.xlu0 %v2891
        %v2893 = vpop.xlane.xlu0 %2892
        %v2894 = vsel %vm873, %v2886, 0.0
        %2895 = vadd.xlane.f32.xlu0 %v2894
        %v2896 = vpop.xlane.xlu0 %2895
        %v2897 = vsel %vm873, %v2887, 0.0
        %2898 = vadd.xlane.f32.xlu0 %v2897
        %v2899 = vpop.xlane.xlu0 %2898
        %v2900 = vsel %vm873, %v2888, 0.0
        %2901 = vadd.xlane.f32.xlu0 %v2900
        %v2902 = vpop.xlane.xlu0 %2901
        %v2903 = vsel %vm873, %v2889, 0.0
        %2904 = vadd.xlane.f32.xlu0 %v2903
        %v2905 = vpop.xlane.xlu0 %2904
        %v2906 = vsel %vm873, %v2890, 0.0
        %2907 = vadd.xlane.f32.xlu0 %v2906
        %v2908 = vpop.xlane.xlu0 %2907
        %v2909 = vmul.f32 %v2893, %v892
        %v2910 = vmul.f32 %v2896, %v892
        %v2911 = vmul.f32 %v2899, %v892
        %v2912 = vmul.f32 %v2902, %v892
        %v2913 = vmul.f32 %v2905, %v892
        %v2914 = vmul.f32 %v2908, %v892
        %v2915 = vadd.f32 %v2909, 1e-05
        %v2916 = vadd.f32 %v2910, 1e-05
        %v2917 = vadd.f32 %v2911, 1e-05
        %v2918 = vadd.f32 %v2912, 1e-05
        %v2919 = vadd.f32 %v2913, 1e-05
        %v2920 = vadd.f32 %v2914, 1e-05
        %v2921 = vrsqrt.pop %v2915
        %v2922 = vrsqrt.pop %v2916
        %v2923 = vrsqrt.pop %v2917
        %v2924 = vrsqrt.pop %v2918
        %v2925 = vrsqrt.pop %v2919
        %v2926 = vrsqrt.pop %v2920
        %v2927 = vmul.f32 %v2879, %v2921
        %v2928 = vmul.f32 %v2880, %v2922
        %v2929 = vmul.f32 %v2881, %v2923
        %v2930 = vmul.f32 %v2882, %v2924
        %v2931 = vmul.f32 %v2883, %v2925
        %v2932 = vmul.f32 %v2884, %v2926
        %v2934 = vlaneseq
        %v2935 = vshrl.u32 %v2934, 7
        %v2936 = vsub.s32 0, %v2935
        %v2937 = vrot.slane %v2853, %v2936
        %v2939 = vmul.f32 %v2927, %v2937
        %v2940 = vmul.f32 %v2928, %v2937
        %v2941 = vmul.f32 %v2929, %v2937
        %v2942 = vmul.f32 %v2930, %v2937
        %v2943 = vmul.f32 %v2931, %v2937
        %v2944 = vmul.f32 %v2932, %v2937
        %v2946 = vlaneseq
        %v2947 = vshrl.u32 %v2946, 7
        %v2948 = vsub.s32 0, %v2947
        %v2949 = vrot.slane %v2854, %v2948
        %v2951 = vadd.f32 %v2939, %v2949
        %v2952 = vadd.f32 %v2940, %v2949
        %v2953 = vadd.f32 %v2941, %v2949
        %v2954 = vadd.f32 %v2942, %v2949
        %v2955 = vadd.f32 %v2943, %v2949
        %v2956 = vadd.f32 %v2944, %v2949
        %v2957 = vpack.c.bf16 %v2952, %v2951
        %v2958 = vpack.c.bf16 %v2954, %v2953
        %v2959 = vpack.c.bf16 %v2956, %v2955
        %v2960 = vld [vmem:[%s711] sm:$0xf]
        %v2961 = vld [vmem:[%s711 + $0x4] sm:$0xf]
        %v2962 = vld [vmem:[%s711 + $0x8] sm:$0xf]
        %v2963 = vld [vmem:[%s711 + $0xc] sm:$0xf]
        %v2964 = vld [vmem:[%s714] sm:$0x1]
        %v2966 = vlaneseq
        %v2967 = vshrl.u32 %v2966, 7
        %v2968 = vsub.s32 0, %v2967
        %v2969 = vrot.slane %v2964, %v2968
        %v2975 = vunpack.c.l.b16 %v2960
        %v2976 = vunpack.c.l.b16 %v2961
        %v2977 = vunpack.c.l.b16 %v2962
        %v2978 = vunpack.c.l.b16 %v2963
        %v2979 = vpack.c.b16 %v2976, %v2975
        %v2980 = vpack.c.b16 %v2978, %v2977
        %v2984 = vsel %vm873, %v2957, 0
        %v2987 = vsel %vm873, %v2958, 0
        %v2990 = vsel %vm873, %v2959, 0
        %2992 = vmatprep.subr.bf16.mxu0 0
        %2993 = vmatpush1.bf16.msra.mxu0 0
        %2994 = vmatprep.subr.bf16.mxu0 0
        %2995 = vmatpush1.bf16.msra.mxu0 0
        %2996 = vmatprep.subr.bf16.mxu0 0
        %2997 = vmatpush1.bf16.msra.mxu0 0
        %2998 = vmatprep.subr.bf16.mxu0 0
        %2999 = vmatpush1.bf16.msra.mxu0 0
        %3000 = vmatprep.subr.bf16.mxu0 0
        %3001 = vmatpush1.bf16.msra.mxu0 0
        %3002 = vmatprep.subr.bf16.mxu0 0
        %3003 = vmatpush1.bf16.msra.mxu0 0
        %3004 = vmatprep.subr.bf16.mxu0 0
        %3005 = vmatpush1.bf16.msra.mxu0 %v2980
        %3006 = vmatprep.subr.bf16.mxu0 0
        %3007 = vmatpush1.bf16.msra.mxu0 %v2979
        %3008 = vmatprep.subr.bf16.mxu0 0
        %3009 = vmatpush2.bf16.msra.mxu0 0
        %3010 = vmatprep.subr.bf16.mxu0 0
        %3011 = vmatpush2.bf16.msra.mxu0 0
        %3012 = vmatprep.subr.bf16.mxu0 0
        %3013 = vmatpush2.bf16.msra.mxu0 0
        %3014 = vmatprep.subr.bf16.mxu0 0
        %3015 = vmatpush2.bf16.msra.mxu0 0
        %3016 = vmatprep.subr.bf16.mxu0 0
        %3017 = vmatpush2.bf16.msra.mxu0 0
        %3018 = vmatprep.subr.bf16.mxu0 0
        %3019 = vmatpush2.bf16.msra.mxu0 0
        %3020 = vmatprep.subr.bf16.mxu0 0
        %3021 = vmatpush2.bf16.msra.mxu0 0
        %3022 = vmatprep.subr.bf16.mxu0 0
        %3023 = vmatpush2.bf16.msra.mxu0 0
        %3024 = vmatprep.mubr.bf16.mxu0 0
        %3025 = vmatmul.mubr.bf16.gmra.mxu0 %v2984
        %v3026 = vpop.f32.mrf.mxu0
        %v3027 = vadd.f32 %v2969, %v3026
        %v3028 = vpop.f32.mrf.mxu0
        %v3029 = vpop.f32.mrf.mxu0
        %v3030 = vadd.f32 %v2969, %v3029
        %v3031 = vpop.f32.mrf.mxu0
        %3032 = vmatprep.mubr.bf16.mxu0 0
        %3033 = vmatmul.mubr.bf16.gmra.mxu0 %v2987
        %v3034 = vpop.f32.mrf.mxu0
        %v3035 = vadd.f32 %v2969, %v3034
        %v3036 = vpop.f32.mrf.mxu0
        %v3037 = vpop.f32.mrf.mxu0
        %v3038 = vadd.f32 %v2969, %v3037
        %v3039 = vpop.f32.mrf.mxu0
        %3040 = vmatprep.mubr.bf16.mxu0 0
        %3041 = vmatmul.mubr.bf16.gmra.mxu0 %v2990
        %v3042 = vpop.f32.mrf.mxu0
        %v3043 = vadd.f32 %v2969, %v3042
        %v3044 = vpop.f32.mrf.mxu0
        %v3045 = vpop.f32.mrf.mxu0
        %v3046 = vadd.f32 %v2969, %v3045
        %v3047 = vpop.f32.mrf.mxu0
        %3048 = vdwg.mxu0
        %v3049 = vmul.f32 %v3027, 0.5
        %v3050 = vmul.f32 %v3030, 0.5
        %v3051 = vmul.f32 %v3035, 0.5
        %v3052 = vmul.f32 %v3038, 0.5
        %v3053 = vmul.f32 %v3043, 0.5
        %v3054 = vmul.f32 %v3046, 0.5
        %v3055 = vmul.f32 %v3027, 0.044715
        %v3056 = vmul.f32 %v3030, 0.044715
        %v3057 = vmul.f32 %v3035, 0.044715
        %v3058 = vmul.f32 %v3038, 0.044715
        %v3059 = vmul.f32 %v3043, 0.044715
        %v3060 = vmul.f32 %v3046, 0.044715
        %v3061 = vmul.f32 %v3055, %v3027
        %v3062 = vmul.f32 %v3056, %v3030
        %v3063 = vmul.f32 %v3057, %v3035
        %v3064 = vmul.f32 %v3058, %v3038
        %v3065 = vmul.f32 %v3059, %v3043
        %v3066 = vmul.f32 %v3060, %v3046
        %v3067 = vmul.f32 %v3061, %v3027
        %v3068 = vmul.f32 %v3062, %v3030
        %v3069 = vmul.f32 %v3063, %v3035
        %v3070 = vmul.f32 %v3064, %v3038
        %v3071 = vmul.f32 %v3065, %v3043
        %v3072 = vmul.f32 %v3066, %v3046
        %v3073 = vadd.f32 %v3027, %v3067
        %v3074 = vadd.f32 %v3030, %v3068
        %v3075 = vadd.f32 %v3035, %v3069
        %v3076 = vadd.f32 %v3038, %v3070
        %v3077 = vadd.f32 %v3043, %v3071
        %v3078 = vadd.f32 %v3046, %v3072
        %v3079 = vmul.f32 %v3073, 0.7978846
        %v3080 = vmul.f32 %v3074, 0.7978846
        %v3081 = vmul.f32 %v3075, 0.7978846
        %v3082 = vmul.f32 %v3076, 0.7978846
        %v3083 = vmul.f32 %v3077, 0.7978846
        %v3084 = vmul.f32 %v3078, 0.7978846
        %v3085 = vtanh.pop %v3079
        %v3086 = vtanh.pop %v3080
        %v3087 = vtanh.pop %v3081
        %v3088 = vtanh.pop %v3082
        %v3089 = vtanh.pop %v3083
        %v3090 = vtanh.pop %v3084
        %v3091 = vadd.f32 %v3085, 1.0
        %v3092 = vadd.f32 %v3086, 1.0
        %v3093 = vadd.f32 %v3087, 1.0
        %v3094 = vadd.f32 %v3088, 1.0
        %v3095 = vadd.f32 %v3089, 1.0
        %v3096 = vadd.f32 %v3090, 1.0
        %v3097 = vmul.f32 %v3049, %v3091
        %v3098 = vmul.f32 %v3050, %v3092
        %v3099 = vmul.f32 %v3051, %v3093
        %v3100 = vmul.f32 %v3052, %v3094
        %v3101 = vmul.f32 %v3053, %v3095
        %v3102 = vmul.f32 %v3054, %v3096
        %v3103 = vpack.c.bf16 %v3098, %v3097
        %v3104 = vpack.c.bf16 %v3100, %v3099
        %v3105 = vpack.c.bf16 %v3102, %v3101
        %v3106 = vld [vmem:[%s719] sm:$0xf]
        %v3107 = vld [vmem:[%s719 + $0x4] sm:$0xf]
        %v3108 = vld [vmem:[%s719 + $0x8] sm:$0xf]
        %v3109 = vld [vmem:[%s719 + $0xc] sm:$0xf]
        %v3110 = vld [vmem:[%s719 + $0x10] sm:$0xf]
        %v3111 = vld [vmem:[%s719 + $0x14] sm:$0xf]
        %v3112 = vld [vmem:[%s719 + $0x18] sm:$0xf]
        %v3113 = vld [vmem:[%s719 + $0x1c] sm:$0xf]
        %v3122 = vunpack.c.l.b16 %v3106
        %v3123 = vunpack.c.l.b16 %v3107
        %v3124 = vunpack.c.l.b16 %v3108
        %v3125 = vunpack.c.l.b16 %v3109
        %v3126 = vunpack.c.l.b16 %v3110
        %v3127 = vunpack.c.l.b16 %v3111
        %v3128 = vunpack.c.l.b16 %v3112
        %v3129 = vunpack.c.l.b16 %v3113
        %v3130 = vpack.c.b16 %v3123, %v3122
        %v3131 = vpack.c.b16 %v3125, %v3124
        %v3132 = vpack.c.b16 %v3127, %v3126
        %v3133 = vpack.c.b16 %v3129, %v3128
        %vm3138 = vcmask 523264
        %v3140 = vsel %vm3138, %v3103, 0
        %v3143 = vsel %vm3138, %v3104, 0
        %v3146 = vsel %vm3138, %v3105, 0
        %3148 = vmatprep.subr.bf16.mxu0 0
        %3149 = vmatpush1.bf16.msra.mxu0 0
        %3150 = vmatprep.subr.bf16.mxu0 0
        %3151 = vmatpush1.bf16.msra.mxu0 0
        %3152 = vmatprep.subr.bf16.mxu0 0
        %3153 = vmatpush1.bf16.msra.mxu0 0
        %3154 = vmatprep.subr.bf16.mxu0 0
        %3155 = vmatpush1.bf16.msra.mxu0 0
        %3156 = vmatprep.subr.bf16.mxu0 0
        %3157 = vmatpush1.bf16.msra.mxu0 %v3133
        %3158 = vmatprep.subr.bf16.mxu0 0
        %3159 = vmatpush1.bf16.msra.mxu0 %v3132
        %3160 = vmatprep.subr.bf16.mxu0 0
        %3161 = vmatpush1.bf16.msra.mxu0 %v3131
        %3162 = vmatprep.subr.bf16.mxu0 0
        %3163 = vmatpush1.bf16.msra.mxu0 %v3130
        %3164 = vmatprep.subr.bf16.mxu0 0
        %3165 = vmatpush2.bf16.msra.mxu0 0
        %3166 = vmatprep.subr.bf16.mxu0 0
        %3167 = vmatpush2.bf16.msra.mxu0 0
        %3168 = vmatprep.subr.bf16.mxu0 0
        %3169 = vmatpush2.bf16.msra.mxu0 0
        %3170 = vmatprep.subr.bf16.mxu0 0
        %3171 = vmatpush2.bf16.msra.mxu0 0
        %3172 = vmatprep.subr.bf16.mxu0 0
        %3173 = vmatpush2.bf16.msra.mxu0 0
        %3174 = vmatprep.subr.bf16.mxu0 0
        %3175 = vmatpush2.bf16.msra.mxu0 0
        %3176 = vmatprep.subr.bf16.mxu0 0
        %3177 = vmatpush2.bf16.msra.mxu0 0
        %3178 = vmatprep.subr.bf16.mxu0 0
        %3179 = vmatpush2.bf16.msra.mxu0 0
        %3180 = vmatprep.mubr.bf16.mxu0 0
        %3181 = vmatmul.mubr.bf16.gmra.mxu0 %v3140
        %v3182 = vpop.f32.mrf.mxu0
        %v3183 = vadd.f32 0.0, %v3182
        %v3184 = vpop.f32.mrf.mxu0
        %v3185 = vpop.f32.mrf.mxu0
        %v3186 = vadd.f32 0.0, %v3185
        %v3187 = vpop.f32.mrf.mxu0
        %3188 = vmatprep.mubr.bf16.mxu0 0
        %3189 = vmatmul.mubr.bf16.gmra.mxu0 %v3143
        %v3190 = vpop.f32.mrf.mxu0
        %v3191 = vadd.f32 0.0, %v3190
        %v3192 = vpop.f32.mrf.mxu0
        %v3193 = vpop.f32.mrf.mxu0
        %v3194 = vadd.f32 0.0, %v3193
        %v3195 = vpop.f32.mrf.mxu0
        %3196 = vmatprep.mubr.bf16.mxu0 0
        %3197 = vmatmul.mubr.bf16.gmra.mxu0 %v3146
        %v3198 = vpop.f32.mrf.mxu0
        %v3199 = vadd.f32 0.0, %v3198
        %v3200 = vpop.f32.mrf.mxu0
        %v3201 = vpop.f32.mrf.mxu0
        %v3202 = vadd.f32 0.0, %v3201
        %v3203 = vpop.f32.mrf.mxu0
        %3204 = vdwg.mxu0
        %v3205 = vadd.f32 %v2847, %v3183
        %v3206 = vadd.f32 %v2848, %v3186
        %v3207 = vadd.f32 %v2849, %v3191
        %v3208 = vadd.f32 %v2850, %v3194
        %v3209 = vadd.f32 %v2851, %v3199
        %v3210 = vadd.f32 %v2852, %v3202
        %v3211 = vld [vmem:[%s722] sm:$0x1]
        %v3213 = vlaneseq
        %v3214 = vshrl.u32 %v3213, 7
        %v3215 = vsub.s32 0, %v3214
        %v3216 = vrot.slane %v3211, %v3215
        %v3218 = vadd.f32 %v3205, %v3216
        %v3219 = vadd.f32 %v3206, %v3216
        %v3220 = vadd.f32 %v3207, %v3216
        %v3221 = vadd.f32 %v3208, %v3216
        %v3222 = vadd.f32 %v3209, %v3216
        %v3223 = vadd.f32 %v3210, %v3216
        %3224 = vst.msk [vmem:[#allocation2] sm:$0xff] %vm873, %v3218
        %3225 = vst.msk [vmem:[#allocation2 + $0x8] sm:$0xff] %vm873, %v3219
        %3226 = vst.msk [vmem:[#allocation2 + $0x10] sm:$0xff] %vm873, %v3220
        %3227 = vst.msk [vmem:[#allocation2 + $0x18] sm:$0xff] %vm873, %v3221
        %3228 = vst.msk [vmem:[#allocation2 + $0x20] sm:$0xff] %vm873, %v3222
        %3229 = vst.msk [vmem:[#allocation2 + $0x28] sm:$0xff] %vm873, %v3223
        %p3230 = scmp.eq.s32.totalorder %s36, 1
        // Predicated region
        $region93: #{vit_forward.1} parent=87 // pred_check
          %p3231 = pneg %p3230
        $region94: #{vit_forward.1} parent=87 // pred_check_branch
          %3233 = sbr.rel (%p3231) target = $region96
        $region95: #{vit_forward.1} parent=87 // pred_region
          %v3235 = vrot.slane %v3221, 7
          %vm3237 = vcmask 1040384
          %v3238 = vsel %vm3237, %v3218, %v3235
          %v3239 = vld [vmem:[%s13] sm:$0x1]
          %v3240 = vld [vmem:[%s14] sm:$0x1]
          %vm3241 = vcmask 254976
          %v3242 = vsel %vm3241, %v3238, 0.0
          %3243 = vadd.xlane.f32.xlu0 %v3242
          %v3244 = vpop.xlane.xlu0 %3243
          %v3245 = vmul.f32 %v3244, %v892
          %v3246 = vsub.f32 %v3238, %v3245
          %v3247 = vmul.f32 %v3246, %v3246
          %v3248 = vsel %vm3241, %v3247, 0.0
          %3249 = vadd.xlane.f32.xlu0 %v3248
          %v3250 = vpop.xlane.xlu0 %3249
          %v3251 = vmul.f32 %v3250, %v892
          %v3252 = vadd.f32 %v3251, 1e-05
          %v3253 = vrsqrt.pop %v3252
          %v3254 = vmul.f32 %v3246, %v3253
          %v3256 = vlaneseq
          %v3257 = vshrl.u32 %v3256, 7
          %v3258 = vsub.s32 0, %v3257
          %v3259 = vrot.slane %v3239, %v3258
          %v3261 = vmul.f32 %v3254, %v3259
          %v3263 = vlaneseq
          %v3264 = vshrl.u32 %v3263, 7
          %v3265 = vsub.s32 0, %v3264
          %v3266 = vrot.slane %v3240, %v3265
          %v3268 = vadd.f32 %v3261, %v3266
          %v3269 = vld [vmem:[%s15] sm:$0xff]
          %v3270 = vld [vmem:[%s15 + $0x8] sm:$0xff]
          %v3271 = vld [vmem:[%s15 + $0x10] sm:$0xff]
          %v3272 = vld [vmem:[%s15 + $0x18] sm:$0xff]
          %v3273 = vld [vmem:[%s16] sm:$0x1]
          %v3275 = vlaneseq
          %v3276 = vshrl.u32 %v3275, 7
          %v3277 = vsub.s32 0, %v3276
          %v3278 = vrot.slane %v3273, %v3277
          %v3281 = vsel %vm873, %v3268, 0
          %3283 = vmatprep.subr.mxu0 0.0
          %3284 = vmatpush1.msra.mxu0 0.0
          %3285 = vmatprep.subr.mxu0 0.0
          %3286 = vmatpush1.msra.mxu0 0.0
          %3287 = vmatprep.subr.mxu0 0.0
          %3288 = vmatpush1.msra.mxu0 0.0
          %3289 = vmatprep.subr.mxu0 0.0
          %3290 = vmatpush1.msra.mxu0 0.0
          %3291 = vmatprep.subr.mxu0 0.0
          %3292 = vmatpush1.msra.mxu0 0.0
          %3293 = vmatprep.subr.mxu0 0.0
          %3294 = vmatpush1.msra.mxu0 0.0
          %3295 = vmatprep.subr.mxu0 0.0
          %3296 = vmatpush1.msra.mxu0 0.0
          %3297 = vmatprep.subr.mxu0 0.0
          %3298 = vmatpush1.msra.mxu0 0.0
          %3299 = vmatprep.subr.mxu0 0.0
          %3300 = vmatpush1.msra.mxu0 0.0
          %3301 = vmatprep.subr.mxu0 0.0
          %3302 = vmatpush1.msra.mxu0 0.0
          %3303 = vmatprep.subr.mxu0 0.0
          %3304 = vmatpush1.msra.mxu0 0.0
          %3305 = vmatprep.subr.mxu0 0.0
          %3306 = vmatpush1.msra.mxu0 0.0
          %3307 = vmatprep.subr.mxu0 0.0
          %3308 = vmatpush1.msra.mxu0 %v3272
          %3309 = vmatprep.subr.mxu0 0.0
          %3310 = vmatpush1.msra.mxu0 %v3271
          %3311 = vmatprep.subr.mxu0 0.0
          %3312 = vmatpush1.msra.mxu0 %v3270
          %3313 = vmatprep.subr.mxu0 0.0
          %3314 = vmatpush1.msra.mxu0 %v3269
          %3315 = vmatprep.subr.mxu0 0.0
          %3316 = vmatpush2.msra.mxu0 0.0
          %3317 = vmatprep.subr.mxu0 0.0
          %3318 = vmatpush2.msra.mxu0 0.0
          %3319 = vmatprep.subr.mxu0 0.0
          %3320 = vmatpush2.msra.mxu0 0.0
          %3321 = vmatprep.subr.mxu0 0.0
          %3322 = vmatpush2.msra.mxu0 0.0
          %3323 = vmatprep.subr.mxu0 0.0
          %3324 = vmatpush2.msra.mxu0 0.0
          %3325 = vmatprep.subr.mxu0 0.0
          %3326 = vmatpush2.msra.mxu0 0.0
          %3327 = vmatprep.subr.mxu0 0.0
          %3328 = vmatpush2.msra.mxu0 0.0
          %3329 = vmatprep.subr.mxu0 0.0
          %3330 = vmatpush2.msra.mxu0 0.0
          %3331 = vmatprep.subr.mxu0 0.0
          %3332 = vmatpush2.msra.mxu0 0.0
          %3333 = vmatprep.subr.mxu0 0.0
          %3334 = vmatpush2.msra.mxu0 0.0
          %3335 = vmatprep.subr.mxu0 0.0
          %3336 = vmatpush2.msra.mxu0 0.0
          %3337 = vmatprep.subr.mxu0 0.0
          %3338 = vmatpush2.msra.mxu0 0.0
          %3339 = vmatprep.subr.mxu0 0.0
          %3340 = vmatpush2.msra.mxu0 0.0
          %3341 = vmatprep.subr.mxu0 0.0
          %3342 = vmatpush2.msra.mxu0 0.0
          %3343 = vmatprep.subr.mxu0 0.0
          %3344 = vmatpush2.msra.mxu0 0.0
          %3345 = vmatprep.subr.mxu0 0.0
          %3346 = vmatpush2.msra.mxu0 0.0
          %3347 = vmatprep.mubr.f32.mxu0 0.0
          %3348 = vmatmul.mubr.f32.gmra.mxu0 %v3281
          %v3349 = vpop.f32.mrf.mxu0
          %v3350 = vadd.f32 %v3278, %v3349
          %v3351 = vpop.f32.mrf.mxu0
          %3352 = vdwg.mxu0
          %vm3353 = vcmask 74752
          %v3354 = vsel %vm3353, %v3350, -inf
          %3355 = vmax.xlane.f32.xlu0 %v3354
          %v3356 = vpop.xlane.xlu0 %3355
          %v3357 = vsub.f32 %v3350, %v3356
          %v3358 = vmul.f32 %v3357, 1.442695
          %v3359 = vpow.pop %v3358
          %v3360 = vsel %vm3353, %v3359, 0.0
          %3361 = vadd.xlane.f32.xlu0 %v3360
          %v3362 = vpop.xlane.xlu0 %3361
          %v3363 = vrcp.pop %v3362
          %v3364 = vmul.f32 %v3359, %v3363
          %3365 = vst.msk [vmem:[%s679] sm:$0x3] %vm3353, %v3364
        $region96: #{vit_forward.1} parent=87 // pred_fallthru
          _
        %s3366 = sand.u32 %s463, 1
        %s3367 = scalar_lea.sflag [#allocation4], %s3366
        %s3368 = sand.u32 %s463, 1
        %s3369 = smul.addr %s3368, 2
        %s3370 = scalar_lea.vmem [#allocation3], %s3369
        // Predicated region
        $region97: #{vit_forward.1} parent=87 // pred_check
          %p3371 = pneg %p473
        $region98: #{vit_forward.1} parent=87 // pred_check_branch
          %3373 = sbr.rel (%p3371) target = $region100
        $region99: #{vit_forward.1} parent=87 // pred_region
          %s3375 = ssub.s32 32, 32
          %3376 = vsyncadd %s3367, %s3375
          %s3377 = smul.addr %s35, 32
          %s3378 = scalar_lea.hbm %s17, %s3377
          %s3380 = sshll.u32 %s3370, 4
          %s3381 = int_to_ptr.vmem [resolvable:$true] %s3380
          %3383 = dma.vmem_to_hbm [thread:$0]  %s3381, 32, %s3378, %s3367
        $region100: #{vit_forward.1} parent=87 // pred_fallthru
          _
      $region88: #{vit_forward.1} parent=5 // pred_fallthru
        _
      %p3384 = scmp.le.s32.totalorder 2, %s26
      // Predicated region
      $region101: #{vit_forward.1} parent=5 // pred_check
        %p3385 = pneg %p3384
      $region102: #{vit_forward.1} parent=5 // pred_check_branch
        %3387 = sbr.rel (%p3385) target = $region104
      $region103: #{vit_forward.1} parent=5 // pred_region
        %s3388 = ssub.s32 %s26, 2
        // Predicated region
        $region105: #{vit_forward.1} parent=103 // pred_check
          %p3389 = pneg %p479
        $region106: #{vit_forward.1} parent=103 // pred_check_branch
          %3391 = sbr.rel (%p3389) target = $region108
        $region107: #{vit_forward.1} parent=103 // pred_region
          %s3392 = sand.u32 %s464, 1
          %s3393 = scalar_lea.sflag [#allocation4], %s3392
          %s3394 = sand.u32 %s464, 1
          %s3395 = smul.addr %s3394, 2
          %s3396 = scalar_lea.vmem [#allocation3], %s3395
          %3397 = dma.done %s3393, 32
        $region108: #{vit_forward.1} parent=103 // pred_fallthru
          _
      $region104: #{vit_forward.1} parent=5 // pred_fallthru
        _
    $region6: #{vit_forward.1} parent=1 // loop_footer
      %s30 = sadd.s32 1, %s26
    $region7: #{vit_forward.1} parent=1 // loop_footer_branch
      %25 = sbr.rel target = $region3
    $region8: #{vit_forward.1} parent=1 // loop_exit
      _
    %3398 = vsyncpa [#allocation4], 1
    %s3399 = scalar_lea.sflag [#allocation4], 1
    %3400 = vsyncpa %s3399, 1

</llo_original>
